<compile_context>
chip_gen: v7x
topology: tpu7x:2x2x1
jax: 0.10.0
libtpu: 0.0.40
codegen_flags: <defaults>
</compile_context>

<pallas_src>
import numpy as np
import jax
import jax.numpy as jnp
from jax.experimental import pallas as pl
from jax.experimental.pallas import tpu as pltpu

# ----------------------------- configuration (DimeNet defaults, small sizes) --
EMB_SIZE      = 32
NUM_BLOCKS    = 2
NUM_BILINEAR  = 8
NUM_SPHERICAL = 4
NUM_RADIAL    = 6
CUTOFF        = 0.5
ENV_EXPONENT  = 5
NUM_BEFORE    = 1      # num_before_skip
NUM_AFTER     = 2      # num_after_skip
NUM_DENSE_OUT = 3      # num_dense_output
NUM_TARGETS   = 12
SR            = NUM_SPHERICAL * NUM_RADIAL
NB1           = NUM_BLOCKS + 1


# ============================ in-kernel helper math ===========================
def _swish(x):
    return x * jax.nn.sigmoid(x)


def _dot(a, b):
    """MXU dot: bf16 inputs, f32 accumulate."""
    return jnp.dot(a.astype(jnp.bfloat16), b.astype(jnp.bfloat16),
                   preferred_element_type=jnp.float32)


def _envelope(d):
    """Cutoff-compact polynomial envelope (powers via repeated multiplies)."""
    p = float(ENV_EXPONENT + 1)
    a = -(p + 1.0) * (p + 2.0) / 2.0
    b = p * (p + 2.0)
    c = -p * (p + 1.0) / 2.0
    d_safe = jnp.maximum(d, 1e-6)                       # guard zero-length edges
    d2 = d_safe * d_safe
    d4 = d2 * d2
    d5 = d4 * d_safe
    d6 = d5 * d_safe
    d7 = d6 * d_safe
    env = pl.reciprocal(d_safe, approx=True) + a * d5 + b * d6 + c * d7
    # compact support at the cutoff + explicit mask for degenerate edges
    env = jnp.where(jnp.logical_and(d > 1e-6, d < 1.0), env, 0.0)
    return d_safe, env


# ================================ fused kernel ================================
def _dimenet_kernel(
        # shared inputs (constant index maps -> DMA'd into VMEM once)
        d_ref, frbf_ref, fsbf_ref, hcat_ref,
        w_re_ref, b_re_ref, w_e_ref, b_e_ref,
        gsrc_ref, cbf_ref, gdst_ref, ohdst_ref,
        # per-block interaction weights (leading axis, dummy block 0)
        wrbf_i_ref, wsbf_i_ref, wji_ref, bji_ref, wkj_ref, bkj_ref,
        wbil_ref, resw_ref, resb_ref, finw_ref, finb_ref,
        # per-block output-block weights (leading axis)
        wrbf_o_ref, dw_o_ref, db_o_ref, wout_ref,
        # output (accumulator, VMEM-resident across the grid)
        p_ref,
        # VMEM scratch persisting across grid iterations
        rbf_s, sbf_s, m_s):
    blk = pl.program_id(0)

    @pl.when(blk == 0)
    def _():
        # ---- Bessel RBF + spherical basis (surrogate), shared by all blocks ----
        d = d_ref[...]                                   # (E, 1) scaled distances
        d_safe, env = _envelope(d)
        rbf = env * jnp.sin(frbf_ref[...] * d_safe)      # (E, R)
        rbf_env = env * jnp.sin(fsbf_ref[...] * d_safe)  # (E, S*R)
        rbf_s[...] = rbf
        # line-graph spherical basis: gather rbf_env at triplet source edge * cbf
        sbf_s[...] = _dot(gsrc_ref[...], rbf_env) * cbf_ref[...]        # (L, S*R)

        # ---- embedding block: single deep-K (E, 3*emb) @ (3*emb, emb) dot ----
        rbf_h = _swish(_dot(rbf, w_re_ref[...]) + b_re_ref[...])        # (E, emb)
        x_cat = jnp.concatenate([hcat_ref[...], rbf_h.astype(jnp.bfloat16)],
                                axis=1)                                 # (E, 3*emb)
        m_s[...] = _swish(_dot(x_cat, w_e_ref[...]) + b_e_ref[...])     # (E, emb)

        p_ref[...] = jnp.zeros_like(p_ref)               # init P accumulator

    @pl.when(blk > 0)
    def _():
        # ---- interaction block (blk - 1) ----
        m = m_s[...]
        rbf = rbf_s[...]
        sbf = sbf_s[...]
        rbf_p = _dot(rbf, wrbf_i_ref[0])                 # (E, emb), no bias
        sbf_p = _dot(sbf, wsbf_i_ref[0])                 # (L, B),   no bias
        x_ji = _swish(_dot(m, wji_ref[0]) + bji_ref[0])  # (E, emb)
        x_kj = _swish(_dot(m, wkj_ref[0]) + bkj_ref[0])  # (E, emb)

        # gather (x_kj * rbf_p) rows at triplet source edges (one-hot matmul)
        prod_g = _dot(gsrc_ref[...], x_kj * rbf_p)       # (L, emb)

        # bilinear: outer-product slab (L, B*emb) on the VPU, then one 256-deep
        # (L, B*emb) @ (B*emb, emb) matmul on the MXU.
        pw = jnp.concatenate(
            [sbf_p[:, j:j + 1] * prod_g for j in range(NUM_BILINEAR)], axis=1)
        msg = _dot(pw, wbil_ref[0])                      # (L, emb)

        # scatter-sum messages to destination edges (one-hot matmul)
        agg = _dot(gdst_ref[...], msg)                   # (E, emb)

        x = x_ji + agg
        li = 0
        for _ in range(NUM_BEFORE):                      # residuals before skip
            h = _swish(_dot(x, resw_ref[0, li]) + resb_ref[0, li])
            h = _swish(_dot(h, resw_ref[0, li + 1]) + resb_ref[0, li + 1])
            x = x + h
            li += 2
        x = _swish(_dot(x, finw_ref[0]) + finb_ref[0]) + m     # skip connection
        for _ in range(NUM_AFTER):                       # residuals after skip
            h = _swish(_dot(x, resw_ref[0, li]) + resb_ref[0, li])
            h = _swish(_dot(h, resw_ref[0, li + 1]) + resb_ref[0, li + 1])
            x = x + h
            li += 2
        m_s[...] = x

    # ---- output block blk (every iteration; P accumulated in VMEM) ----
    m_cur = m_s[...]
    rbf_proj = _dot(rbf_s[...], wrbf_o_ref[0])           # (E, emb), no bias
    t = _dot(ohdst_ref[...], m_cur * rbf_proj)           # (N, emb) segment sum
    for i in range(NUM_DENSE_OUT):
        t = _swish(_dot(t, dw_o_ref[0, i]) + db_o_ref[0, i])
    t = jnp.sum(t, axis=0, keepdims=True)                # graph readout FIRST
    p_ref[...] += _dot(t, wout_ref[0])                   # (1, targets)


# ============================ pallas_call wrapper =============================
def dimenet_pallas(params, d_scaled, hcat, gsrc, cbf, gdst, onehot_dst):
    E = d_scaled.shape[0]
    L = gsrc.shape[0]
    N = onehot_dst.shape[0]

    def const_spec(shape):
        rank = len(shape)

        def imap(b):
            return (0,) * rank
        return pl.BlockSpec(tuple(shape), imap)

    def block_spec(shape):
        rank = len(shape)

        def imap(b):
            return (b,) + (0,) * (rank - 1)
        return pl.BlockSpec((1,) + tuple(shape[1:]), imap)

    args = (
        d_scaled, params['rbf_freq'], params['sbf_freq'], hcat,
        params['emb_rbf_w'], params['emb_rbf_b'], params['emb_w'], params['emb_b'],
        gsrc, cbf, gdst, onehot_dst,
        params['i_w_rbf'], params['i_w_sbf'],
        params['i_w_ji'], params['i_b_ji'], params['i_w_kj'], params['i_b_kj'],
        params['i_w_bil'], params['i_res_w'], params['i_res_b'],
        params['i_fin_w'], params['i_fin_b'],
        params['o_w_rbf'], params['o_dense_w'], params['o_dense_b'], params['o_w_out'],
    )
    n_const = 12
    in_specs = ([const_spec(a.shape) for a in args[:n_const]]
                + [block_spec(a.shape) for a in args[n_const:]])

    # rough cost hint so XLA can schedule the surrounding glue against the kernel
    d32 = 2 * E * EMB_SIZE * EMB_SIZE
    flops = (NUM_BLOCKS * (2 * L * E * EMB_SIZE + 2 * E * L * EMB_SIZE
                           + 2 * L * NUM_BILINEAR * EMB_SIZE * EMB_SIZE
                           + (3 + 2 * (NUM_BEFORE + NUM_AFTER)) * d32)
             + NB1 * (2 * N * E * EMB_SIZE
                      + NUM_DENSE_OUT * 2 * N * EMB_SIZE * EMB_SIZE
                      + 2 * EMB_SIZE * NUM_TARGETS)
             + 2 * E * 3 * EMB_SIZE * EMB_SIZE)
    bytes_accessed = int(sum(int(np.prod(a.shape)) * a.dtype.itemsize for a in args)
                         + 4 * NUM_TARGETS)
    transcendentals = int(E * (NUM_RADIAL + SR)
                          + NB1 * (NUM_DENSE_OUT * N + 4 * E) * EMB_SIZE)

    return pl.pallas_call(
        _dimenet_kernel,
        out_shape=jax.ShapeDtypeStruct((1, NUM_TARGETS), jnp.float32),
        grid=(NB1,),
        in_specs=in_specs,
        out_specs=pl.BlockSpec((1, NUM_TARGETS), lambda b: (0, 0)),
        scratch_shapes=[
            pltpu.VMEM((E, NUM_RADIAL), jnp.float32),    # rbf, resident all blocks
            pltpu.VMEM((L, SR), jnp.float32),            # sbf, resident all blocks
            pltpu.VMEM((E, EMB_SIZE), jnp.float32),      # edge messages m
        ],
        compiler_params=pltpu.CompilerParams(
            dimension_semantics=("arbitrary",),
            vmem_limit_bytes=32 * 1024 * 1024),
        cost_estimate=pl.CostEstimate(
            flops=int(flops), transcendentals=transcendentals,
            bytes_accessed=bytes_accessed),
    )(*args)


# ================================ parameters ==================================
class KeyGen:
    def __init__(self, key):
        self.key = key

    def __call__(self):
        self.key, k = jax.random.split(self.key)
        return k


def _dense_init(kg, fin, fout):
    w = jax.random.normal(kg(), (fin, fout), jnp.float32) / np.sqrt(fin)
    b = 0.01 * jax.random.normal(kg(), (fout,), jnp.float32)
    return w, b.reshape(1, fout)


def _init_output_block(kg):
    dw, db = [], []
    for _ in range(NUM_DENSE_OUT):
        w, b = _dense_init(kg, EMB_SIZE, EMB_SIZE)
        dw.append(w)
        db.append(b)
    return dict(
        w_rbf=jax.random.normal(kg(), (NUM_RADIAL, EMB_SIZE), jnp.float32) / np.sqrt(NUM_RADIAL),
        dense_w=jnp.stack(dw),                           # (3, emb, emb)
        dense_b=jnp.stack(db),                           # (3, 1, emb)
        # output_init = nn.init.uniform_  ->  U(0, 1), no bias
        w_out=jax.random.uniform(kg(), (EMB_SIZE, NUM_TARGETS), jnp.float32, 0.0, 1.0),
    )


def _init_interaction_block(kg):
    w_ji, b_ji = _dense_init(kg, EMB_SIZE, EMB_SIZE)
    w_kj, b_kj = _dense_init(kg, EMB_SIZE, EMB_SIZE)
    res_w, res_b = [], []
    for _ in range(2 * (NUM_BEFORE + NUM_AFTER)):
        w, b = _dense_init(kg, EMB_SIZE, EMB_SIZE)
        res_w.append(w)
        res_b.append(b)
    fin_w, fin_b = _dense_init(kg, EMB_SIZE, EMB_SIZE)
    return dict(
        w_rbf=jax.random.normal(kg(), (NUM_RADIAL, EMB_SIZE), jnp.float32) / np.sqrt(NUM_RADIAL),
        w_sbf=jax.random.normal(kg(), (SR, NUM_BILINEAR), jnp.float32) / np.sqrt(SR),
        w_ji=w_ji, b_ji=b_ji, w_kj=w_kj, b_kj=b_kj,
        # bilinear W stored as [(j, k), i] so the kernel runs one 256-deep
        # (L, B*emb) @ (B*emb, emb) matmul; std = 2 / num_bilinear
        w_bil=(2.0 / NUM_BILINEAR) * jax.random.normal(
            kg(), (NUM_BILINEAR * EMB_SIZE, EMB_SIZE), jnp.float32),
        res_w=jnp.stack(res_w),                          # (6, emb, emb)
        res_b=jnp.stack(res_b),                          # (6, 1, emb)
        fin_w=fin_w, fin_b=fin_b,
    )


def init_params(kg):
    # TODO(synk): exact sympy spherical Bessel frequencies unavailable; sinusoidal
    # surrogates with the same shapes are used instead.
    sbf_freqs = np.array(
        [np.pi * (n + 1) + 0.5 * l for l in range(NUM_SPHERICAL) for n in range(NUM_RADIAL)],
        np.float32)
    w_re, b_re = _dense_init(kg, NUM_RADIAL, EMB_SIZE)
    w_e, b_e = _dense_init(kg, 3 * EMB_SIZE, EMB_SIZE)   # deep-K (96, 32) embedding dense

    inter = [_init_interaction_block(kg) for _ in range(NUM_BLOCKS)]
    outb = [_init_output_block(kg) for _ in range(NB1)]

    def stack_inter(name, dtype):
        # dummy block 0: grid iteration 0 is the embedding/output-0 step
        dummy = jnp.zeros_like(inter[0][name])
        return jnp.stack([dummy] + [blk[name] for blk in inter]).astype(dtype)

    def stack_out(name, dtype):
        return jnp.stack([blk[name] for blk in outb]).astype(dtype)

    bf = jnp.bfloat16
    f32 = jnp.float32
    return dict(
        rbf_freq=(jnp.pi * jnp.arange(1, NUM_RADIAL + 1, dtype=jnp.float32)).reshape(1, -1),
        sbf_freq=jnp.asarray(sbf_freqs).reshape(1, -1),
        emb_table=jax.random.uniform(kg(), (95, EMB_SIZE), jnp.float32,
                                     -np.sqrt(3.0), np.sqrt(3.0)),
        emb_rbf_w=w_re.astype(bf), emb_rbf_b=b_re,
        emb_w=w_e.astype(bf), emb_b=b_e,
        # per-block interaction weights stacked on a leading axis (bf16 matmul operands)
        i_w_rbf=stack_inter('w_rbf', bf),
        i_w_sbf=stack_inter('w_sbf', bf),
        i_w_ji=stack_inter('w_ji', bf), i_b_ji=stack_inter('b_ji', f32),
        i_w_kj=stack_inter('w_kj', bf), i_b_kj=stack_inter('b_kj', f32),
        i_w_bil=stack_inter('w_bil', bf),
        i_res_w=stack_inter('res_w', bf), i_res_b=stack_inter('res_b', f32),
        i_fin_w=stack_inter('fin_w', bf), i_fin_b=stack_inter('fin_b', f32),
        # per-block output-block weights
        o_w_rbf=stack_out('w_rbf', bf),
        o_dense_w=stack_out('dense_w', bf), o_dense_b=stack_out('dense_b', f32),
        o_w_out=stack_out('w_out', bf),
    )


# ================================ forward pass ================================
def dimenet_forward(params, Z, pos, src, dst, lg_src, lg_dst):
    N = Z.shape[0]
    E = src.shape[0]

    # ---- edge geometry (tiny, plain JAX glue) ----
    o = pos[dst] - pos[src]                              # (E, 3)
    d = jnp.sqrt(jnp.sum(o * o, axis=-1))                # (E,)
    d_scaled = (d / CUTOFF)[:, None]                     # (E, 1)

    # ---- atom embeddings, pre-concatenated for the deep-K embedding matmul ----
    h = params['emb_table'][Z]                           # (N, emb)
    hcat = jnp.concatenate([h[src], h[dst]], axis=1).astype(jnp.bfloat16)   # (E, 2*emb)

    # ---- line-graph angles + angular basis surrogate ----
    R1 = o[lg_src]
    R2 = o[lg_dst]
    xdot = jnp.sum(R1 * R2, axis=-1)
    ycr = jnp.sqrt(jnp.sum(jnp.cross(R1, R2) ** 2, axis=-1))
    angle = jnp.arctan2(ycr, xdot)                       # (L,)
    # TODO(synk): exact sympy spherical harmonics Y_l^0 replaced by cos(l*angle).
    cbf = jnp.stack([jnp.cos(l * angle) for l in range(NUM_SPHERICAL)], axis=1)
    cbf = jnp.repeat(cbf, NUM_RADIAL, axis=1)            # (L, S*R)

    # ---- graph structure as bf16 one-hot operators (exact; consumed on the MXU) ----
    # TODO(synk): replace with scalar-prefetch segment-sum kernels at real sizes.
    onehot_dst = (jnp.arange(N)[:, None] == dst[None, :]).astype(jnp.bfloat16)   # (N, E)
    gsrc = (lg_src[:, None] == jnp.arange(E)[None, :]).astype(jnp.bfloat16)      # (L, E)
    gdst = (jnp.arange(E)[:, None] == lg_dst[None, :]).astype(jnp.bfloat16)      # (E, L)

    # ---- single fused kernel: bases + embedding + all interaction/output blocks
    return dimenet_pallas(params, d_scaled, hcat, gsrc, cbf, gdst, onehot_dst)


# ==================================== main ====================================
if __name__ == "__main__":
    kg = KeyGen(jax.random.PRNGKey(0))
    params = init_params(kg)

    # small molecular graph: 6 atoms on a bidirectional ring -> 12 directed edges
    N = 6
    src_np = np.array([0, 1, 1, 2, 2, 3, 3, 4, 4, 5, 5, 0], np.int32)
    dst_np = np.array([1, 0, 2, 1, 3, 2, 4, 3, 5, 4, 0, 5], np.int32)
    E = src_np.shape[0]

    # line graph (triplets), no backtracking: a -> b iff dst(a)==src(b), dst(b)!=src(a)
    lg_s, lg_d = [], []
    for a in range(E):
        for b in range(E):
            if dst_np[a] == src_np[b] and dst_np[b] != src_np[a]:
                lg_s.append(a)
                lg_d.append(b)
    lg_src_np = np.array(lg_s, np.int32)
    lg_dst_np = np.array(lg_d, np.int32)

    Z = jax.random.randint(kg(), (N,), 1, 10)                  # atomic numbers
    pos = 0.15 * jax.random.normal(kg(), (N, 3), jnp.float32)  # positions

    fwd = jax.jit(dimenet_forward)
    P = fwd(params, Z, pos,
            jnp.asarray(src_np), jnp.asarray(dst_np),
            jnp.asarray(lg_src_np), jnp.asarray(lg_dst_np))
    P = jax.block_until_ready(P)
    assert P.shape == (1, NUM_TARGETS)
    assert bool(jnp.all(jnp.isfinite(P)))
    print("KERNEL_OK")
</pallas_src>

<mosaic_0001>
module attributes {stable_mosaic.version = 11 : i64} {
  func.func @_dimenet_kernel(%arg0: i32, %arg1: memref<12x1xf32, #tpu.memory_space<vmem>>, %arg2: memref<1x6xf32, #tpu.memory_space<vmem>>, %arg3: memref<1x24xf32, #tpu.memory_space<vmem>>, %arg4: memref<12x64xbf16, #tpu.memory_space<vmem>>, %arg5: memref<6x32xbf16, #tpu.memory_space<vmem>>, %arg6: memref<1x32xf32, #tpu.memory_space<vmem>>, %arg7: memref<96x32xbf16, #tpu.memory_space<vmem>>, %arg8: memref<1x32xf32, #tpu.memory_space<vmem>>, %arg9: memref<12x12xbf16, #tpu.memory_space<vmem>>, %arg10: memref<12x24xf32, #tpu.memory_space<vmem>>, %arg11: memref<12x12xbf16, #tpu.memory_space<vmem>>, %arg12: memref<6x12xbf16, #tpu.memory_space<vmem>>, %arg13: memref<1x6x32xbf16, #tpu.memory_space<vmem>>, %arg14: memref<1x24x8xbf16, #tpu.memory_space<vmem>>, %arg15: memref<1x32x32xbf16, #tpu.memory_space<vmem>>, %arg16: memref<1x1x32xf32, #tpu.memory_space<vmem>>, %arg17: memref<1x32x32xbf16, #tpu.memory_space<vmem>>, %arg18: memref<1x1x32xf32, #tpu.memory_space<vmem>>, %arg19: memref<1x256x32xbf16, #tpu.memory_space<vmem>>, %arg20: memref<1x6x32x32xbf16, #tpu.memory_space<vmem>>, %arg21: memref<1x6x1x32xf32, #tpu.memory_space<vmem>>, %arg22: memref<1x32x32xbf16, #tpu.memory_space<vmem>>, %arg23: memref<1x1x32xf32, #tpu.memory_space<vmem>>, %arg24: memref<1x6x32xbf16, #tpu.memory_space<vmem>>, %arg25: memref<1x3x32x32xbf16, #tpu.memory_space<vmem>>, %arg26: memref<1x3x1x32xf32, #tpu.memory_space<vmem>>, %arg27: memref<1x32x12xbf16, #tpu.memory_space<vmem>>, %arg28: memref<1x12xf32, #tpu.memory_space<vmem>>, %arg29: memref<12x6xf32, #tpu.memory_space<vmem>>, %arg30: memref<12x24xf32, #tpu.memory_space<vmem>>, %arg31: memref<12x32xf32, #tpu.memory_space<vmem>>) attributes {dimension_semantics = [#tpu.dimension_semantics<arbitrary>], iteration_bounds = array<i64: 3>, scalar_prefetch = 0 : i64, scratch_operands = 3 : i64, tpu.core_type = #tpu.core_type<tc>, window_params = [{pipeline_mode = #tpu.pipeline_mode<synchronous>, transform_indices = @transform_0, window_bounds = array<i64: 12, 1>}, {pipeline_mode = #tpu.pipeline_mode<synchronous>, transform_indices = @transform_1, window_bounds = array<i64: 1, 6>}, {pipeline_mode = #tpu.pipeline_mode<synchronous>, transform_indices = @transform_2, window_bounds = array<i64: 1, 24>}, {pipeline_mode = #tpu.pipeline_mode<synchronous>, transform_indices = @transform_3, window_bounds = array<i64: 12, 64>}, {pipeline_mode = #tpu.pipeline_mode<synchronous>, transform_indices = @transform_4, window_bounds = array<i64: 6, 32>}, {pipeline_mode = #tpu.pipeline_mode<synchronous>, transform_indices = @transform_5, window_bounds = array<i64: 1, 32>}, {pipeline_mode = #tpu.pipeline_mode<synchronous>, transform_indices = @transform_6, window_bounds = array<i64: 96, 32>}, {pipeline_mode = #tpu.pipeline_mode<synchronous>, transform_indices = @transform_7, window_bounds = array<i64: 1, 32>}, {pipeline_mode = #tpu.pipeline_mode<synchronous>, transform_indices = @transform_8, window_bounds = array<i64: 12, 12>}, {pipeline_mode = #tpu.pipeline_mode<synchronous>, transform_indices = @transform_9, window_bounds = array<i64: 12, 24>}, {pipeline_mode = #tpu.pipeline_mode<synchronous>, transform_indices = @transform_10, window_bounds = array<i64: 12, 12>}, {pipeline_mode = #tpu.pipeline_mode<synchronous>, transform_indices = @transform_11, window_bounds = array<i64: 6, 12>}, {transform_indices = @transform_12, window_bounds = array<i64: 1, 6, 32>}, {transform_indices = @transform_13, window_bounds = array<i64: 1, 24, 8>}, {transform_indices = @transform_14, window_bounds = array<i64: 1, 32, 32>}, {transform_indices = @transform_15, window_bounds = array<i64: 1, 1, 32>}, {transform_indices = @transform_16, window_bounds = array<i64: 1, 32, 32>}, {transform_indices = @transform_17, window_bounds = array<i64: 1, 1, 32>}, {transform_indices = @transform_18, window_bounds = array<i64: 1, 256, 32>}, {transform_indices = @transform_19, window_bounds = array<i64: 1, 6, 32, 32>}, {transform_indices = @transform_20, window_bounds = array<i64: 1, 6, 1, 32>}, {transform_indices = @transform_21, window_bounds = array<i64: 1, 32, 32>}, {transform_indices = @transform_22, window_bounds = array<i64: 1, 1, 32>}, {transform_indices = @transform_23, window_bounds = array<i64: 1, 6, 32>}, {transform_indices = @transform_24, window_bounds = array<i64: 1, 3, 32, 32>}, {transform_indices = @transform_25, window_bounds = array<i64: 1, 3, 1, 32>}, {transform_indices = @transform_26, window_bounds = array<i64: 1, 32, 12>}, {pipeline_mode = #tpu.pipeline_mode<synchronous>, transform_indices = @transform_27, window_bounds = array<i64: 1, 12>}]} {
    %c0_i32 = arith.constant 0 : i32
    %0 = arith.cmpi eq, %arg0, %c0_i32 : i32
    %1 = arith.extui %0 : i1 to i32
    %c0_i32_0 = arith.constant 0 : i32
    %2 = arith.cmpi ne, %1, %c0_i32_0 : i32
    scf.if %2 {
      %c0_49 = arith.constant 0 : index
      %c0_50 = arith.constant 0 : index
      %67 = vector.load %arg1[%c0_49, %c0_50] : memref<12x1xf32, #tpu.memory_space<vmem>>, vector<12x1xf32>
      %cst_51 = arith.constant 9.99999997E-7 : f32
      %68 = vector.broadcast %cst_51 : f32 to vector<12x1xf32>
      %69 = arith.maximumf %67, %68 : vector<12x1xf32>
      %70 = arith.mulf %69, %69 : vector<12x1xf32>
      %71 = arith.mulf %70, %70 : vector<12x1xf32>
      %72 = arith.mulf %71, %69 : vector<12x1xf32>
      %73 = arith.mulf %72, %69 : vector<12x1xf32>
      %74 = arith.mulf %73, %69 : vector<12x1xf32>
      %75 = tpu.reciprocal %69 {approx = true} : vector<12x1xf32> -> vector<12x1xf32>
      %cst_52 = arith.constant -2.800000e+01 : f32
      %76 = vector.broadcast %cst_52 : f32 to vector<12x1xf32>
      %77 = arith.mulf %76, %72 : vector<12x1xf32>
      %78 = arith.addf %75, %77 : vector<12x1xf32>
      %cst_53 = arith.constant 4.800000e+01 : f32
      %79 = vector.broadcast %cst_53 : f32 to vector<12x1xf32>
      %80 = arith.mulf %79, %73 : vector<12x1xf32>
      %81 = arith.addf %78, %80 : vector<12x1xf32>
      %cst_54 = arith.constant -2.100000e+01 : f32
      %82 = vector.broadcast %cst_54 : f32 to vector<12x1xf32>
      %83 = arith.mulf %82, %74 : vector<12x1xf32>
      %84 = arith.addf %81, %83 : vector<12x1xf32>
      %cst_55 = arith.constant 9.99999997E-7 : f32
      %85 = vector.broadcast %cst_55 : f32 to vector<12x1xf32>
      %86 = arith.cmpf ogt, %67, %85 : vector<12x1xf32>
      %cst_56 = arith.constant 1.000000e+00 : f32
      %87 = vector.broadcast %cst_56 : f32 to vector<12x1xf32>
      %88 = arith.cmpf olt, %67, %87 : vector<12x1xf32>
      %89 = arith.andi %86, %88 : vector<12x1xi1>
      %cst_57 = arith.constant 0.000000e+00 : f32
      %90 = vector.broadcast %cst_57 : f32 to vector<12x1xf32>
      %91 = arith.select %89, %84, %90 : vector<12x1xi1>, vector<12x1xf32>
      %c0_58 = arith.constant 0 : index
      %c0_59 = arith.constant 0 : index
      %92 = vector.load %arg2[%c0_58, %c0_59] : memref<1x6xf32, #tpu.memory_space<vmem>>, vector<1x6xf32>
      %93 = vector.broadcast %92 : vector<1x6xf32> to vector<12x6xf32>
      %94 = vector.broadcast %69 : vector<12x1xf32> to vector<12x6xf32>
      %95 = arith.mulf %93, %94 : vector<12x6xf32>
      %96 = math.sin %95 : vector<12x6xf32>
      %97 = vector.broadcast %91 : vector<12x1xf32> to vector<12x6xf32>
      %98 = arith.mulf %97, %96 : vector<12x6xf32>
      %c0_60 = arith.constant 0 : index
      %c0_61 = arith.constant 0 : index
      %99 = vector.load %arg3[%c0_60, %c0_61] : memref<1x24xf32, #tpu.memory_space<vmem>>, vector<1x24xf32>
      %100 = vector.broadcast %99 : vector<1x24xf32> to vector<12x24xf32>
      %101 = vector.broadcast %69 : vector<12x1xf32> to vector<12x24xf32>
      %102 = arith.mulf %100, %101 : vector<12x24xf32>
      %103 = math.sin %102 : vector<12x24xf32>
      %104 = vector.broadcast %91 : vector<12x1xf32> to vector<12x24xf32>
      %105 = arith.mulf %104, %103 : vector<12x24xf32>
      %c0_62 = arith.constant 0 : index
      %c0_63 = arith.constant 0 : index
      %106 = vector.load %arg29[%c0_62, %c0_63] : memref<12x6xf32, #tpu.memory_space<vmem>>, vector<12x6xf32>
      tpu.vector_store %arg29[%c0_62, %c0_63], %98 {strides = array<i32>} : memref<12x6xf32, #tpu.memory_space<vmem>>, vector<12x6xf32>,
      %c0_64 = arith.constant 0 : index
      %c0_65 = arith.constant 0 : index
      %107 = vector.load %arg9[%c0_64, %c0_65] : memref<12x12xbf16, #tpu.memory_space<vmem>>, vector<12x12xbf16>
      %108 = arith.truncf %105 : vector<12x24xf32> to vector<12x24xbf16>
      %cst_66 = arith.constant dense<0.000000e+00> : vector<12x24xf32>
      %109 = tpu.matmul %107, %108, %cst_66 {dimension_numbers = #tpu.dot_dimension_numbers<[1], [0], [0], [1], [0, 0, 1, 1], [], []>} : vector<12x12xbf16>, vector<12x24xbf16>, vector<12x24xf32> -> vector<12x24xf32>
      %c0_67 = arith.constant 0 : index
      %c0_68 = arith.constant 0 : index
      %110 = vector.load %arg10[%c0_67, %c0_68] : memref<12x24xf32, #tpu.memory_space<vmem>>, vector<12x24xf32>
      %111 = arith.mulf %109, %110 : vector<12x24xf32>
      %c0_69 = arith.constant 0 : index
      %c0_70 = arith.constant 0 : index
      %112 = vector.load %arg30[%c0_69, %c0_70] : memref<12x24xf32, #tpu.memory_space<vmem>>, vector<12x24xf32>
      tpu.vector_store %arg30[%c0_69, %c0_70], %111 {strides = array<i32>} : memref<12x24xf32, #tpu.memory_space<vmem>>, vector<12x24xf32>,
      %c0_71 = arith.constant 0 : index
      %c0_72 = arith.constant 0 : index
      %113 = vector.load %arg5[%c0_71, %c0_72] : memref<6x32xbf16, #tpu.memory_space<vmem>>, vector<6x32xbf16>
      %114 = arith.truncf %98 : vector<12x6xf32> to vector<12x6xbf16>
      %cst_73 = arith.constant dense<0.000000e+00> : vector<12x32xf32>
      %115 = tpu.matmul %114, %113, %cst_73 {dimension_numbers = #tpu.dot_dimension_numbers<[1], [0], [0], [1], [0, 0, 1, 1], [], []>} : vector<12x6xbf16>, vector<6x32xbf16>, vector<12x32xf32> -> vector<12x32xf32>
      %c0_74 = arith.constant 0 : index
      %c0_75 = arith.constant 0 : index
      %116 = vector.load %arg6[%c0_74, %c0_75] : memref<1x32xf32, #tpu.memory_space<vmem>>, vector<1x32xf32>
      %117 = vector.broadcast %116 : vector<1x32xf32> to vector<12x32xf32>
      %118 = arith.addf %115, %117 : vector<12x32xf32>
      %119 = arith.negf %118 : vector<12x32xf32>
      %120 = math.exp %119 : vector<12x32xf32>
      %cst_76 = arith.constant 1.000000e+00 : f32
      %121 = vector.broadcast %cst_76 : f32 to vector<12x32xf32>
      %122 = arith.addf %121, %120 : vector<12x32xf32>
      %123 = arith.divf %121, %122 : vector<12x32xf32>
      %124 = arith.mulf %118, %123 : vector<12x32xf32>
      %c0_77 = arith.constant 0 : index
      %c0_78 = arith.constant 0 : index
      %125 = vector.load %arg4[%c0_77, %c0_78] : memref<12x64xbf16, #tpu.memory_space<vmem>>, vector<12x64xbf16>
      %126 = arith.truncf %124 : vector<12x32xf32> to vector<12x32xbf16>
      %127 = tpu.concatenate %125, %126 in 1 : vector<12x64xbf16>, vector<12x32xbf16> -> vector<12x96xbf16>
      %c0_79 = arith.constant 0 : index
      %c0_80 = arith.constant 0 : index
      %128 = vector.load %arg7[%c0_79, %c0_80] : memref<96x32xbf16, #tpu.memory_space<vmem>>, vector<96x32xbf16>
      %cst_81 = arith.constant dense<0.000000e+00> : vector<12x32xf32>
      %129 = tpu.matmul %127, %128, %cst_81 {dimension_numbers = #tpu.dot_dimension_numbers<[1], [0], [0], [1], [0, 0, 1, 1], [], []>} : vector<12x96xbf16>, vector<96x32xbf16>, vector<12x32xf32> -> vector<12x32xf32>
      %c0_82 = arith.constant 0 : index
      %c0_83 = arith.constant 0 : index
      %130 = vector.load %arg8[%c0_82, %c0_83] : memref<1x32xf32, #tpu.memory_space<vmem>>, vector<1x32xf32>
      %131 = vector.broadcast %130 : vector<1x32xf32> to vector<12x32xf32>
      %132 = arith.addf %129, %131 : vector<12x32xf32>
      %133 = arith.negf %132 : vector<12x32xf32>
      %134 = math.exp %133 : vector<12x32xf32>
      %cst_84 = arith.constant 1.000000e+00 : f32
      %135 = vector.broadcast %cst_84 : f32 to vector<12x32xf32>
      %136 = arith.addf %135, %134 : vector<12x32xf32>
      %137 = arith.divf %135, %136 : vector<12x32xf32>
      %138 = arith.mulf %132, %137 : vector<12x32xf32>
      %c0_85 = arith.constant 0 : index
      %c0_86 = arith.constant 0 : index
      %139 = vector.load %arg31[%c0_85, %c0_86] : memref<12x32xf32, #tpu.memory_space<vmem>>, vector<12x32xf32>
      tpu.vector_store %arg31[%c0_85, %c0_86], %138 {strides = array<i32>} : memref<12x32xf32, #tpu.memory_space<vmem>>, vector<12x32xf32>,
      %cst_87 = arith.constant 0.000000e+00 : f32
      %140 = vector.broadcast %cst_87 : f32 to vector<1x12xf32>
      %c0_88 = arith.constant 0 : index
      %c0_89 = arith.constant 0 : index
      %141 = vector.load %arg28[%c0_88, %c0_89] : memref<1x12xf32, #tpu.memory_space<vmem>>, vector<1x12xf32>
      tpu.vector_store %arg28[%c0_88, %c0_89], %140 {strides = array<i32>} : memref<1x12xf32, #tpu.memory_space<vmem>>, vector<1x12xf32>,
    } else {
    }
    %c0_i32_1 = arith.constant 0 : i32
    %3 = arith.cmpi sgt, %arg0, %c0_i32_1 : i32
    %4 = arith.extui %3 : i1 to i32
    %c0_i32_2 = arith.constant 0 : i32
    %5 = arith.cmpi ne, %4, %c0_i32_2 : i32
    scf.if %5 {
      %c0_49 = arith.constant 0 : index
      %c0_50 = arith.constant 0 : index
      %67 = vector.load %arg31[%c0_49, %c0_50] : memref<12x32xf32, #tpu.memory_space<vmem>>, vector<12x32xf32>
      %c0_51 = arith.constant 0 : index
      %c0_52 = arith.constant 0 : index
      %68 = vector.load %arg29[%c0_51, %c0_52] : memref<12x6xf32, #tpu.memory_space<vmem>>, vector<12x6xf32>
      %c0_53 = arith.constant 0 : index
      %c0_54 = arith.constant 0 : index
      %69 = vector.load %arg30[%c0_53, %c0_54] : memref<12x24xf32, #tpu.memory_space<vmem>>, vector<12x24xf32>
      %c0_55 = arith.constant 0 : index
      %c0_56 = arith.constant 0 : index
      %c0_57 = arith.constant 0 : index
      %70 = vector.load %arg13[%c0_55, %c0_56, %c0_57] : memref<1x6x32xbf16, #tpu.memory_space<vmem>>, vector<1x6x32xbf16>
      %71 = vector.shape_cast %70 : vector<1x6x32xbf16> to vector<6x32xbf16>
      %72 = arith.truncf %68 : vector<12x6xf32> to vector<12x6xbf16>
      %cst_58 = arith.constant dense<0.000000e+00> : vector<12x32xf32>
      %73 = tpu.matmul %72, %71, %cst_58 {dimension_numbers = #tpu.dot_dimension_numbers<[1], [0], [0], [1], [0, 0, 1, 1], [], []>} : vector<12x6xbf16>, vector<6x32xbf16>, vector<12x32xf32> -> vector<12x32xf32>
      %c0_59 = arith.constant 0 : index
      %c0_60 = arith.constant 0 : index
      %c0_61 = arith.constant 0 : index
      %74 = vector.load %arg14[%c0_59, %c0_60, %c0_61] : memref<1x24x8xbf16, #tpu.memory_space<vmem>>, vector<1x24x8xbf16>
      %75 = vector.shape_cast %74 : vector<1x24x8xbf16> to vector<24x8xbf16>
      %76 = arith.truncf %69 : vector<12x24xf32> to vector<12x24xbf16>
      %cst_62 = arith.constant dense<0.000000e+00> : vector<12x8xf32>
      %77 = tpu.matmul %76, %75, %cst_62 {dimension_numbers = #tpu.dot_dimension_numbers<[1], [0], [0], [1], [0, 0, 1, 1], [], []>} : vector<12x24xbf16>, vector<24x8xbf16>, vector<12x8xf32> -> vector<12x8xf32>
      %c0_63 = arith.constant 0 : index
      %c0_64 = arith.constant 0 : index
      %c0_65 = arith.constant 0 : index
      %78 = vector.load %arg15[%c0_63, %c0_64, %c0_65] : memref<1x32x32xbf16, #tpu.memory_space<vmem>>, vector<1x32x32xbf16>
      %79 = vector.shape_cast %78 : vector<1x32x32xbf16> to vector<32x32xbf16>
      %80 = arith.truncf %67 : vector<12x32xf32> to vector<12x32xbf16>
      %cst_66 = arith.constant dense<0.000000e+00> : vector<12x32xf32>
      %81 = tpu.matmul %80, %79, %cst_66 {dimension_numbers = #tpu.dot_dimension_numbers<[1], [0], [0], [1], [0, 0, 1, 1], [], []>} : vector<12x32xbf16>, vector<32x32xbf16>, vector<12x32xf32> -> vector<12x32xf32>
      %c0_67 = arith.constant 0 : index
      %c0_68 = arith.constant 0 : index
      %c0_69 = arith.constant 0 : index
      %82 = vector.load %arg16[%c0_67, %c0_68, %c0_69] : memref<1x1x32xf32, #tpu.memory_space<vmem>>, vector<1x1x32xf32>
      %83 = vector.shape_cast %82 : vector<1x1x32xf32> to vector<1x32xf32>
      %84 = vector.broadcast %83 : vector<1x32xf32> to vector<12x32xf32>
      %85 = arith.addf %81, %84 : vector<12x32xf32>
      %86 = arith.negf %85 : vector<12x32xf32>
      %87 = math.exp %86 : vector<12x32xf32>
      %cst_70 = arith.constant 1.000000e+00 : f32
      %88 = vector.broadcast %cst_70 : f32 to vector<12x32xf32>
      %89 = arith.addf %88, %87 : vector<12x32xf32>
      %90 = arith.divf %88, %89 : vector<12x32xf32>
      %91 = arith.mulf %85, %90 : vector<12x32xf32>
      %c0_71 = arith.constant 0 : index
      %c0_72 = arith.constant 0 : index
      %c0_73 = arith.constant 0 : index
      %92 = vector.load %arg17[%c0_71, %c0_72, %c0_73] : memref<1x32x32xbf16, #tpu.memory_space<vmem>>, vector<1x32x32xbf16>
      %93 = vector.shape_cast %92 : vector<1x32x32xbf16> to vector<32x32xbf16>
      %94 = arith.truncf %67 : vector<12x32xf32> to vector<12x32xbf16>
      %cst_74 = arith.constant dense<0.000000e+00> : vector<12x32xf32>
      %95 = tpu.matmul %94, %93, %cst_74 {dimension_numbers = #tpu.dot_dimension_numbers<[1], [0], [0], [1], [0, 0, 1, 1], [], []>} : vector<12x32xbf16>, vector<32x32xbf16>, vector<12x32xf32> -> vector<12x32xf32>
      %c0_75 = arith.constant 0 : index
      %c0_76 = arith.constant 0 : index
      %c0_77 = arith.constant 0 : index
      %96 = vector.load %arg18[%c0_75, %c0_76, %c0_77] : memref<1x1x32xf32, #tpu.memory_space<vmem>>, vector<1x1x32xf32>
      %97 = vector.shape_cast %96 : vector<1x1x32xf32> to vector<1x32xf32>
      %98 = vector.broadcast %97 : vector<1x32xf32> to vector<12x32xf32>
      %99 = arith.addf %95, %98 : vector<12x32xf32>
      %100 = arith.negf %99 : vector<12x32xf32>
      %101 = math.exp %100 : vector<12x32xf32>
      %cst_78 = arith.constant 1.000000e+00 : f32
      %102 = vector.broadcast %cst_78 : f32 to vector<12x32xf32>
      %103 = arith.addf %102, %101 : vector<12x32xf32>
      %104 = arith.divf %102, %103 : vector<12x32xf32>
      %105 = arith.mulf %99, %104 : vector<12x32xf32>
      %c0_79 = arith.constant 0 : index
      %c0_80 = arith.constant 0 : index
      %106 = vector.load %arg9[%c0_79, %c0_80] : memref<12x12xbf16, #tpu.memory_space<vmem>>, vector<12x12xbf16>
      %107 = arith.mulf %105, %73 : vector<12x32xf32>
      %108 = arith.truncf %107 : vector<12x32xf32> to vector<12x32xbf16>
      %cst_81 = arith.constant dense<0.000000e+00> : vector<12x32xf32>
      %109 = tpu.matmul %106, %108, %cst_81 {dimension_numbers = #tpu.dot_dimension_numbers<[1], [0], [0], [1], [0, 0, 1, 1], [], []>} : vector<12x12xbf16>, vector<12x32xbf16>, vector<12x32xf32> -> vector<12x32xf32>
      %110 = vector.extract_strided_slice %77 {offsets = [0, 0], sizes = [12, 1], strides = [1, 1]} : vector<12x8xf32> to vector<12x1xf32>
      %111 = vector.broadcast %110 : vector<12x1xf32> to vector<12x32xf32>
      %112 = arith.mulf %111, %109 : vector<12x32xf32>
      %113 = vector.extract_strided_slice %77 {offsets = [0, 1], sizes = [12, 1], strides = [1, 1]} : vector<12x8xf32> to vector<12x1xf32>
      %114 = vector.broadcast %113 : vector<12x1xf32> to vector<12x32xf32>
      %115 = arith.mulf %114, %109 : vector<12x32xf32>
      %116 = vector.extract_strided_slice %77 {offsets = [0, 2], sizes = [12, 1], strides = [1, 1]} : vector<12x8xf32> to vector<12x1xf32>
      %117 = vector.broadcast %116 : vector<12x1xf32> to vector<12x32xf32>
      %118 = arith.mulf %117, %109 : vector<12x32xf32>
      %119 = vector.extract_strided_slice %77 {offsets = [0, 3], sizes = [12, 1], strides = [1, 1]} : vector<12x8xf32> to vector<12x1xf32>
      %120 = vector.broadcast %119 : vector<12x1xf32> to vector<12x32xf32>
      %121 = arith.mulf %120, %109 : vector<12x32xf32>
      %122 = vector.extract_strided_slice %77 {offsets = [0, 4], sizes = [12, 1], strides = [1, 1]} : vector<12x8xf32> to vector<12x1xf32>
      %123 = vector.broadcast %122 : vector<12x1xf32> to vector<12x32xf32>
      %124 = arith.mulf %123, %109 : vector<12x32xf32>
      %125 = vector.extract_strided_slice %77 {offsets = [0, 5], sizes = [12, 1], strides = [1, 1]} : vector<12x8xf32> to vector<12x1xf32>
      %126 = vector.broadcast %125 : vector<12x1xf32> to vector<12x32xf32>
      %127 = arith.mulf %126, %109 : vector<12x32xf32>
      %128 = vector.extract_strided_slice %77 {offsets = [0, 6], sizes = [12, 1], strides = [1, 1]} : vector<12x8xf32> to vector<12x1xf32>
      %129 = vector.broadcast %128 : vector<12x1xf32> to vector<12x32xf32>
      %130 = arith.mulf %129, %109 : vector<12x32xf32>
      %131 = vector.extract_strided_slice %77 {offsets = [0, 7], sizes = [12, 1], strides = [1, 1]} : vector<12x8xf32> to vector<12x1xf32>
      %132 = vector.broadcast %131 : vector<12x1xf32> to vector<12x32xf32>
      %133 = arith.mulf %132, %109 : vector<12x32xf32>
      %134 = tpu.concatenate %112, %115, %118, %121, %124, %127, %130, %133 in 1 : vector<12x32xf32>, vector<12x32xf32>, vector<12x32xf32>, vector<12x32xf32>, vector<12x32xf32>, vector<12x32xf32>, vector<12x32xf32>, vector<12x32xf32> -> vector<12x256xf32>
      %c0_82 = arith.constant 0 : index
      %c0_83 = arith.constant 0 : index
      %c0_84 = arith.constant 0 : index
      %135 = vector.load %arg19[%c0_82, %c0_83, %c0_84] : memref<1x256x32xbf16, #tpu.memory_space<vmem>>, vector<1x256x32xbf16>
      %136 = vector.shape_cast %135 : vector<1x256x32xbf16> to vector<256x32xbf16>
      %137 = arith.truncf %134 : vector<12x256xf32> to vector<12x256xbf16>
      %cst_85 = arith.constant dense<0.000000e+00> : vector<12x32xf32>
      %138 = tpu.matmul %137, %136, %cst_85 {dimension_numbers = #tpu.dot_dimension_numbers<[1], [0], [0], [1], [0, 0, 1, 1], [], []>} : vector<12x256xbf16>, vector<256x32xbf16>, vector<12x32xf32> -> vector<12x32xf32>
      %c0_86 = arith.constant 0 : index
      %c0_87 = arith.constant 0 : index
      %139 = vector.load %arg11[%c0_86, %c0_87] : memref<12x12xbf16, #tpu.memory_space<vmem>>, vector<12x12xbf16>
      %140 = arith.truncf %138 : vector<12x32xf32> to vector<12x32xbf16>
      %cst_88 = arith.constant dense<0.000000e+00> : vector<12x32xf32>
      %141 = tpu.matmul %139, %140, %cst_88 {dimension_numbers = #tpu.dot_dimension_numbers<[1], [0], [0], [1], [0, 0, 1, 1], [], []>} : vector<12x12xbf16>, vector<12x32xbf16>, vector<12x32xf32> -> vector<12x32xf32>
      %142 = arith.addf %91, %141 : vector<12x32xf32>
      %c0_89 = arith.constant 0 : index
      %c0_90 = arith.constant 0 : index
      %c0_91 = arith.constant 0 : index
      %c0_92 = arith.constant 0 : index
      %143 = vector.load %arg20[%c0_89, %c0_90, %c0_91, %c0_92] : memref<1x6x32x32xbf16, #tpu.memory_space<vmem>>, vector<1x1x32x32xbf16>
      %144 = vector.shape_cast %143 : vector<1x1x32x32xbf16> to vector<32x32xbf16>
      %145 = arith.truncf %142 : vector<12x32xf32> to vector<12x32xbf16>
      %cst_93 = arith.constant dense<0.000000e+00> : vector<12x32xf32>
      %146 = tpu.matmul %145, %144, %cst_93 {dimension_numbers = #tpu.dot_dimension_numbers<[1], [0], [0], [1], [0, 0, 1, 1], [], []>} : vector<12x32xbf16>, vector<32x32xbf16>, vector<12x32xf32> -> vector<12x32xf32>
      %c0_94 = arith.constant 0 : index
      %c0_95 = arith.constant 0 : index
      %c0_96 = arith.constant 0 : index
      %c0_97 = arith.constant 0 : index
      %147 = vector.load %arg21[%c0_94, %c0_95, %c0_96, %c0_97] : memref<1x6x1x32xf32, #tpu.memory_space<vmem>>, vector<1x1x1x32xf32>
      %148 = vector.shape_cast %147 : vector<1x1x1x32xf32> to vector<1x32xf32>
      %149 = vector.broadcast %148 : vector<1x32xf32> to vector<12x32xf32>
      %150 = arith.addf %146, %149 : vector<12x32xf32>
      %151 = arith.negf %150 : vector<12x32xf32>
      %152 = math.exp %151 : vector<12x32xf32>
      %cst_98 = arith.constant 1.000000e+00 : f32
      %153 = vector.broadcast %cst_98 : f32 to vector<12x32xf32>
      %154 = arith.addf %153, %152 : vector<12x32xf32>
      %155 = arith.divf %153, %154 : vector<12x32xf32>
      %156 = arith.mulf %150, %155 : vector<12x32xf32>
      %c0_99 = arith.constant 0 : index
      %c1_100 = arith.constant 1 : index
      %c0_101 = arith.constant 0 : index
      %c0_102 = arith.constant 0 : index
      %157 = vector.load %arg20[%c0_99, %c1_100, %c0_101, %c0_102] : memref<1x6x32x32xbf16, #tpu.memory_space<vmem>>, vector<1x1x32x32xbf16>
      %158 = vector.shape_cast %157 : vector<1x1x32x32xbf16> to vector<32x32xbf16>
      %159 = arith.truncf %156 : vector<12x32xf32> to vector<12x32xbf16>
      %cst_103 = arith.constant dense<0.000000e+00> : vector<12x32xf32>
      %160 = tpu.matmul %159, %158, %cst_103 {dimension_numbers = #tpu.dot_dimension_numbers<[1], [0], [0], [1], [0, 0, 1, 1], [], []>} : vector<12x32xbf16>, vector<32x32xbf16>, vector<12x32xf32> -> vector<12x32xf32>
      %c0_104 = arith.constant 0 : index
      %c1_105 = arith.constant 1 : index
      %c0_106 = arith.constant 0 : index
      %c0_107 = arith.constant 0 : index
      %161 = vector.load %arg21[%c0_104, %c1_105, %c0_106, %c0_107] : memref<1x6x1x32xf32, #tpu.memory_space<vmem>>, vector<1x1x1x32xf32>
      %162 = vector.shape_cast %161 : vector<1x1x1x32xf32> to vector<1x32xf32>
      %163 = vector.broadcast %162 : vector<1x32xf32> to vector<12x32xf32>
      %164 = arith.addf %160, %163 : vector<12x32xf32>
      %165 = arith.negf %164 : vector<12x32xf32>
      %166 = math.exp %165 : vector<12x32xf32>
      %cst_108 = arith.constant 1.000000e+00 : f32
      %167 = vector.broadcast %cst_108 : f32 to vector<12x32xf32>
      %168 = arith.addf %167, %166 : vector<12x32xf32>
      %169 = arith.divf %167, %168 : vector<12x32xf32>
      %170 = arith.mulf %164, %169 : vector<12x32xf32>
      %171 = arith.addf %142, %170 : vector<12x32xf32>
      %c0_109 = arith.constant 0 : index
      %c0_110 = arith.constant 0 : index
      %c0_111 = arith.constant 0 : index
      %172 = vector.load %arg22[%c0_109, %c0_110, %c0_111] : memref<1x32x32xbf16, #tpu.memory_space<vmem>>, vector<1x32x32xbf16>
      %173 = vector.shape_cast %172 : vector<1x32x32xbf16> to vector<32x32xbf16>
      %174 = arith.truncf %171 : vector<12x32xf32> to vector<12x32xbf16>
      %cst_112 = arith.constant dense<0.000000e+00> : vector<12x32xf32>
      %175 = tpu.matmul %174, %173, %cst_112 {dimension_numbers = #tpu.dot_dimension_numbers<[1], [0], [0], [1], [0, 0, 1, 1], [], []>} : vector<12x32xbf16>, vector<32x32xbf16>, vector<12x32xf32> -> vector<12x32xf32>
      %c0_113 = arith.constant 0 : index
      %c0_114 = arith.constant 0 : index
      %c0_115 = arith.constant 0 : index
      %176 = vector.load %arg23[%c0_113, %c0_114, %c0_115] : memref<1x1x32xf32, #tpu.memory_space<vmem>>, vector<1x1x32xf32>
      %177 = vector.shape_cast %176 : vector<1x1x32xf32> to vector<1x32xf32>
      %178 = vector.broadcast %177 : vector<1x32xf32> to vector<12x32xf32>
      %179 = arith.addf %175, %178 : vector<12x32xf32>
      %180 = arith.negf %179 : vector<12x32xf32>
      %181 = math.exp %180 : vector<12x32xf32>
      %cst_116 = arith.constant 1.000000e+00 : f32
      %182 = vector.broadcast %cst_116 : f32 to vector<12x32xf32>
      %183 = arith.addf %182, %181 : vector<12x32xf32>
      %184 = arith.divf %182, %183 : vector<12x32xf32>
      %185 = arith.mulf %179, %184 : vector<12x32xf32>
      %186 = arith.addf %185, %67 : vector<12x32xf32>
      %c0_117 = arith.constant 0 : index
      %c2_118 = arith.constant 2 : index
      %c0_119 = arith.constant 0 : index
      %c0_120 = arith.constant 0 : index
      %187 = vector.load %arg20[%c0_117, %c2_118, %c0_119, %c0_120] : memref<1x6x32x32xbf16, #tpu.memory_space<vmem>>, vector<1x1x32x32xbf16>
      %188 = vector.shape_cast %187 : vector<1x1x32x32xbf16> to vector<32x32xbf16>
      %189 = arith.truncf %186 : vector<12x32xf32> to vector<12x32xbf16>
      %cst_121 = arith.constant dense<0.000000e+00> : vector<12x32xf32>
      %190 = tpu.matmul %189, %188, %cst_121 {dimension_numbers = #tpu.dot_dimension_numbers<[1], [0], [0], [1], [0, 0, 1, 1], [], []>} : vector<12x32xbf16>, vector<32x32xbf16>, vector<12x32xf32> -> vector<12x32xf32>
      %c0_122 = arith.constant 0 : index
      %c2_123 = arith.constant 2 : index
      %c0_124 = arith.constant 0 : index
      %c0_125 = arith.constant 0 : index
      %191 = vector.load %arg21[%c0_122, %c2_123, %c0_124, %c0_125] : memref<1x6x1x32xf32, #tpu.memory_space<vmem>>, vector<1x1x1x32xf32>
      %192 = vector.shape_cast %191 : vector<1x1x1x32xf32> to vector<1x32xf32>
      %193 = vector.broadcast %192 : vector<1x32xf32> to vector<12x32xf32>
      %194 = arith.addf %190, %193 : vector<12x32xf32>
      %195 = arith.negf %194 : vector<12x32xf32>
      %196 = math.exp %195 : vector<12x32xf32>
      %cst_126 = arith.constant 1.000000e+00 : f32
      %197 = vector.broadcast %cst_126 : f32 to vector<12x32xf32>
      %198 = arith.addf %197, %196 : vector<12x32xf32>
      %199 = arith.divf %197, %198 : vector<12x32xf32>
      %200 = arith.mulf %194, %199 : vector<12x32xf32>
      %c0_127 = arith.constant 0 : index
      %c3 = arith.constant 3 : index
      %c0_128 = arith.constant 0 : index
      %c0_129 = arith.constant 0 : index
      %201 = vector.load %arg20[%c0_127, %c3, %c0_128, %c0_129] : memref<1x6x32x32xbf16, #tpu.memory_space<vmem>>, vector<1x1x32x32xbf16>
      %202 = vector.shape_cast %201 : vector<1x1x32x32xbf16> to vector<32x32xbf16>
      %203 = arith.truncf %200 : vector<12x32xf32> to vector<12x32xbf16>
      %cst_130 = arith.constant dense<0.000000e+00> : vector<12x32xf32>
      %204 = tpu.matmul %203, %202, %cst_130 {dimension_numbers = #tpu.dot_dimension_numbers<[1], [0], [0], [1], [0, 0, 1, 1], [], []>} : vector<12x32xbf16>, vector<32x32xbf16>, vector<12x32xf32> -> vector<12x32xf32>
      %c0_131 = arith.constant 0 : index
      %c3_132 = arith.constant 3 : index
      %c0_133 = arith.constant 0 : index
      %c0_134 = arith.constant 0 : index
      %205 = vector.load %arg21[%c0_131, %c3_132, %c0_133, %c0_134] : memref<1x6x1x32xf32, #tpu.memory_space<vmem>>, vector<1x1x1x32xf32>
      %206 = vector.shape_cast %205 : vector<1x1x1x32xf32> to vector<1x32xf32>
      %207 = vector.broadcast %206 : vector<1x32xf32> to vector<12x32xf32>
      %208 = arith.addf %204, %207 : vector<12x32xf32>
      %209 = arith.negf %208 : vector<12x32xf32>
      %210 = math.exp %209 : vector<12x32xf32>
      %cst_135 = arith.constant 1.000000e+00 : f32
      %211 = vector.broadcast %cst_135 : f32 to vector<12x32xf32>
      %212 = arith.addf %211, %210 : vector<12x32xf32>
      %213 = arith.divf %211, %212 : vector<12x32xf32>
      %214 = arith.mulf %208, %213 : vector<12x32xf32>
      %215 = arith.addf %186, %214 : vector<12x32xf32>
      %c0_136 = arith.constant 0 : index
      %c4 = arith.constant 4 : index
      %c0_137 = arith.constant 0 : index
      %c0_138 = arith.constant 0 : index
      %216 = vector.load %arg20[%c0_136, %c4, %c0_137, %c0_138] : memref<1x6x32x32xbf16, #tpu.memory_space<vmem>>, vector<1x1x32x32xbf16>
      %217 = vector.shape_cast %216 : vector<1x1x32x32xbf16> to vector<32x32xbf16>
      %218 = arith.truncf %215 : vector<12x32xf32> to vector<12x32xbf16>
      %cst_139 = arith.constant dense<0.000000e+00> : vector<12x32xf32>
      %219 = tpu.matmul %218, %217, %cst_139 {dimension_numbers = #tpu.dot_dimension_numbers<[1], [0], [0], [1], [0, 0, 1, 1], [], []>} : vector<12x32xbf16>, vector<32x32xbf16>, vector<12x32xf32> -> vector<12x32xf32>
      %c0_140 = arith.constant 0 : index
      %c4_141 = arith.constant 4 : index
      %c0_142 = arith.constant 0 : index
      %c0_143 = arith.constant 0 : index
      %220 = vector.load %arg21[%c0_140, %c4_141, %c0_142, %c0_143] : memref<1x6x1x32xf32, #tpu.memory_space<vmem>>, vector<1x1x1x32xf32>
      %221 = vector.shape_cast %220 : vector<1x1x1x32xf32> to vector<1x32xf32>
      %222 = vector.broadcast %221 : vector<1x32xf32> to vector<12x32xf32>
      %223 = arith.addf %219, %222 : vector<12x32xf32>
      %224 = arith.negf %223 : vector<12x32xf32>
      %225 = math.exp %224 : vector<12x32xf32>
      %cst_144 = arith.constant 1.000000e+00 : f32
      %226 = vector.broadcast %cst_144 : f32 to vector<12x32xf32>
      %227 = arith.addf %226, %225 : vector<12x32xf32>
      %228 = arith.divf %226, %227 : vector<12x32xf32>
      %229 = arith.mulf %223, %228 : vector<12x32xf32>
      %c0_145 = arith.constant 0 : index
      %c5 = arith.constant 5 : index
      %c0_146 = arith.constant 0 : index
      %c0_147 = arith.constant 0 : index
      %230 = vector.load %arg20[%c0_145, %c5, %c0_146, %c0_147] : memref<1x6x32x32xbf16, #tpu.memory_space<vmem>>, vector<1x1x32x32xbf16>
      %231 = vector.shape_cast %230 : vector<1x1x32x32xbf16> to vector<32x32xbf16>
      %232 = arith.truncf %229 : vector<12x32xf32> to vector<12x32xbf16>
      %cst_148 = arith.constant dense<0.000000e+00> : vector<12x32xf32>
      %233 = tpu.matmul %232, %231, %cst_148 {dimension_numbers = #tpu.dot_dimension_numbers<[1], [0], [0], [1], [0, 0, 1, 1], [], []>} : vector<12x32xbf16>, vector<32x32xbf16>, vector<12x32xf32> -> vector<12x32xf32>
      %c0_149 = arith.constant 0 : index
      %c5_150 = arith.constant 5 : index
      %c0_151 = arith.constant 0 : index
      %c0_152 = arith.constant 0 : index
      %234 = vector.load %arg21[%c0_149, %c5_150, %c0_151, %c0_152] : memref<1x6x1x32xf32, #tpu.memory_space<vmem>>, vector<1x1x1x32xf32>
      %235 = vector.shape_cast %234 : vector<1x1x1x32xf32> to vector<1x32xf32>
      %236 = vector.broadcast %235 : vector<1x32xf32> to vector<12x32xf32>
      %237 = arith.addf %233, %236 : vector<12x32xf32>
      %238 = arith.negf %237 : vector<12x32xf32>
      %239 = math.exp %238 : vector<12x32xf32>
      %cst_153 = arith.constant 1.000000e+00 : f32
      %240 = vector.broadcast %cst_153 : f32 to vector<12x32xf32>
      %241 = arith.addf %240, %239 : vector<12x32xf32>
      %242 = arith.divf %240, %241 : vector<12x32xf32>
      %243 = arith.mulf %237, %242 : vector<12x32xf32>
      %244 = arith.addf %215, %243 : vector<12x32xf32>
      %c0_154 = arith.constant 0 : index
      %c0_155 = arith.constant 0 : index
      %245 = vector.load %arg31[%c0_154, %c0_155] : memref<12x32xf32, #tpu.memory_space<vmem>>, vector<12x32xf32>
      tpu.vector_store %arg31[%c0_154, %c0_155], %244 {strides = array<i32>} : memref<12x32xf32, #tpu.memory_space<vmem>>, vector<12x32xf32>,
    } else {
    }
    %c0 = arith.constant 0 : index
    %c0_3 = arith.constant 0 : index
    %6 = vector.load %arg31[%c0, %c0_3] : memref<12x32xf32, #tpu.memory_space<vmem>>, vector<12x32xf32>
    %c0_4 = arith.constant 0 : index
    %c0_5 = arith.constant 0 : index
    %7 = vector.load %arg29[%c0_4, %c0_5] : memref<12x6xf32, #tpu.memory_space<vmem>>, vector<12x6xf32>
    %c0_6 = arith.constant 0 : index
    %c0_7 = arith.constant 0 : index
    %c0_8 = arith.constant 0 : index
    %8 = vector.load %arg24[%c0_6, %c0_7, %c0_8] : memref<1x6x32xbf16, #tpu.memory_space<vmem>>, vector<1x6x32xbf16>
    %9 = vector.shape_cast %8 : vector<1x6x32xbf16> to vector<6x32xbf16>
    %10 = arith.truncf %7 : vector<12x6xf32> to vector<12x6xbf16>
    %cst = arith.constant dense<0.000000e+00> : vector<12x32xf32>
    %11 = tpu.matmul %10, %9, %cst {dimension_numbers = #tpu.dot_dimension_numbers<[1], [0], [0], [1], [0, 0, 1, 1], [], []>} : vector<12x6xbf16>, vector<6x32xbf16>, vector<12x32xf32> -> vector<12x32xf32>
    %c0_9 = arith.constant 0 : index
    %c0_10 = arith.constant 0 : index
    %12 = vector.load %arg12[%c0_9, %c0_10] : memref<6x12xbf16, #tpu.memory_space<vmem>>, vector<6x12xbf16>
    %13 = arith.mulf %6, %11 : vector<12x32xf32>
    %14 = arith.truncf %13 : vector<12x32xf32> to vector<12x32xbf16>
    %cst_11 = arith.constant dense<0.000000e+00> : vector<6x32xf32>
    %15 = tpu.matmul %12, %14, %cst_11 {dimension_numbers = #tpu.dot_dimension_numbers<[1], [0], [0], [1], [0, 0, 1, 1], [], []>} : vector<6x12xbf16>, vector<12x32xbf16>, vector<6x32xf32> -> vector<6x32xf32>
    %c0_12 = arith.constant 0 : index
    %c0_13 = arith.constant 0 : index
    %c0_14 = arith.constant 0 : index
    %c0_15 = arith.constant 0 : index
    %16 = vector.load %arg25[%c0_12, %c0_13, %c0_14, %c0_15] : memref<1x3x32x32xbf16, #tpu.memory_space<vmem>>, vector<1x1x32x32xbf16>
    %17 = vector.shape_cast %16 : vector<1x1x32x32xbf16> to vector<32x32xbf16>
    %18 = arith.truncf %15 : vector<6x32xf32> to vector<6x32xbf16>
    %cst_16 = arith.constant dense<0.000000e+00> : vector<6x32xf32>
    %19 = tpu.matmul %18, %17, %cst_16 {dimension_numbers = #tpu.dot_dimension_numbers<[1], [0], [0], [1], [0, 0, 1, 1], [], []>} : vector<6x32xbf16>, vector<32x32xbf16>, vector<6x32xf32> -> vector<6x32xf32>
    %c0_17 = arith.constant 0 : index
    %c0_18 = arith.constant 0 : index
    %c0_19 = arith.constant 0 : index
    %c0_20 = arith.constant 0 : index
    %20 = vector.load %arg26[%c0_17, %c0_18, %c0_19, %c0_20] : memref<1x3x1x32xf32, #tpu.memory_space<vmem>>, vector<1x1x1x32xf32>
    %21 = vector.shape_cast %20 : vector<1x1x1x32xf32> to vector<1x32xf32>
    %22 = vector.broadcast %21 : vector<1x32xf32> to vector<6x32xf32>
    %23 = arith.addf %19, %22 : vector<6x32xf32>
    %24 = arith.negf %23 : vector<6x32xf32>
    %25 = math.exp %24 : vector<6x32xf32>
    %cst_21 = arith.constant 1.000000e+00 : f32
    %26 = vector.broadcast %cst_21 : f32 to vector<6x32xf32>
    %27 = arith.addf %26, %25 : vector<6x32xf32>
    %28 = arith.divf %26, %27 : vector<6x32xf32>
    %29 = arith.mulf %23, %28 : vector<6x32xf32>
    %c0_22 = arith.constant 0 : index
    %c1 = arith.constant 1 : index
    %c0_23 = arith.constant 0 : index
    %c0_24 = arith.constant 0 : index
    %30 = vector.load %arg25[%c0_22, %c1, %c0_23, %c0_24] : memref<1x3x32x32xbf16, #tpu.memory_space<vmem>>, vector<1x1x32x32xbf16>
    %31 = vector.shape_cast %30 : vector<1x1x32x32xbf16> to vector<32x32xbf16>
    %32 = arith.truncf %29 : vector<6x32xf32> to vector<6x32xbf16>
    %cst_25 = arith.constant dense<0.000000e+00> : vector<6x32xf32>
    %33 = tpu.matmul %32, %31, %cst_25 {dimension_numbers = #tpu.dot_dimension_numbers<[1], [0], [0], [1], [0, 0, 1, 1], [], []>} : vector<6x32xbf16>, vector<32x32xbf16>, vector<6x32xf32> -> vector<6x32xf32>
    %c0_26 = arith.constant 0 : index
    %c1_27 = arith.constant 1 : index
    %c0_28 = arith.constant 0 : index
    %c0_29 = arith.constant 0 : index
    %34 = vector.load %arg26[%c0_26, %c1_27, %c0_28, %c0_29] : memref<1x3x1x32xf32, #tpu.memory_space<vmem>>, vector<1x1x1x32xf32>
    %35 = vector.shape_cast %34 : vector<1x1x1x32xf32> to vector<1x32xf32>
    %36 = vector.broadcast %35 : vector<1x32xf32> to vector<6x32xf32>
    %37 = arith.addf %33, %36 : vector<6x32xf32>
    %38 = arith.negf %37 : vector<6x32xf32>
    %39 = math.exp %38 : vector<6x32xf32>
    %cst_30 = arith.constant 1.000000e+00 : f32
    %40 = vector.broadcast %cst_30 : f32 to vector<6x32xf32>
    %41 = arith.addf %40, %39 : vector<6x32xf32>
    %42 = arith.divf %40, %41 : vector<6x32xf32>
    %43 = arith.mulf %37, %42 : vector<6x32xf32>
    %c0_31 = arith.constant 0 : index
    %c2 = arith.constant 2 : index
    %c0_32 = arith.constant 0 : index
    %c0_33 = arith.constant 0 : index
    %44 = vector.load %arg25[%c0_31, %c2, %c0_32, %c0_33] : memref<1x3x32x32xbf16, #tpu.memory_space<vmem>>, vector<1x1x32x32xbf16>
    %45 = vector.shape_cast %44 : vector<1x1x32x32xbf16> to vector<32x32xbf16>
    %46 = arith.truncf %43 : vector<6x32xf32> to vector<6x32xbf16>
    %cst_34 = arith.constant dense<0.000000e+00> : vector<6x32xf32>
    %47 = tpu.matmul %46, %45, %cst_34 {dimension_numbers = #tpu.dot_dimension_numbers<[1], [0], [0], [1], [0, 0, 1, 1], [], []>} : vector<6x32xbf16>, vector<32x32xbf16>, vector<6x32xf32> -> vector<6x32xf32>
    %c0_35 = arith.constant 0 : index
    %c2_36 = arith.constant 2 : index
    %c0_37 = arith.constant 0 : index
    %c0_38 = arith.constant 0 : index
    %48 = vector.load %arg26[%c0_35, %c2_36, %c0_37, %c0_38] : memref<1x3x1x32xf32, #tpu.memory_space<vmem>>, vector<1x1x1x32xf32>
    %49 = vector.shape_cast %48 : vector<1x1x1x32xf32> to vector<1x32xf32>
    %50 = vector.broadcast %49 : vector<1x32xf32> to vector<6x32xf32>
    %51 = arith.addf %47, %50 : vector<6x32xf32>
    %52 = arith.negf %51 : vector<6x32xf32>
    %53 = math.exp %52 : vector<6x32xf32>
    %cst_39 = arith.constant 1.000000e+00 : f32
    %54 = vector.broadcast %cst_39 : f32 to vector<6x32xf32>
    %55 = arith.addf %54, %53 : vector<6x32xf32>
    %56 = arith.divf %54, %55 : vector<6x32xf32>
    %57 = arith.mulf %51, %56 : vector<6x32xf32>
    %cst_40 = arith.constant dense<0.000000e+00> : vector<32xf32>
    %58 = vector.multi_reduction <add>, %57, %cst_40 [0] : vector<6x32xf32> to vector<32xf32>
    %59 = vector.shape_cast %58 : vector<32xf32> to vector<1x32xf32>
    %c0_41 = arith.constant 0 : index
    %c0_42 = arith.constant 0 : index
    %60 = vector.load %arg28[%c0_41, %c0_42] : memref<1x12xf32, #tpu.memory_space<vmem>>, vector<1x12xf32>
    %c0_43 = arith.constant 0 : index
    %c0_44 = arith.constant 0 : index
    %c0_45 = arith.constant 0 : index
    %61 = vector.load %arg27[%c0_43, %c0_44, %c0_45] : memref<1x32x12xbf16, #tpu.memory_space<vmem>>, vector<1x32x12xbf16>
    %62 = vector.shape_cast %61 : vector<1x32x12xbf16> to vector<32x12xbf16>
    %63 = arith.truncf %59 : vector<1x32xf32> to vector<1x32xbf16>
    %cst_46 = arith.constant dense<0.000000e+00> : vector<1x12xf32>
    %64 = tpu.matmul %63, %62, %cst_46 {dimension_numbers = #tpu.dot_dimension_numbers<[1], [0], [0], [1], [0, 0, 1, 1], [], []>} : vector<1x32xbf16>, vector<32x12xbf16>, vector<1x12xf32> -> vector<1x12xf32>
    %65 = arith.addf %60, %64 : vector<1x12xf32>
    %c0_47 = arith.constant 0 : index
    %c0_48 = arith.constant 0 : index
    %66 = vector.load %arg28[%c0_47, %c0_48] : memref<1x12xf32, #tpu.memory_space<vmem>>, vector<1x12xf32>
    tpu.vector_store %arg28[%c0_47, %c0_48], %65 {strides = array<i32>} : memref<1x12xf32, #tpu.memory_space<vmem>>, vector<1x12xf32>,
    return
  }
  func.func @transform_0(%arg0: i32) -> (i32, i32) {
    %c0_i32 = arith.constant 0 : i32
    %c0_i32_0 = arith.constant 0 : i32
    %c0_i32_1 = arith.constant 0 : i32
    return %c0_i32, %c0_i32_0 : i32, i32
  }
  func.func @transform_1(%arg0: i32) -> (i32, i32) {
    %c0_i32 = arith.constant 0 : i32
    %c0_i32_0 = arith.constant 0 : i32
    %c0_i32_1 = arith.constant 0 : i32
    return %c0_i32, %c0_i32_0 : i32, i32
  }
  func.func @transform_2(%arg0: i32) -> (i32, i32) {
    %c0_i32 = arith.constant 0 : i32
    %c0_i32_0 = arith.constant 0 : i32
    %c0_i32_1 = arith.constant 0 : i32
    return %c0_i32, %c0_i32_0 : i32, i32
  }
  func.func @transform_3(%arg0: i32) -> (i32, i32) {
    %c0_i32 = arith.constant 0 : i32
    %c0_i32_0 = arith.constant 0 : i32
    %c0_i32_1 = arith.constant 0 : i32
    return %c0_i32, %c0_i32_0 : i32, i32
  }
  func.func @transform_4(%arg0: i32) -> (i32, i32) {
    %c0_i32 = arith.constant 0 : i32
    %c0_i32_0 = arith.constant 0 : i32
    %c0_i32_1 = arith.constant 0 : i32
    return %c0_i32, %c0_i32_0 : i32, i32
  }
  func.func @transform_5(%arg0: i32) -> (i32, i32) {
    %c0_i32 = arith.constant 0 : i32
    %c0_i32_0 = arith.constant 0 : i32
    %c0_i32_1 = arith.constant 0 : i32
    return %c0_i32, %c0_i32_0 : i32, i32
  }
  func.func @transform_6(%arg0: i32) -> (i32, i32) {
    %c0_i32 = arith.constant 0 : i32
    %c0_i32_0 = arith.constant 0 : i32
    %c0_i32_1 = arith.constant 0 : i32
    return %c0_i32, %c0_i32_0 : i32, i32
  }
  func.func @transform_7(%arg0: i32) -> (i32, i32) {
    %c0_i32 = arith.constant 0 : i32
    %c0_i32_0 = arith.constant 0 : i32
    %c0_i32_1 = arith.constant 0 : i32
    return %c0_i32, %c0_i32_0 : i32, i32
  }
  func.func @transform_8(%arg0: i32) -> (i32, i32) {
    %c0_i32 = arith.constant 0 : i32
    %c0_i32_0 = arith.constant 0 : i32
    %c0_i32_1 = arith.constant 0 : i32
    return %c0_i32, %c0_i32_0 : i32, i32
  }
  func.func @transform_9(%arg0: i32) -> (i32, i32) {
    %c0_i32 = arith.constant 0 : i32
    %c0_i32_0 = arith.constant 0 : i32
    %c0_i32_1 = arith.constant 0 : i32
    return %c0_i32, %c0_i32_0 : i32, i32
  }
  func.func @transform_10(%arg0: i32) -> (i32, i32) {
    %c0_i32 = arith.constant 0 : i32
    %c0_i32_0 = arith.constant 0 : i32
    %c0_i32_1 = arith.constant 0 : i32
    return %c0_i32, %c0_i32_0 : i32, i32
  }
  func.func @transform_11(%arg0: i32) -> (i32, i32) {
    %c0_i32 = arith.constant 0 : i32
    %c0_i32_0 = arith.constant 0 : i32
    %c0_i32_1 = arith.constant 0 : i32
    return %c0_i32, %c0_i32_0 : i32, i32
  }
  func.func @transform_12(%arg0: i32) -> (i32, i32, i32) {
    %c0_i32 = arith.constant 0 : i32
    %c0_i32_0 = arith.constant 0 : i32
    %c0_i32_1 = arith.constant 0 : i32
    return %arg0, %c0_i32, %c0_i32_0 : i32, i32, i32
  }
  func.func @transform_13(%arg0: i32) -> (i32, i32, i32) {
    %c0_i32 = arith.constant 0 : i32
    %c0_i32_0 = arith.constant 0 : i32
    %c0_i32_1 = arith.constant 0 : i32
    return %arg0, %c0_i32, %c0_i32_0 : i32, i32, i32
  }
  func.func @transform_14(%arg0: i32) -> (i32, i32, i32) {
    %c0_i32 = arith.constant 0 : i32
    %c0_i32_0 = arith.constant 0 : i32
    %c0_i32_1 = arith.constant 0 : i32
    return %arg0, %c0_i32, %c0_i32_0 : i32, i32, i32
  }
  func.func @transform_15(%arg0: i32) -> (i32, i32, i32) {
    %c0_i32 = arith.constant 0 : i32
    %c0_i32_0 = arith.constant 0 : i32
    %c0_i32_1 = arith.constant 0 : i32
    return %arg0, %c0_i32, %c0_i32_0 : i32, i32, i32
  }
  func.func @transform_16(%arg0: i32) -> (i32, i32, i32) {
    %c0_i32 = arith.constant 0 : i32
    %c0_i32_0 = arith.constant 0 : i32
    %c0_i32_1 = arith.constant 0 : i32
    return %arg0, %c0_i32, %c0_i32_0 : i32, i32, i32
  }
  func.func @transform_17(%arg0: i32) -> (i32, i32, i32) {
    %c0_i32 = arith.constant 0 : i32
    %c0_i32_0 = arith.constant 0 : i32
    %c0_i32_1 = arith.constant 0 : i32
    return %arg0, %c0_i32, %c0_i32_0 : i32, i32, i32
  }
  func.func @transform_18(%arg0: i32) -> (i32, i32, i32) {
    %c0_i32 = arith.constant 0 : i32
    %c0_i32_0 = arith.constant 0 : i32
    %c0_i32_1 = arith.constant 0 : i32
    return %arg0, %c0_i32, %c0_i32_0 : i32, i32, i32
  }
  func.func @transform_19(%arg0: i32) -> (i32, i32, i32, i32) {
    %c0_i32 = arith.constant 0 : i32
    %c0_i32_0 = arith.constant 0 : i32
    %c0_i32_1 = arith.constant 0 : i32
    %c0_i32_2 = arith.constant 0 : i32
    return %arg0, %c0_i32, %c0_i32_0, %c0_i32_1 : i32, i32, i32, i32
  }
  func.func @transform_20(%arg0: i32) -> (i32, i32, i32, i32) {
    %c0_i32 = arith.constant 0 : i32
    %c0_i32_0 = arith.constant 0 : i32
    %c0_i32_1 = arith.constant 0 : i32
    %c0_i32_2 = arith.constant 0 : i32
    return %arg0, %c0_i32, %c0_i32_0, %c0_i32_1 : i32, i32, i32, i32
  }
  func.func @transform_21(%arg0: i32) -> (i32, i32, i32) {
    %c0_i32 = arith.constant 0 : i32
    %c0_i32_0 = arith.constant 0 : i32
    %c0_i32_1 = arith.constant 0 : i32
    return %arg0, %c0_i32, %c0_i32_0 : i32, i32, i32
  }
  func.func @transform_22(%arg0: i32) -> (i32, i32, i32) {
    %c0_i32 = arith.constant 0 : i32
    %c0_i32_0 = arith.constant 0 : i32
    %c0_i32_1 = arith.constant 0 : i32
    return %arg0, %c0_i32, %c0_i32_0 : i32, i32, i32
  }
  func.func @transform_23(%arg0: i32) -> (i32, i32, i32) {
    %c0_i32 = arith.constant 0 : i32
    %c0_i32_0 = arith.constant 0 : i32
    %c0_i32_1 = arith.constant 0 : i32
    return %arg0, %c0_i32, %c0_i32_0 : i32, i32, i32
  }
  func.func @transform_24(%arg0: i32) -> (i32, i32, i32, i32) {
    %c0_i32 = arith.constant 0 : i32
    %c0_i32_0 = arith.constant 0 : i32
    %c0_i32_1 = arith.constant 0 : i32
    %c0_i32_2 = arith.constant 0 : i32
    return %arg0, %c0_i32, %c0_i32_0, %c0_i32_1 : i32, i32, i32, i32
  }
  func.func @transform_25(%arg0: i32) -> (i32, i32, i32, i32) {
    %c0_i32 = arith.constant 0 : i32
    %c0_i32_0 = arith.constant 0 : i32
    %c0_i32_1 = arith.constant 0 : i32
    %c0_i32_2 = arith.constant 0 : i32
    return %arg0, %c0_i32, %c0_i32_0, %c0_i32_1 : i32, i32, i32, i32
  }
  func.func @transform_26(%arg0: i32) -> (i32, i32, i32) {
    %c0_i32 = arith.constant 0 : i32
    %c0_i32_0 = arith.constant 0 : i32
    %c0_i32_1 = arith.constant 0 : i32
    return %arg0, %c0_i32, %c0_i32_0 : i32, i32, i32
  }
  func.func @transform_27(%arg0: i32) -> (i32, i32) {
    %c0_i32 = arith.constant 0 : i32
    %c0_i32_0 = arith.constant 0 : i32
    %c0_i32_1 = arith.constant 0 : i32
    return %c0_i32, %c0_i32_0 : i32, i32
  }
}

</mosaic_0001>

<llo_original>
// kernel: dimenet_forward.1
$region0: #{dimenet_forward.1}
  #allocation0 [shape = 'u32[]', space=smem, size = 0x4, offset = 0x4, fixed_abs, tag = 'smem constant byte address 0x4 - core index']
  #allocation1 [shape = 'u32[144,128]{1,0:T(1,128)}', space=vmem, size = 0x12000, scoped, tag = 'internal scratch']
  #allocation2 [shape = 'f32[12,6]{1,0:T(8,128)}', space=vmem, size = 0x2000, scoped, tag = 'scratch operand']
  #allocation3 [shape = 'f32[12,24]{1,0:T(8,128)}', space=vmem, size = 0x2000, scoped, tag = 'scratch operand']
  #allocation4 [shape = 'f32[12,32]{1,0:T(8,128)}', space=vmem, size = 0x2000, scoped, tag = 'scratch operand']
  %s0 = inlined_call_operand.vmem [shape: f32[12,1], index: 0, kind: input, shape index: {}]
  %s1 = inlined_call_operand.vmem [shape: f32[1,6], index: 1, kind: input, shape index: {}]
  %s2 = inlined_call_operand.vmem [shape: f32[1,24], index: 2, kind: input, shape index: {}]
  %s3 = inlined_call_operand.vmem [shape: bf16[12,64], index: 3, kind: input, shape index: {}]
  %s4 = inlined_call_operand.vmem [shape: bf16[6,32], index: 4, kind: input, shape index: {}]
  %s5 = inlined_call_operand.vmem [shape: f32[1,32], index: 5, kind: input, shape index: {}]
  %s6 = inlined_call_operand.vmem [shape: bf16[96,32], index: 6, kind: input, shape index: {}]
  %s7 = inlined_call_operand.vmem [shape: f32[1,32], index: 7, kind: input, shape index: {}]
  %s8 = inlined_call_operand.vmem [shape: bf16[12,12], index: 8, kind: input, shape index: {}]
  %s9 = inlined_call_operand.vmem [shape: f32[12,24], index: 9, kind: input, shape index: {}]
  %s10 = inlined_call_operand.vmem [shape: bf16[12,12], index: 10, kind: input, shape index: {}]
  %s11 = inlined_call_operand.vmem [shape: bf16[6,12], index: 11, kind: input, shape index: {}]
  %s12 = inlined_call_operand.vmem [shape: bf16[3,6,32], index: 12, kind: input, shape index: {}]
  %s13 = inlined_call_operand.vmem [shape: bf16[3,24,8], index: 13, kind: input, shape index: {}]
  %s14 = inlined_call_operand.vmem [shape: bf16[3,32,32], index: 14, kind: input, shape index: {}]
  %s15 = inlined_call_operand.vmem [shape: f32[3,1,32], index: 15, kind: input, shape index: {}]
  %s16 = inlined_call_operand.vmem [shape: bf16[3,32,32], index: 16, kind: input, shape index: {}]
  %s17 = inlined_call_operand.vmem [shape: f32[3,1,32], index: 17, kind: input, shape index: {}]
  %s18 = inlined_call_operand.vmem [shape: bf16[3,256,32], index: 18, kind: input, shape index: {}]
  %s19 = inlined_call_operand.vmem [shape: bf16[3,6,32,32], index: 19, kind: input, shape index: {}]
  %s20 = inlined_call_operand.vmem [shape: f32[3,6,1,32], index: 20, kind: input, shape index: {}]
  %s21 = inlined_call_operand.vmem [shape: bf16[3,32,32], index: 21, kind: input, shape index: {}]
  %s22 = inlined_call_operand.vmem [shape: f32[3,1,32], index: 22, kind: input, shape index: {}]
  %s23 = inlined_call_operand.vmem [shape: bf16[3,6,32], index: 23, kind: input, shape index: {}]
  %s24 = inlined_call_operand.vmem [shape: bf16[3,3,32,32], index: 24, kind: input, shape index: {}]
  %s25 = inlined_call_operand.vmem [shape: f32[3,3,1,32], index: 25, kind: input, shape index: {}]
  %s26 = inlined_call_operand.vmem [shape: bf16[3,32,12], index: 26, kind: input, shape index: {}]
  %s27 = inlined_call_operand.hbm [shape: f32[1,12], index: 27, kind: output, shape index: {}]
  %s28 = sld [smem:[#allocation0]]
  $region149: #{dimenet_forward.1} parent=0
    _
  %s30 = ssub.s32 1, %s28
  %s31 = scalar_select 0, %s30, %s28
  $region1: #{dimenet_forward.1} parent=0
    #allocation5 [shape = 'u8[512]{0}', space=vmem, size = 0x400, scoped, tag = 'output window, operand 0, single buffered']
    #allocation6 [shape = 's32[2]{0}', space=sflag, size = 0x8, scoped, tag = 'scoped memory for dimenet_forward.1']
    %32 = vsyncpa [#allocation6], 0
    loop: start=0, step=1, limit=5
    $region2: #{dimenet_forward.1} parent=1 // loop_pre_header
      _
    $region3: #{dimenet_forward.1} parent=1 // loop_header
      %s34 = sphi 0, %s38
      %p35 = scmp.ge.s32.totalorder %s34, 5
      %s42 = sphi 0, %s42
      %s44 = sphi 0, %s42
      %s45 = sphi 0, %s44
      %s59 = sphi 0, %s45
      %s63 = sphi 0, %s63
      %s65 = sphi 0, %s63
      %s66 = sphi 0, %s65
      %s80 = sphi 0, %s66
      %s84 = sphi 0, %s84
      %s86 = sphi 0, %s84
      %s87 = sphi 0, %s86
      %s101 = sphi 0, %s87
      %s105 = sphi 0, %s105
      %s107 = sphi 0, %s105
      %s108 = sphi 0, %s107
      %s122 = sphi 0, %s108
      %s126 = sphi 0, %s126
      %s128 = sphi 0, %s126
      %s129 = sphi 0, %s128
      %s143 = sphi 0, %s129
      %s147 = sphi 0, %s147
      %s149 = sphi 0, %s147
      %s150 = sphi 0, %s149
      %s164 = sphi 0, %s150
      %s168 = sphi 0, %s168
      %s170 = sphi 0, %s168
      %s171 = sphi 0, %s170
      %s185 = sphi 0, %s171
      %s189 = sphi 0, %s189
      %s191 = sphi 0, %s189
      %s192 = sphi 0, %s191
      %s206 = sphi 0, %s192
      %s210 = sphi 0, %s210
      %s212 = sphi 0, %s210
      %s213 = sphi 0, %s212
      %s227 = sphi 0, %s213
      %s231 = sphi 0, %s231
      %s233 = sphi 0, %s231
      %s234 = sphi 0, %s233
      %s248 = sphi 0, %s234
      %s252 = sphi 0, %s252
      %s254 = sphi 0, %s252
      %s255 = sphi 0, %s254
      %s269 = sphi 0, %s255
      %s273 = sphi 0, %s273
      %s275 = sphi 0, %s273
      %s276 = sphi 0, %s275
      %s290 = sphi 0, %s276
      %s296 = sphi 0, %s298
      %s299 = sphi 0, %s296
      %s300 = sphi 0, %s299
      %s316 = sphi 0, %s300
      %s322 = sphi 0, %s324
      %s325 = sphi 0, %s322
      %s326 = sphi 0, %s325
      %s342 = sphi 0, %s326
      %s348 = sphi 0, %s350
      %s351 = sphi 0, %s348
      %s352 = sphi 0, %s351
      %s368 = sphi 0, %s352
      %s374 = sphi 0, %s376
      %s377 = sphi 0, %s374
      %s378 = sphi 0, %s377
      %s394 = sphi 0, %s378
      %s400 = sphi 0, %s402
      %s403 = sphi 0, %s400
      %s404 = sphi 0, %s403
      %s420 = sphi 0, %s404
      %s426 = sphi 0, %s428
      %s429 = sphi 0, %s426
      %s430 = sphi 0, %s429
      %s446 = sphi 0, %s430
      %s452 = sphi 0, %s454
      %s455 = sphi 0, %s452
      %s456 = sphi 0, %s455
      %s472 = sphi 0, %s456
      %s478 = sphi 0, %s480
      %s481 = sphi 0, %s478
      %s482 = sphi 0, %s481
      %s498 = sphi 0, %s482
      %s504 = sphi 0, %s506
      %s507 = sphi 0, %s504
      %s508 = sphi 0, %s507
      %s524 = sphi 0, %s508
      %s530 = sphi 0, %s532
      %s533 = sphi 0, %s530
      %s534 = sphi 0, %s533
      %s550 = sphi 0, %s534
      %s556 = sphi 0, %s558
      %s559 = sphi 0, %s556
      %s560 = sphi 0, %s559
      %s576 = sphi 0, %s560
      %s582 = sphi 0, %s584
      %s585 = sphi 0, %s582
      %s586 = sphi 0, %s585
      %s602 = sphi 0, %s586
      %s608 = sphi 0, %s610
      %s611 = sphi 0, %s608
      %s612 = sphi 0, %s611
      %s628 = sphi 0, %s612
      %s634 = sphi 0, %s636
      %s637 = sphi 0, %s634
      %s638 = sphi 0, %s637
      %s654 = sphi 0, %s638
      %s660 = sphi 0, %s662
      %s663 = sphi 0, %s660
      %s664 = sphi 0, %s663
      %s680 = sphi 0, %s664
      %s684 = sphi 0, %s684
      %s686 = sphi 0, %s684
      %s687 = sphi 0, %s686
      %s701 = sphi 0, %s687
    $region4: #{dimenet_forward.1} parent=1 // loop_header_branch
      %37 = sbr.rel (%p35) target = $region8
    $region5: #{dimenet_forward.1} parent=1 // loop_body
      %s39 = ssub.s32 %s34, 1
      %s40 = ssub.s32 %s34, 2
      %s41 = sadd.s32 %s34, 1
      %s43 = sadd.s32 %s42, 1
      %p46 = scmp.eq.s32.totalorder %s34, 2
      %p47 = scmp.ne.s32.totalorder %s42, %s44
      %p48 = scmp.eq.s32.totalorder %s34, 0
      %p49 = por %p47, %p48
      %p50 = scmp.ne.s32.totalorder %s42, %s44
      %p51 = scmp.eq.s32.totalorder %s39, 2
      %p52 = por %p50, %p51
      %p53 = scmp.ne.s32.totalorder %s44, %s45
      %p54 = scmp.eq.s32.totalorder %s39, 0
      %p55 = por %p53, %p54
      %p56 = scmp.ne.s32.totalorder %s44, %s45
      %p57 = scmp.eq.s32.totalorder %s40, 2
      %p58 = por %p56, %p57
      %p60 = scmp.ne.s32.totalorder %s45, %s59
      %p61 = scmp.eq.s32.totalorder %s40, 0
      %p62 = por %p60, %p61
      %s64 = sadd.s32 %s63, 1
      %p67 = scmp.eq.s32.totalorder %s34, 2
      %p68 = scmp.ne.s32.totalorder %s63, %s65
      %p69 = scmp.eq.s32.totalorder %s34, 0
      %p70 = por %p68, %p69
      %p71 = scmp.ne.s32.totalorder %s63, %s65
      %p72 = scmp.eq.s32.totalorder %s39, 2
      %p73 = por %p71, %p72
      %p74 = scmp.ne.s32.totalorder %s65, %s66
      %p75 = scmp.eq.s32.totalorder %s39, 0
      %p76 = por %p74, %p75
      %p77 = scmp.ne.s32.totalorder %s65, %s66
      %p78 = scmp.eq.s32.totalorder %s40, 2
      %p79 = por %p77, %p78
      %p81 = scmp.ne.s32.totalorder %s66, %s80
      %p82 = scmp.eq.s32.totalorder %s40, 0
      %p83 = por %p81, %p82
      %s85 = sadd.s32 %s84, 1
      %p88 = scmp.eq.s32.totalorder %s34, 2
      %p89 = scmp.ne.s32.totalorder %s84, %s86
      %p90 = scmp.eq.s32.totalorder %s34, 0
      %p91 = por %p89, %p90
      %p92 = scmp.ne.s32.totalorder %s84, %s86
      %p93 = scmp.eq.s32.totalorder %s39, 2
      %p94 = por %p92, %p93
      %p95 = scmp.ne.s32.totalorder %s86, %s87
      %p96 = scmp.eq.s32.totalorder %s39, 0
      %p97 = por %p95, %p96
      %p98 = scmp.ne.s32.totalorder %s86, %s87
      %p99 = scmp.eq.s32.totalorder %s40, 2
      %p100 = por %p98, %p99
      %p102 = scmp.ne.s32.totalorder %s87, %s101
      %p103 = scmp.eq.s32.totalorder %s40, 0
      %p104 = por %p102, %p103
      %s106 = sadd.s32 %s105, 1
      %p109 = scmp.eq.s32.totalorder %s34, 2
      %p110 = scmp.ne.s32.totalorder %s105, %s107
      %p111 = scmp.eq.s32.totalorder %s34, 0
      %p112 = por %p110, %p111
      %p113 = scmp.ne.s32.totalorder %s105, %s107
      %p114 = scmp.eq.s32.totalorder %s39, 2
      %p115 = por %p113, %p114
      %p116 = scmp.ne.s32.totalorder %s107, %s108
      %p117 = scmp.eq.s32.totalorder %s39, 0
      %p118 = por %p116, %p117
      %p119 = scmp.ne.s32.totalorder %s107, %s108
      %p120 = scmp.eq.s32.totalorder %s40, 2
      %p121 = por %p119, %p120
      %p123 = scmp.ne.s32.totalorder %s108, %s122
      %p124 = scmp.eq.s32.totalorder %s40, 0
      %p125 = por %p123, %p124
      %s127 = sadd.s32 %s126, 1
      %p130 = scmp.eq.s32.totalorder %s34, 2
      %p131 = scmp.ne.s32.totalorder %s126, %s128
      %p132 = scmp.eq.s32.totalorder %s34, 0
      %p133 = por %p131, %p132
      %p134 = scmp.ne.s32.totalorder %s126, %s128
      %p135 = scmp.eq.s32.totalorder %s39, 2
      %p136 = por %p134, %p135
      %p137 = scmp.ne.s32.totalorder %s128, %s129
      %p138 = scmp.eq.s32.totalorder %s39, 0
      %p139 = por %p137, %p138
      %p140 = scmp.ne.s32.totalorder %s128, %s129
      %p141 = scmp.eq.s32.totalorder %s40, 2
      %p142 = por %p140, %p141
      %p144 = scmp.ne.s32.totalorder %s129, %s143
      %p145 = scmp.eq.s32.totalorder %s40, 0
      %p146 = por %p144, %p145
      %s148 = sadd.s32 %s147, 1
      %p151 = scmp.eq.s32.totalorder %s34, 2
      %p152 = scmp.ne.s32.totalorder %s147, %s149
      %p153 = scmp.eq.s32.totalorder %s34, 0
      %p154 = por %p152, %p153
      %p155 = scmp.ne.s32.totalorder %s147, %s149
      %p156 = scmp.eq.s32.totalorder %s39, 2
      %p157 = por %p155, %p156
      %p158 = scmp.ne.s32.totalorder %s149, %s150
      %p159 = scmp.eq.s32.totalorder %s39, 0
      %p160 = por %p158, %p159
      %p161 = scmp.ne.s32.totalorder %s149, %s150
      %p162 = scmp.eq.s32.totalorder %s40, 2
      %p163 = por %p161, %p162
      %p165 = scmp.ne.s32.totalorder %s150, %s164
      %p166 = scmp.eq.s32.totalorder %s40, 0
      %p167 = por %p165, %p166
      %s169 = sadd.s32 %s168, 1
      %p172 = scmp.eq.s32.totalorder %s34, 2
      %p173 = scmp.ne.s32.totalorder %s168, %s170
      %p174 = scmp.eq.s32.totalorder %s34, 0
      %p175 = por %p173, %p174
      %p176 = scmp.ne.s32.totalorder %s168, %s170
      %p177 = scmp.eq.s32.totalorder %s39, 2
      %p178 = por %p176, %p177
      %p179 = scmp.ne.s32.totalorder %s170, %s171
      %p180 = scmp.eq.s32.totalorder %s39, 0
      %p181 = por %p179, %p180
      %p182 = scmp.ne.s32.totalorder %s170, %s171
      %p183 = scmp.eq.s32.totalorder %s40, 2
      %p184 = por %p182, %p183
      %p186 = scmp.ne.s32.totalorder %s171, %s185
      %p187 = scmp.eq.s32.totalorder %s40, 0
      %p188 = por %p186, %p187
      %s190 = sadd.s32 %s189, 1
      %p193 = scmp.eq.s32.totalorder %s34, 2
      %p194 = scmp.ne.s32.totalorder %s189, %s191
      %p195 = scmp.eq.s32.totalorder %s34, 0
      %p196 = por %p194, %p195
      %p197 = scmp.ne.s32.totalorder %s189, %s191
      %p198 = scmp.eq.s32.totalorder %s39, 2
      %p199 = por %p197, %p198
      %p200 = scmp.ne.s32.totalorder %s191, %s192
      %p201 = scmp.eq.s32.totalorder %s39, 0
      %p202 = por %p200, %p201
      %p203 = scmp.ne.s32.totalorder %s191, %s192
      %p204 = scmp.eq.s32.totalorder %s40, 2
      %p205 = por %p203, %p204
      %p207 = scmp.ne.s32.totalorder %s192, %s206
      %p208 = scmp.eq.s32.totalorder %s40, 0
      %p209 = por %p207, %p208
      %s211 = sadd.s32 %s210, 1
      %p214 = scmp.eq.s32.totalorder %s34, 2
      %p215 = scmp.ne.s32.totalorder %s210, %s212
      %p216 = scmp.eq.s32.totalorder %s34, 0
      %p217 = por %p215, %p216
      %p218 = scmp.ne.s32.totalorder %s210, %s212
      %p219 = scmp.eq.s32.totalorder %s39, 2
      %p220 = por %p218, %p219
      %p221 = scmp.ne.s32.totalorder %s212, %s213
      %p222 = scmp.eq.s32.totalorder %s39, 0
      %p223 = por %p221, %p222
      %p224 = scmp.ne.s32.totalorder %s212, %s213
      %p225 = scmp.eq.s32.totalorder %s40, 2
      %p226 = por %p224, %p225
      %p228 = scmp.ne.s32.totalorder %s213, %s227
      %p229 = scmp.eq.s32.totalorder %s40, 0
      %p230 = por %p228, %p229
      %s232 = sadd.s32 %s231, 1
      %p235 = scmp.eq.s32.totalorder %s34, 2
      %p236 = scmp.ne.s32.totalorder %s231, %s233
      %p237 = scmp.eq.s32.totalorder %s34, 0
      %p238 = por %p236, %p237
      %p239 = scmp.ne.s32.totalorder %s231, %s233
      %p240 = scmp.eq.s32.totalorder %s39, 2
      %p241 = por %p239, %p240
      %p242 = scmp.ne.s32.totalorder %s233, %s234
      %p243 = scmp.eq.s32.totalorder %s39, 0
      %p244 = por %p242, %p243
      %p245 = scmp.ne.s32.totalorder %s233, %s234
      %p246 = scmp.eq.s32.totalorder %s40, 2
      %p247 = por %p245, %p246
      %p249 = scmp.ne.s32.totalorder %s234, %s248
      %p250 = scmp.eq.s32.totalorder %s40, 0
      %p251 = por %p249, %p250
      %s253 = sadd.s32 %s252, 1
      %p256 = scmp.eq.s32.totalorder %s34, 2
      %p257 = scmp.ne.s32.totalorder %s252, %s254
      %p258 = scmp.eq.s32.totalorder %s34, 0
      %p259 = por %p257, %p258
      %p260 = scmp.ne.s32.totalorder %s252, %s254
      %p261 = scmp.eq.s32.totalorder %s39, 2
      %p262 = por %p260, %p261
      %p263 = scmp.ne.s32.totalorder %s254, %s255
      %p264 = scmp.eq.s32.totalorder %s39, 0
      %p265 = por %p263, %p264
      %p266 = scmp.ne.s32.totalorder %s254, %s255
      %p267 = scmp.eq.s32.totalorder %s40, 2
      %p268 = por %p266, %p267
      %p270 = scmp.ne.s32.totalorder %s255, %s269
      %p271 = scmp.eq.s32.totalorder %s40, 0
      %p272 = por %p270, %p271
      %s274 = sadd.s32 %s273, 1
      %p277 = scmp.eq.s32.totalorder %s34, 2
      %p278 = scmp.ne.s32.totalorder %s273, %s275
      %p279 = scmp.eq.s32.totalorder %s34, 0
      %p280 = por %p278, %p279
      %p281 = scmp.ne.s32.totalorder %s273, %s275
      %p282 = scmp.eq.s32.totalorder %s39, 2
      %p283 = por %p281, %p282
      %p284 = scmp.ne.s32.totalorder %s275, %s276
      %p285 = scmp.eq.s32.totalorder %s39, 0
      %p286 = por %p284, %p285
      %p287 = scmp.ne.s32.totalorder %s275, %s276
      %p288 = scmp.eq.s32.totalorder %s40, 2
      %p289 = por %p287, %p288
      %p291 = scmp.ne.s32.totalorder %s276, %s290
      %p292 = scmp.eq.s32.totalorder %s40, 0
      %p293 = por %p291, %p292
      %s294 = ssub.s32 %s34, %s41
      %p295 = scmp.eq.s32.totalorder %s294, 0
      %s297 = sadd.s32 %s296, 1
      %s298 = scalar_select %p295, %s296, %s297
      %p301 = pneg %p295
      %p302 = scmp.eq.s32.totalorder %s34, 2
      %p303 = por %p301, %p302
      %p304 = scmp.ne.s32.totalorder %s296, %s299
      %p305 = scmp.eq.s32.totalorder %s34, 0
      %p306 = por %p304, %p305
      %p307 = scmp.ne.s32.totalorder %s296, %s299
      %p308 = scmp.eq.s32.totalorder %s39, 2
      %p309 = por %p307, %p308
      %p310 = scmp.ne.s32.totalorder %s299, %s300
      %p311 = scmp.eq.s32.totalorder %s39, 0
      %p312 = por %p310, %p311
      %p313 = scmp.ne.s32.totalorder %s299, %s300
      %p314 = scmp.eq.s32.totalorder %s40, 2
      %p315 = por %p313, %p314
      %p317 = scmp.ne.s32.totalorder %s300, %s316
      %p318 = scmp.eq.s32.totalorder %s40, 0
      %p319 = por %p317, %p318
      %s320 = ssub.s32 %s34, %s41
      %p321 = scmp.eq.s32.totalorder %s320, 0
      %s323 = sadd.s32 %s322, 1
      %s324 = scalar_select %p321, %s322, %s323
      %p327 = pneg %p321
      %p328 = scmp.eq.s32.totalorder %s34, 2
      %p329 = por %p327, %p328
      %p330 = scmp.ne.s32.totalorder %s322, %s325
      %p331 = scmp.eq.s32.totalorder %s34, 0
      %p332 = por %p330, %p331
      %p333 = scmp.ne.s32.totalorder %s322, %s325
      %p334 = scmp.eq.s32.totalorder %s39, 2
      %p335 = por %p333, %p334
      %p336 = scmp.ne.s32.totalorder %s325, %s326
      %p337 = scmp.eq.s32.totalorder %s39, 0
      %p338 = por %p336, %p337
      %p339 = scmp.ne.s32.totalorder %s325, %s326
      %p340 = scmp.eq.s32.totalorder %s40, 2
      %p341 = por %p339, %p340
      %p343 = scmp.ne.s32.totalorder %s326, %s342
      %p344 = scmp.eq.s32.totalorder %s40, 0
      %p345 = por %p343, %p344
      %s346 = ssub.s32 %s34, %s41
      %p347 = scmp.eq.s32.totalorder %s346, 0
      %s349 = sadd.s32 %s348, 1
      %s350 = scalar_select %p347, %s348, %s349
      %p353 = pneg %p347
      %p354 = scmp.eq.s32.totalorder %s34, 2
      %p355 = por %p353, %p354
      %p356 = scmp.ne.s32.totalorder %s348, %s351
      %p357 = scmp.eq.s32.totalorder %s34, 0
      %p358 = por %p356, %p357
      %p359 = scmp.ne.s32.totalorder %s348, %s351
      %p360 = scmp.eq.s32.totalorder %s39, 2
      %p361 = por %p359, %p360
      %p362 = scmp.ne.s32.totalorder %s351, %s352
      %p363 = scmp.eq.s32.totalorder %s39, 0
      %p364 = por %p362, %p363
      %p365 = scmp.ne.s32.totalorder %s351, %s352
      %p366 = scmp.eq.s32.totalorder %s40, 2
      %p367 = por %p365, %p366
      %p369 = scmp.ne.s32.totalorder %s352, %s368
      %p370 = scmp.eq.s32.totalorder %s40, 0
      %p371 = por %p369, %p370
      %s372 = ssub.s32 %s34, %s41
      %p373 = scmp.eq.s32.totalorder %s372, 0
      %s375 = sadd.s32 %s374, 1
      %s376 = scalar_select %p373, %s374, %s375
      %p379 = pneg %p373
      %p380 = scmp.eq.s32.totalorder %s34, 2
      %p381 = por %p379, %p380
      %p382 = scmp.ne.s32.totalorder %s374, %s377
      %p383 = scmp.eq.s32.totalorder %s34, 0
      %p384 = por %p382, %p383
      %p385 = scmp.ne.s32.totalorder %s374, %s377
      %p386 = scmp.eq.s32.totalorder %s39, 2
      %p387 = por %p385, %p386
      %p388 = scmp.ne.s32.totalorder %s377, %s378
      %p389 = scmp.eq.s32.totalorder %s39, 0
      %p390 = por %p388, %p389
      %p391 = scmp.ne.s32.totalorder %s377, %s378
      %p392 = scmp.eq.s32.totalorder %s40, 2
      %p393 = por %p391, %p392
      %p395 = scmp.ne.s32.totalorder %s378, %s394
      %p396 = scmp.eq.s32.totalorder %s40, 0
      %p397 = por %p395, %p396
      %s398 = ssub.s32 %s34, %s41
      %p399 = scmp.eq.s32.totalorder %s398, 0
      %s401 = sadd.s32 %s400, 1
      %s402 = scalar_select %p399, %s400, %s401
      %p405 = pneg %p399
      %p406 = scmp.eq.s32.totalorder %s34, 2
      %p407 = por %p405, %p406
      %p408 = scmp.ne.s32.totalorder %s400, %s403
      %p409 = scmp.eq.s32.totalorder %s34, 0
      %p410 = por %p408, %p409
      %p411 = scmp.ne.s32.totalorder %s400, %s403
      %p412 = scmp.eq.s32.totalorder %s39, 2
      %p413 = por %p411, %p412
      %p414 = scmp.ne.s32.totalorder %s403, %s404
      %p415 = scmp.eq.s32.totalorder %s39, 0
      %p416 = por %p414, %p415
      %p417 = scmp.ne.s32.totalorder %s403, %s404
      %p418 = scmp.eq.s32.totalorder %s40, 2
      %p419 = por %p417, %p418
      %p421 = scmp.ne.s32.totalorder %s404, %s420
      %p422 = scmp.eq.s32.totalorder %s40, 0
      %p423 = por %p421, %p422
      %s424 = ssub.s32 %s34, %s41
      %p425 = scmp.eq.s32.totalorder %s424, 0
      %s427 = sadd.s32 %s426, 1
      %s428 = scalar_select %p425, %s426, %s427
      %p431 = pneg %p425
      %p432 = scmp.eq.s32.totalorder %s34, 2
      %p433 = por %p431, %p432
      %p434 = scmp.ne.s32.totalorder %s426, %s429
      %p435 = scmp.eq.s32.totalorder %s34, 0
      %p436 = por %p434, %p435
      %p437 = scmp.ne.s32.totalorder %s426, %s429
      %p438 = scmp.eq.s32.totalorder %s39, 2
      %p439 = por %p437, %p438
      %p440 = scmp.ne.s32.totalorder %s429, %s430
      %p441 = scmp.eq.s32.totalorder %s39, 0
      %p442 = por %p440, %p441
      %p443 = scmp.ne.s32.totalorder %s429, %s430
      %p444 = scmp.eq.s32.totalorder %s40, 2
      %p445 = por %p443, %p444
      %p447 = scmp.ne.s32.totalorder %s430, %s446
      %p448 = scmp.eq.s32.totalorder %s40, 0
      %p449 = por %p447, %p448
      %s450 = ssub.s32 %s34, %s41
      %p451 = scmp.eq.s32.totalorder %s450, 0
      %s453 = sadd.s32 %s452, 1
      %s454 = scalar_select %p451, %s452, %s453
      %p457 = pneg %p451
      %p458 = scmp.eq.s32.totalorder %s34, 2
      %p459 = por %p457, %p458
      %p460 = scmp.ne.s32.totalorder %s452, %s455
      %p461 = scmp.eq.s32.totalorder %s34, 0
      %p462 = por %p460, %p461
      %p463 = scmp.ne.s32.totalorder %s452, %s455
      %p464 = scmp.eq.s32.totalorder %s39, 2
      %p465 = por %p463, %p464
      %p466 = scmp.ne.s32.totalorder %s455, %s456
      %p467 = scmp.eq.s32.totalorder %s39, 0
      %p468 = por %p466, %p467
      %p469 = scmp.ne.s32.totalorder %s455, %s456
      %p470 = scmp.eq.s32.totalorder %s40, 2
      %p471 = por %p469, %p470
      %p473 = scmp.ne.s32.totalorder %s456, %s472
      %p474 = scmp.eq.s32.totalorder %s40, 0
      %p475 = por %p473, %p474
      %s476 = ssub.s32 %s34, %s41
      %p477 = scmp.eq.s32.totalorder %s476, 0
      %s479 = sadd.s32 %s478, 1
      %s480 = scalar_select %p477, %s478, %s479
      %p483 = pneg %p477
      %p484 = scmp.eq.s32.totalorder %s34, 2
      %p485 = por %p483, %p484
      %p486 = scmp.ne.s32.totalorder %s478, %s481
      %p487 = scmp.eq.s32.totalorder %s34, 0
      %p488 = por %p486, %p487
      %p489 = scmp.ne.s32.totalorder %s478, %s481
      %p490 = scmp.eq.s32.totalorder %s39, 2
      %p491 = por %p489, %p490
      %p492 = scmp.ne.s32.totalorder %s481, %s482
      %p493 = scmp.eq.s32.totalorder %s39, 0
      %p494 = por %p492, %p493
      %p495 = scmp.ne.s32.totalorder %s481, %s482
      %p496 = scmp.eq.s32.totalorder %s40, 2
      %p497 = por %p495, %p496
      %p499 = scmp.ne.s32.totalorder %s482, %s498
      %p500 = scmp.eq.s32.totalorder %s40, 0
      %p501 = por %p499, %p500
      %s502 = ssub.s32 %s34, %s41
      %p503 = scmp.eq.s32.totalorder %s502, 0
      %s505 = sadd.s32 %s504, 1
      %s506 = scalar_select %p503, %s504, %s505
      %p509 = pneg %p503
      %p510 = scmp.eq.s32.totalorder %s34, 2
      %p511 = por %p509, %p510
      %p512 = scmp.ne.s32.totalorder %s504, %s507
      %p513 = scmp.eq.s32.totalorder %s34, 0
      %p514 = por %p512, %p513
      %p515 = scmp.ne.s32.totalorder %s504, %s507
      %p516 = scmp.eq.s32.totalorder %s39, 2
      %p517 = por %p515, %p516
      %p518 = scmp.ne.s32.totalorder %s507, %s508
      %p519 = scmp.eq.s32.totalorder %s39, 0
      %p520 = por %p518, %p519
      %p521 = scmp.ne.s32.totalorder %s507, %s508
      %p522 = scmp.eq.s32.totalorder %s40, 2
      %p523 = por %p521, %p522
      %p525 = scmp.ne.s32.totalorder %s508, %s524
      %p526 = scmp.eq.s32.totalorder %s40, 0
      %p527 = por %p525, %p526
      %s528 = ssub.s32 %s34, %s41
      %p529 = scmp.eq.s32.totalorder %s528, 0
      %s531 = sadd.s32 %s530, 1
      %s532 = scalar_select %p529, %s530, %s531
      %p535 = pneg %p529
      %p536 = scmp.eq.s32.totalorder %s34, 2
      %p537 = por %p535, %p536
      %p538 = scmp.ne.s32.totalorder %s530, %s533
      %p539 = scmp.eq.s32.totalorder %s34, 0
      %p540 = por %p538, %p539
      %p541 = scmp.ne.s32.totalorder %s530, %s533
      %p542 = scmp.eq.s32.totalorder %s39, 2
      %p543 = por %p541, %p542
      %p544 = scmp.ne.s32.totalorder %s533, %s534
      %p545 = scmp.eq.s32.totalorder %s39, 0
      %p546 = por %p544, %p545
      %p547 = scmp.ne.s32.totalorder %s533, %s534
      %p548 = scmp.eq.s32.totalorder %s40, 2
      %p549 = por %p547, %p548
      %p551 = scmp.ne.s32.totalorder %s534, %s550
      %p552 = scmp.eq.s32.totalorder %s40, 0
      %p553 = por %p551, %p552
      %s554 = ssub.s32 %s34, %s41
      %p555 = scmp.eq.s32.totalorder %s554, 0
      %s557 = sadd.s32 %s556, 1
      %s558 = scalar_select %p555, %s556, %s557
      %p561 = pneg %p555
      %p562 = scmp.eq.s32.totalorder %s34, 2
      %p563 = por %p561, %p562
      %p564 = scmp.ne.s32.totalorder %s556, %s559
      %p565 = scmp.eq.s32.totalorder %s34, 0
      %p566 = por %p564, %p565
      %p567 = scmp.ne.s32.totalorder %s556, %s559
      %p568 = scmp.eq.s32.totalorder %s39, 2
      %p569 = por %p567, %p568
      %p570 = scmp.ne.s32.totalorder %s559, %s560
      %p571 = scmp.eq.s32.totalorder %s39, 0
      %p572 = por %p570, %p571
      %p573 = scmp.ne.s32.totalorder %s559, %s560
      %p574 = scmp.eq.s32.totalorder %s40, 2
      %p575 = por %p573, %p574
      %p577 = scmp.ne.s32.totalorder %s560, %s576
      %p578 = scmp.eq.s32.totalorder %s40, 0
      %p579 = por %p577, %p578
      %s580 = ssub.s32 %s34, %s41
      %p581 = scmp.eq.s32.totalorder %s580, 0
      %s583 = sadd.s32 %s582, 1
      %s584 = scalar_select %p581, %s582, %s583
      %p587 = pneg %p581
      %p588 = scmp.eq.s32.totalorder %s34, 2
      %p589 = por %p587, %p588
      %p590 = scmp.ne.s32.totalorder %s582, %s585
      %p591 = scmp.eq.s32.totalorder %s34, 0
      %p592 = por %p590, %p591
      %p593 = scmp.ne.s32.totalorder %s582, %s585
      %p594 = scmp.eq.s32.totalorder %s39, 2
      %p595 = por %p593, %p594
      %p596 = scmp.ne.s32.totalorder %s585, %s586
      %p597 = scmp.eq.s32.totalorder %s39, 0
      %p598 = por %p596, %p597
      %p599 = scmp.ne.s32.totalorder %s585, %s586
      %p600 = scmp.eq.s32.totalorder %s40, 2
      %p601 = por %p599, %p600
      %p603 = scmp.ne.s32.totalorder %s586, %s602
      %p604 = scmp.eq.s32.totalorder %s40, 0
      %p605 = por %p603, %p604
      %s606 = ssub.s32 %s34, %s41
      %p607 = scmp.eq.s32.totalorder %s606, 0
      %s609 = sadd.s32 %s608, 1
      %s610 = scalar_select %p607, %s608, %s609
      %p613 = pneg %p607
      %p614 = scmp.eq.s32.totalorder %s34, 2
      %p615 = por %p613, %p614
      %p616 = scmp.ne.s32.totalorder %s608, %s611
      %p617 = scmp.eq.s32.totalorder %s34, 0
      %p618 = por %p616, %p617
      %p619 = scmp.ne.s32.totalorder %s608, %s611
      %p620 = scmp.eq.s32.totalorder %s39, 2
      %p621 = por %p619, %p620
      %p622 = scmp.ne.s32.totalorder %s611, %s612
      %p623 = scmp.eq.s32.totalorder %s39, 0
      %p624 = por %p622, %p623
      %p625 = scmp.ne.s32.totalorder %s611, %s612
      %p626 = scmp.eq.s32.totalorder %s40, 2
      %p627 = por %p625, %p626
      %p629 = scmp.ne.s32.totalorder %s612, %s628
      %p630 = scmp.eq.s32.totalorder %s40, 0
      %p631 = por %p629, %p630
      %s632 = ssub.s32 %s34, %s41
      %p633 = scmp.eq.s32.totalorder %s632, 0
      %s635 = sadd.s32 %s634, 1
      %s636 = scalar_select %p633, %s634, %s635
      %p639 = pneg %p633
      %p640 = scmp.eq.s32.totalorder %s34, 2
      %p641 = por %p639, %p640
      %p642 = scmp.ne.s32.totalorder %s634, %s637
      %p643 = scmp.eq.s32.totalorder %s34, 0
      %p644 = por %p642, %p643
      %p645 = scmp.ne.s32.totalorder %s634, %s637
      %p646 = scmp.eq.s32.totalorder %s39, 2
      %p647 = por %p645, %p646
      %p648 = scmp.ne.s32.totalorder %s637, %s638
      %p649 = scmp.eq.s32.totalorder %s39, 0
      %p650 = por %p648, %p649
      %p651 = scmp.ne.s32.totalorder %s637, %s638
      %p652 = scmp.eq.s32.totalorder %s40, 2
      %p653 = por %p651, %p652
      %p655 = scmp.ne.s32.totalorder %s638, %s654
      %p656 = scmp.eq.s32.totalorder %s40, 0
      %p657 = por %p655, %p656
      %s658 = ssub.s32 %s34, %s41
      %p659 = scmp.eq.s32.totalorder %s658, 0
      %s661 = sadd.s32 %s660, 1
      %s662 = scalar_select %p659, %s660, %s661
      %p665 = pneg %p659
      %p666 = scmp.eq.s32.totalorder %s34, 2
      %p667 = por %p665, %p666
      %p668 = scmp.ne.s32.totalorder %s660, %s663
      %p669 = scmp.eq.s32.totalorder %s34, 0
      %p670 = por %p668, %p669
      %p671 = scmp.ne.s32.totalorder %s660, %s663
      %p672 = scmp.eq.s32.totalorder %s39, 2
      %p673 = por %p671, %p672
      %p674 = scmp.ne.s32.totalorder %s663, %s664
      %p675 = scmp.eq.s32.totalorder %s39, 0
      %p676 = por %p674, %p675
      %p677 = scmp.ne.s32.totalorder %s663, %s664
      %p678 = scmp.eq.s32.totalorder %s40, 2
      %p679 = por %p677, %p678
      %p681 = scmp.ne.s32.totalorder %s664, %s680
      %p682 = scmp.eq.s32.totalorder %s40, 0
      %p683 = por %p681, %p682
      %s685 = sadd.s32 %s684, 1
      %p688 = scmp.eq.s32.totalorder %s34, 2
      %p689 = scmp.ne.s32.totalorder %s684, %s686
      %p690 = scmp.eq.s32.totalorder %s34, 0
      %p691 = por %p689, %p690
      %p692 = scmp.ne.s32.totalorder %s684, %s686
      %p693 = scmp.eq.s32.totalorder %s39, 2
      %p694 = por %p692, %p693
      %p695 = scmp.ne.s32.totalorder %s686, %s687
      %p696 = scmp.eq.s32.totalorder %s39, 0
      %p697 = por %p695, %p696
      %p698 = scmp.ne.s32.totalorder %s686, %s687
      %p699 = scmp.eq.s32.totalorder %s40, 2
      %p700 = por %p698, %p699
      %p702 = scmp.ne.s32.totalorder %s687, %s701
      %p703 = scmp.eq.s32.totalorder %s40, 0
      %p704 = por %p702, %p703
      %p705 = scmp.le.s32.totalorder 1, %s34
      %p706 = scmp.lt.s32.totalorder %s34, 4
      %p707 = pnand %p705, %p706
      %p708 = pneg %p707
      // Predicated region
      $region9: #{dimenet_forward.1} parent=5 // pred_check
        _
      $region10: #{dimenet_forward.1} parent=5 // pred_check_branch
        %710 = sbr.rel (%p707) target = $region12
      $region11: #{dimenet_forward.1} parent=5 // pred_region
        %s711 = ssub.s32 %s34, 1
        // Predicated region
        $region13: #{dimenet_forward.1} parent=11 // pred_check
          %p712 = pneg %p55
        $region14: #{dimenet_forward.1} parent=11 // pred_check_branch
          %714 = sbr.rel (%p712) target = $region16
        $region15: #{dimenet_forward.1} parent=11 // pred_region
          _
        $region16: #{dimenet_forward.1} parent=11 // pred_fallthru
          _
        // Predicated region
        $region17: #{dimenet_forward.1} parent=11 // pred_check
          %p715 = pneg %p76
        $region18: #{dimenet_forward.1} parent=11 // pred_check_branch
          %717 = sbr.rel (%p715) target = $region20
        $region19: #{dimenet_forward.1} parent=11 // pred_region
          _
        $region20: #{dimenet_forward.1} parent=11 // pred_fallthru
          _
        // Predicated region
        $region21: #{dimenet_forward.1} parent=11 // pred_check
          %p718 = pneg %p97
        $region22: #{dimenet_forward.1} parent=11 // pred_check_branch
          %720 = sbr.rel (%p718) target = $region24
        $region23: #{dimenet_forward.1} parent=11 // pred_region
          _
        $region24: #{dimenet_forward.1} parent=11 // pred_fallthru
          _
        // Predicated region
        $region25: #{dimenet_forward.1} parent=11 // pred_check
          %p721 = pneg %p118
        $region26: #{dimenet_forward.1} parent=11 // pred_check_branch
          %723 = sbr.rel (%p721) target = $region28
        $region27: #{dimenet_forward.1} parent=11 // pred_region
          _
        $region28: #{dimenet_forward.1} parent=11 // pred_fallthru
          _
        // Predicated region
        $region29: #{dimenet_forward.1} parent=11 // pred_check
          %p724 = pneg %p139
        $region30: #{dimenet_forward.1} parent=11 // pred_check_branch
          %726 = sbr.rel (%p724) target = $region32
        $region31: #{dimenet_forward.1} parent=11 // pred_region
          _
        $region32: #{dimenet_forward.1} parent=11 // pred_fallthru
          _
        // Predicated region
        $region33: #{dimenet_forward.1} parent=11 // pred_check
          %p727 = pneg %p160
        $region34: #{dimenet_forward.1} parent=11 // pred_check_branch
          %729 = sbr.rel (%p727) target = $region36
        $region35: #{dimenet_forward.1} parent=11 // pred_region
          _
        $region36: #{dimenet_forward.1} parent=11 // pred_fallthru
          _
        // Predicated region
        $region37: #{dimenet_forward.1} parent=11 // pred_check
          %p730 = pneg %p181
        $region38: #{dimenet_forward.1} parent=11 // pred_check_branch
          %732 = sbr.rel (%p730) target = $region40
        $region39: #{dimenet_forward.1} parent=11 // pred_region
          _
        $region40: #{dimenet_forward.1} parent=11 // pred_fallthru
          _
        // Predicated region
        $region41: #{dimenet_forward.1} parent=11 // pred_check
          %p733 = pneg %p202
        $region42: #{dimenet_forward.1} parent=11 // pred_check_branch
          %735 = sbr.rel (%p733) target = $region44
        $region43: #{dimenet_forward.1} parent=11 // pred_region
          _
        $region44: #{dimenet_forward.1} parent=11 // pred_fallthru
          _
        // Predicated region
        $region45: #{dimenet_forward.1} parent=11 // pred_check
          %p736 = pneg %p223
        $region46: #{dimenet_forward.1} parent=11 // pred_check_branch
          %738 = sbr.rel (%p736) target = $region48
        $region47: #{dimenet_forward.1} parent=11 // pred_region
          _
        $region48: #{dimenet_forward.1} parent=11 // pred_fallthru
          _
        // Predicated region
        $region49: #{dimenet_forward.1} parent=11 // pred_check
          %p739 = pneg %p244
        $region50: #{dimenet_forward.1} parent=11 // pred_check_branch
          %741 = sbr.rel (%p739) target = $region52
        $region51: #{dimenet_forward.1} parent=11 // pred_region
          _
        $region52: #{dimenet_forward.1} parent=11 // pred_fallthru
          _
        // Predicated region
        $region53: #{dimenet_forward.1} parent=11 // pred_check
          %p742 = pneg %p265
        $region54: #{dimenet_forward.1} parent=11 // pred_check_branch
          %744 = sbr.rel (%p742) target = $region56
        $region55: #{dimenet_forward.1} parent=11 // pred_region
          _
        $region56: #{dimenet_forward.1} parent=11 // pred_fallthru
          _
        // Predicated region
        $region57: #{dimenet_forward.1} parent=11 // pred_check
          %p745 = pneg %p286
        $region58: #{dimenet_forward.1} parent=11 // pred_check_branch
          %747 = sbr.rel (%p745) target = $region60
        $region59: #{dimenet_forward.1} parent=11 // pred_region
          _
        $region60: #{dimenet_forward.1} parent=11 // pred_fallthru
          _
      $region12: #{dimenet_forward.1} parent=5 // pred_fallthru
        _
      %p748 = scmp.lt.s32.totalorder %s34, 3
      // Predicated region
      $region61: #{dimenet_forward.1} parent=5 // pred_check
        %p749 = pneg %p748
      $region62: #{dimenet_forward.1} parent=5 // pred_check_branch
        %751 = sbr.rel (%p749) target = $region64
      $region63: #{dimenet_forward.1} parent=5 // pred_region
        // Predicated region
        $region65: #{dimenet_forward.1} parent=63 // pred_check
          %p752 = pneg %p306
        $region66: #{dimenet_forward.1} parent=63 // pred_check_branch
          %754 = sbr.rel (%p752) target = $region68
        $region67: #{dimenet_forward.1} parent=63 // pred_region
          %p755 = scmp.lt.s32.totalorder %s34, 2
          %s756 = scalar_select %p755, %s34, 2
          %s757 = smul.addr %s756, 4
          %s758 = scalar_lea.vmem %s12, %s757
        $region68: #{dimenet_forward.1} parent=63 // pred_fallthru
          _
        // Predicated region
        $region69: #{dimenet_forward.1} parent=63 // pred_check
          %p759 = pneg %p332
        $region70: #{dimenet_forward.1} parent=63 // pred_check_branch
          %761 = sbr.rel (%p759) target = $region72
        $region71: #{dimenet_forward.1} parent=63 // pred_region
          %p762 = scmp.lt.s32.totalorder %s34, 2
          %s763 = scalar_select %p762, %s34, 2
          %s764 = smul.addr %s763, 3
          %s765 = smul.addr %s764, 4
          %s766 = scalar_lea.vmem %s13, %s765
        $region72: #{dimenet_forward.1} parent=63 // pred_fallthru
          _
        // Predicated region
        $region73: #{dimenet_forward.1} parent=63 // pred_check
          %p767 = pneg %p358
        $region74: #{dimenet_forward.1} parent=63 // pred_check_branch
          %769 = sbr.rel (%p767) target = $region76
        $region75: #{dimenet_forward.1} parent=63 // pred_region
          %p770 = scmp.lt.s32.totalorder %s34, 2
          %s771 = scalar_select %p770, %s34, 2
          %s772 = smul.addr %s771, 4
          %s773 = smul.addr %s772, 4
          %s774 = scalar_lea.vmem %s14, %s773
        $region76: #{dimenet_forward.1} parent=63 // pred_fallthru
          _
        // Predicated region
        $region77: #{dimenet_forward.1} parent=63 // pred_check
          %p775 = pneg %p384
        $region78: #{dimenet_forward.1} parent=63 // pred_check_branch
          %777 = sbr.rel (%p775) target = $region80
        $region79: #{dimenet_forward.1} parent=63 // pred_region
          %p778 = scmp.lt.s32.totalorder %s34, 2
          %s779 = scalar_select %p778, %s34, 2
          %s780 = scalar_lea.vmem %s15, %s779
        $region80: #{dimenet_forward.1} parent=63 // pred_fallthru
          _
        // Predicated region
        $region81: #{dimenet_forward.1} parent=63 // pred_check
          %p781 = pneg %p410
        $region82: #{dimenet_forward.1} parent=63 // pred_check_branch
          %783 = sbr.rel (%p781) target = $region84
        $region83: #{dimenet_forward.1} parent=63 // pred_region
          %p784 = scmp.lt.s32.totalorder %s34, 2
          %s785 = scalar_select %p784, %s34, 2
          %s786 = smul.addr %s785, 4
          %s787 = smul.addr %s786, 4
          %s788 = scalar_lea.vmem %s16, %s787
        $region84: #{dimenet_forward.1} parent=63 // pred_fallthru
          _
        // Predicated region
        $region85: #{dimenet_forward.1} parent=63 // pred_check
          %p789 = pneg %p436
        $region86: #{dimenet_forward.1} parent=63 // pred_check_branch
          %791 = sbr.rel (%p789) target = $region88
        $region87: #{dimenet_forward.1} parent=63 // pred_region
          %p792 = scmp.lt.s32.totalorder %s34, 2
          %s793 = scalar_select %p792, %s34, 2
          %s794 = scalar_lea.vmem %s17, %s793
        $region88: #{dimenet_forward.1} parent=63 // pred_fallthru
          _
        // Predicated region
        $region89: #{dimenet_forward.1} parent=63 // pred_check
          %p795 = pneg %p462
        $region90: #{dimenet_forward.1} parent=63 // pred_check_branch
          %797 = sbr.rel (%p795) target = $region92
        $region91: #{dimenet_forward.1} parent=63 // pred_region
          %p798 = scmp.lt.s32.totalorder %s34, 2
          %s799 = scalar_select %p798, %s34, 2
          %s800 = smul.addr %s799, 32
          %s801 = smul.addr %s800, 4
          %s802 = scalar_lea.vmem %s18, %s801
        $region92: #{dimenet_forward.1} parent=63 // pred_fallthru
          _
        // Predicated region
        $region93: #{dimenet_forward.1} parent=63 // pred_check
          %p803 = pneg %p488
        $region94: #{dimenet_forward.1} parent=63 // pred_check_branch
          %805 = sbr.rel (%p803) target = $region96
        $region95: #{dimenet_forward.1} parent=63 // pred_region
          %p806 = scmp.lt.s32.totalorder %s34, 2
          %s807 = scalar_select %p806, %s34, 2
          %s808 = smul.addr %s807, 24
          %s809 = smul.addr %s808, 4
          %s810 = scalar_lea.vmem %s19, %s809
        $region96: #{dimenet_forward.1} parent=63 // pred_fallthru
          _
        // Predicated region
        $region97: #{dimenet_forward.1} parent=63 // pred_check
          %p811 = pneg %p514
        $region98: #{dimenet_forward.1} parent=63 // pred_check_branch
          %813 = sbr.rel (%p811) target = $region100
        $region99: #{dimenet_forward.1} parent=63 // pred_region
          %p814 = scmp.lt.s32.totalorder %s34, 2
          %s815 = scalar_select %p814, %s34, 2
          %s816 = smul.addr %s815, 6
          %s817 = scalar_lea.vmem %s20, %s816
        $region100: #{dimenet_forward.1} parent=63 // pred_fallthru
          _
        // Predicated region
        $region101: #{dimenet_forward.1} parent=63 // pred_check
          %p818 = pneg %p540
        $region102: #{dimenet_forward.1} parent=63 // pred_check_branch
          %820 = sbr.rel (%p818) target = $region104
        $region103: #{dimenet_forward.1} parent=63 // pred_region
          %p821 = scmp.lt.s32.totalorder %s34, 2
          %s822 = scalar_select %p821, %s34, 2
          %s823 = smul.addr %s822, 4
          %s824 = smul.addr %s823, 4
          %s825 = scalar_lea.vmem %s21, %s824
        $region104: #{dimenet_forward.1} parent=63 // pred_fallthru
          _
        // Predicated region
        $region105: #{dimenet_forward.1} parent=63 // pred_check
          %p826 = pneg %p566
        $region106: #{dimenet_forward.1} parent=63 // pred_check_branch
          %828 = sbr.rel (%p826) target = $region108
        $region107: #{dimenet_forward.1} parent=63 // pred_region
          %p829 = scmp.lt.s32.totalorder %s34, 2
          %s830 = scalar_select %p829, %s34, 2
          %s831 = scalar_lea.vmem %s22, %s830
        $region108: #{dimenet_forward.1} parent=63 // pred_fallthru
          _
        // Predicated region
        $region109: #{dimenet_forward.1} parent=63 // pred_check
          %p832 = pneg %p592
        $region110: #{dimenet_forward.1} parent=63 // pred_check_branch
          %834 = sbr.rel (%p832) target = $region112
        $region111: #{dimenet_forward.1} parent=63 // pred_region
          %p835 = scmp.lt.s32.totalorder %s34, 2
          %s836 = scalar_select %p835, %s34, 2
          %s837 = smul.addr %s836, 4
          %s838 = scalar_lea.vmem %s23, %s837
        $region112: #{dimenet_forward.1} parent=63 // pred_fallthru
          _
        // Predicated region
        $region113: #{dimenet_forward.1} parent=63 // pred_check
          %p839 = pneg %p618
        $region114: #{dimenet_forward.1} parent=63 // pred_check_branch
          %841 = sbr.rel (%p839) target = $region116
        $region115: #{dimenet_forward.1} parent=63 // pred_region
          %p842 = scmp.lt.s32.totalorder %s34, 2
          %s843 = scalar_select %p842, %s34, 2
          %s844 = smul.addr %s843, 12
          %s845 = smul.addr %s844, 4
          %s846 = scalar_lea.vmem %s24, %s845
        $region116: #{dimenet_forward.1} parent=63 // pred_fallthru
          _
        // Predicated region
        $region117: #{dimenet_forward.1} parent=63 // pred_check
          %p847 = pneg %p644
        $region118: #{dimenet_forward.1} parent=63 // pred_check_branch
          %849 = sbr.rel (%p847) target = $region120
        $region119: #{dimenet_forward.1} parent=63 // pred_region
          %p850 = scmp.lt.s32.totalorder %s34, 2
          %s851 = scalar_select %p850, %s34, 2
          %s852 = smul.addr %s851, 3
          %s853 = scalar_lea.vmem %s25, %s852
        $region120: #{dimenet_forward.1} parent=63 // pred_fallthru
          _
        // Predicated region
        $region121: #{dimenet_forward.1} parent=63 // pred_check
          %p854 = pneg %p670
        $region122: #{dimenet_forward.1} parent=63 // pred_check_branch
          %856 = sbr.rel (%p854) target = $region124
        $region123: #{dimenet_forward.1} parent=63 // pred_region
          %p857 = scmp.lt.s32.totalorder %s34, 2
          %s858 = scalar_select %p857, %s34, 2
          %s859 = smul.addr %s858, 4
          %s860 = smul.addr %s859, 4
          %s861 = scalar_lea.vmem %s26, %s860
        $region124: #{dimenet_forward.1} parent=63 // pred_fallthru
          _
      $region64: #{dimenet_forward.1} parent=5 // pred_fallthru
        _
      %p862 = scmp.le.s32.totalorder 1, %s34
      %p863 = scmp.lt.s32.totalorder %s34, 4
      %p864 = pnand %p862, %p863
      %p865 = pneg %p864
      // Predicated region
      $region125: #{dimenet_forward.1} parent=5 // pred_check
        _
      $region126: #{dimenet_forward.1} parent=5 // pred_check_branch
        %867 = sbr.rel (%p864) target = $region128
      $region127: #{dimenet_forward.1} parent=5 // pred_region
        %s868 = ssub.s32 %s34, 1
        %p869 = pneg %p55
        %p870 = pneg %p52
        %p871 = pneg %p76
        %p872 = pneg %p73
        %p873 = pneg %p97
        %p874 = pneg %p94
        %p875 = pneg %p118
        %p876 = pneg %p115
        %p877 = pneg %p139
        %p878 = pneg %p136
        %p879 = pneg %p160
        %p880 = pneg %p157
        %p881 = pneg %p181
        %p882 = pneg %p178
        %p883 = pneg %p202
        %p884 = pneg %p199
        %p885 = pneg %p223
        %p886 = pneg %p220
        %p887 = pneg %p244
        %p888 = pneg %p241
        %p889 = pneg %p265
        %p890 = pneg %p262
        %p891 = pneg %p286
        %p892 = pneg %p283
        %p893 = scmp.lt.s32.totalorder %s39, 2
        %s894 = scalar_select %p893, %s39, 2
        %s895 = smul.addr %s894, 4
        %s896 = scalar_lea.vmem %s12, %s895
        %p897 = pneg %p312
        %p898 = pneg %p309
        %p899 = scmp.lt.s32.totalorder %s39, 2
        %s900 = scalar_select %p899, %s39, 2
        %s901 = smul.addr %s900, 3
        %s902 = smul.addr %s901, 4
        %s903 = scalar_lea.vmem %s13, %s902
        %p904 = pneg %p338
        %p905 = pneg %p335
        %p906 = scmp.lt.s32.totalorder %s39, 2
        %s907 = scalar_select %p906, %s39, 2
        %s908 = smul.addr %s907, 4
        %s909 = smul.addr %s908, 4
        %s910 = scalar_lea.vmem %s14, %s909
        %p911 = pneg %p364
        %p912 = pneg %p361
        %p913 = scmp.lt.s32.totalorder %s39, 2
        %s914 = scalar_select %p913, %s39, 2
        %s915 = scalar_lea.vmem %s15, %s914
        %p916 = pneg %p390
        %p917 = pneg %p387
        %p918 = scmp.lt.s32.totalorder %s39, 2
        %s919 = scalar_select %p918, %s39, 2
        %s920 = smul.addr %s919, 4
        %s921 = smul.addr %s920, 4
        %s922 = scalar_lea.vmem %s16, %s921
        %p923 = pneg %p416
        %p924 = pneg %p413
        %p925 = scmp.lt.s32.totalorder %s39, 2
        %s926 = scalar_select %p925, %s39, 2
        %s927 = scalar_lea.vmem %s17, %s926
        %p928 = pneg %p442
        %p929 = pneg %p439
        %p930 = scmp.lt.s32.totalorder %s39, 2
        %s931 = scalar_select %p930, %s39, 2
        %s932 = smul.addr %s931, 32
        %s933 = smul.addr %s932, 4
        %s934 = scalar_lea.vmem %s18, %s933
        %p935 = pneg %p468
        %p936 = pneg %p465
        %p937 = scmp.lt.s32.totalorder %s39, 2
        %s938 = scalar_select %p937, %s39, 2
        %s939 = smul.addr %s938, 24
        %s940 = smul.addr %s939, 4
        %s941 = scalar_lea.vmem %s19, %s940
        %p942 = pneg %p494
        %p943 = pneg %p491
        %p944 = scmp.lt.s32.totalorder %s39, 2
        %s945 = scalar_select %p944, %s39, 2
        %s946 = smul.addr %s945, 6
        %s947 = scalar_lea.vmem %s20, %s946
        %p948 = pneg %p520
        %p949 = pneg %p517
        %p950 = scmp.lt.s32.totalorder %s39, 2
        %s951 = scalar_select %p950, %s39, 2
        %s952 = smul.addr %s951, 4
        %s953 = smul.addr %s952, 4
        %s954 = scalar_lea.vmem %s21, %s953
        %p955 = pneg %p546
        %p956 = pneg %p543
        %p957 = scmp.lt.s32.totalorder %s39, 2
        %s958 = scalar_select %p957, %s39, 2
        %s959 = scalar_lea.vmem %s22, %s958
        %p960 = pneg %p572
        %p961 = pneg %p569
        %p962 = scmp.lt.s32.totalorder %s39, 2
        %s963 = scalar_select %p962, %s39, 2
        %s964 = smul.addr %s963, 4
        %s965 = scalar_lea.vmem %s23, %s964
        %p966 = pneg %p598
        %p967 = pneg %p595
        %p968 = scmp.lt.s32.totalorder %s39, 2
        %s969 = scalar_select %p968, %s39, 2
        %s970 = smul.addr %s969, 12
        %s971 = smul.addr %s970, 4
        %s972 = scalar_lea.vmem %s24, %s971
        %p973 = pneg %p624
        %p974 = pneg %p621
        %p975 = scmp.lt.s32.totalorder %s39, 2
        %s976 = scalar_select %p975, %s39, 2
        %s977 = smul.addr %s976, 3
        %s978 = scalar_lea.vmem %s25, %s977
        %p979 = pneg %p650
        %p980 = pneg %p647
        %p981 = scmp.lt.s32.totalorder %s39, 2
        %s982 = scalar_select %p981, %s39, 2
        %s983 = smul.addr %s982, 4
        %s984 = smul.addr %s983, 4
        %s985 = scalar_lea.vmem %s26, %s984
        %p986 = pneg %p676
        %p987 = pneg %p673
        %p988 = pneg %p697
        %p989 = pneg %p694
        %p990 = scmp.lt.s32.totalorder %s39, 2
        %s991 = scalar_select %p990, %s39, 2
        %s992 = smul.addr %s991, 4
        %s993 = scalar_lea.vmem %s12, %s992
        %p994 = scmp.lt.s32.totalorder %s39, 2
        %s995 = scalar_select %p994, %s39, 2
        %s996 = smul.addr %s995, 3
        %s997 = smul.addr %s996, 4
        %s998 = scalar_lea.vmem %s13, %s997
        %p999 = scmp.lt.s32.totalorder %s39, 2
        %s1000 = scalar_select %p999, %s39, 2
        %s1001 = smul.addr %s1000, 4
        %s1002 = smul.addr %s1001, 4
        %s1003 = scalar_lea.vmem %s14, %s1002
        %p1004 = scmp.lt.s32.totalorder %s39, 2
        %s1005 = scalar_select %p1004, %s39, 2
        %s1006 = scalar_lea.vmem %s15, %s1005
        %p1007 = scmp.lt.s32.totalorder %s39, 2
        %s1008 = scalar_select %p1007, %s39, 2
        %s1009 = smul.addr %s1008, 4
        %s1010 = smul.addr %s1009, 4
        %s1011 = scalar_lea.vmem %s16, %s1010
        %p1012 = scmp.lt.s32.totalorder %s39, 2
        %s1013 = scalar_select %p1012, %s39, 2
        %s1014 = scalar_lea.vmem %s17, %s1013
        %p1015 = scmp.lt.s32.totalorder %s39, 2
        %s1016 = scalar_select %p1015, %s39, 2
        %s1017 = smul.addr %s1016, 32
        %s1018 = smul.addr %s1017, 4
        %s1019 = scalar_lea.vmem %s18, %s1018
        %p1020 = scmp.lt.s32.totalorder %s39, 2
        %s1021 = scalar_select %p1020, %s39, 2
        %s1022 = smul.addr %s1021, 24
        %s1023 = smul.addr %s1022, 4
        %s1024 = scalar_lea.vmem %s19, %s1023
        %p1025 = scmp.lt.s32.totalorder %s39, 2
        %s1026 = scalar_select %p1025, %s39, 2
        %s1027 = smul.addr %s1026, 6
        %s1028 = scalar_lea.vmem %s20, %s1027
        %p1029 = scmp.lt.s32.totalorder %s39, 2
        %s1030 = scalar_select %p1029, %s39, 2
        %s1031 = smul.addr %s1030, 4
        %s1032 = smul.addr %s1031, 4
        %s1033 = scalar_lea.vmem %s21, %s1032
        %p1034 = scmp.lt.s32.totalorder %s39, 2
        %s1035 = scalar_select %p1034, %s39, 2
        %s1036 = scalar_lea.vmem %s22, %s1035
        %p1037 = scmp.lt.s32.totalorder %s39, 2
        %s1038 = scalar_select %p1037, %s39, 2
        %s1039 = smul.addr %s1038, 4
        %s1040 = scalar_lea.vmem %s23, %s1039
        %p1041 = scmp.lt.s32.totalorder %s39, 2
        %s1042 = scalar_select %p1041, %s39, 2
        %s1043 = smul.addr %s1042, 12
        %s1044 = smul.addr %s1043, 4
        %s1045 = scalar_lea.vmem %s24, %s1044
        %p1046 = scmp.lt.s32.totalorder %s39, 2
        %s1047 = scalar_select %p1046, %s39, 2
        %s1048 = smul.addr %s1047, 3
        %s1049 = scalar_lea.vmem %s25, %s1048
        %p1050 = scmp.lt.s32.totalorder %s39, 2
        %s1051 = scalar_select %p1050, %s39, 2
        %s1052 = smul.addr %s1051, 4
        %s1053 = smul.addr %s1052, 4
        %s1054 = scalar_lea.vmem %s26, %s1053
        %p1056 = scmp.eq.s32.totalorder %s39, 0
        // Predicated region
        $region129: #{dimenet_forward.1} parent=127 // pred_check
          %p1057 = pneg %p1056
        $region130: #{dimenet_forward.1} parent=127 // pred_check_branch
          %1059 = sbr.rel (%p1057) target = $region132
        $region131: #{dimenet_forward.1} parent=127 // pred_region
          %v1060 = vld [vmem:[%s0] sm:$0xff]
          %v1061 = vld [vmem:[%s0 + $0x8] sm:$0xf]
          %v1062 = vmax.f32 %v1060, 1e-06
          %v1063 = vmax.f32 %v1061, 1e-06
          %v1064 = vmul.f32 %v1062, %v1062
          %v1065 = vmul.f32 %v1063, %v1063
          %v1066 = vmul.f32 %v1064, %v1064
          %v1067 = vmul.f32 %v1065, %v1065
          %v1068 = vmul.f32 %v1066, %v1062
          %v1069 = vmul.f32 %v1067, %v1063
          %v1070 = vmul.f32 %v1068, %v1062
          %v1071 = vmul.f32 %v1069, %v1063
          %v1072 = vmul.f32 %v1070, %v1062
          %v1073 = vmul.f32 %v1071, %v1063
          %v1074 = vrcp.pop %v1062
          %v1075 = vrcp.pop %v1063
          %v1076 = vmul.f32 %v1068, -28.0
          %v1077 = vmul.f32 %v1069, -28.0
          %v1078 = vadd.f32 %v1074, %v1076
          %v1079 = vadd.f32 %v1075, %v1077
          %v1080 = vmul.f32 %v1070, 48.0
          %v1081 = vmul.f32 %v1071, 48.0
          %v1082 = vadd.f32 %v1078, %v1080
          %v1083 = vadd.f32 %v1079, %v1081
          %v1084 = vmul.f32 %v1072, -21.0
          %v1085 = vmul.f32 %v1073, -21.0
          %v1086 = vadd.f32 %v1082, %v1084
          %v1087 = vadd.f32 %v1083, %v1085
          %vm1088 = vcmp.gt.f32.partialorder %v1060, 1e-06
          %vm1089 = vcmp.gt.f32.partialorder %v1061, 1e-06
          %vm1090 = vcmp.lt.f32.partialorder %v1060, 1.0
          %vm1091 = vcmp.lt.f32.partialorder %v1061, 1.0
          %vm1092 = vmand %vm1088, %vm1090
          %vm1093 = vmand %vm1089, %vm1091
          %v1094 = vsel %vm1092, %v1086, 0.0
          %v1095 = vsel %vm1093, %v1087, 0.0
          %v1096 = vld [vmem:[%s1] sm:$0x1]
          %v1098 = vlaneseq
          %v1099 = vshrl.u32 %v1098, 7
          %v1100 = vsub.s32 0, %v1099
          %v1101 = vrot.slane %v1096, %v1100
          %1104 = vset.pattern.permute.xlu0 0
          %1105 = vperm.xlu0 %1104, %v1062
          %v1106 = vpop.permute.xlu0 %1105
          %1109 = vset.pattern.permute.xlu0 0
          %1110 = vperm.xlu0 %1109, %v1063
          %v1111 = vpop.permute.xlu0 %1110
          %v1113 = vmul.f32 %v1101, %v1106
          %v1114 = vmul.f32 %v1101, %v1111
          %v1115 = vand.u32 2147483647, %v1113
          %vm1116 = vcmp.le.f32.partialorder %v1115, 0.7853982
          %vm1117 = vcmp.lt.s32.totalorder %v1113, 0
          %v1118 = vand.u32 %v1113, 2139095040
          %v1119 = vshrl.u32 %v1118, 23
          %v1120 = vsub.s32 %v1119, 127
          %v1121 = vand.u32 2147483647, %v1113
          %v1122 = vand.u32 %v1121, 8388607
          %v1123 = vor.u32 %v1122, 8388608
          %v1124 = vsub.s32 0, %v1123
          %v1125 = vadd.s32 %v1120, 1
          %vm1126 = vcmp.gt.s32.totalorder %v1125, 0
          %v1127 = vsel %vm1126, %v1125, 0
          %v1128 = vshrl.u32 %v1127, 5
          %v1129 = vand.u32 %v1127, 31
          %v1130 = vsub.s32 32, %v1129
          %v1131 = vshrl.u32 683565275, %v1130
          %v1132 = vshll.u32 683565275, %v1129
          %v1133 = vshrl.u32 2475754826, %v1130
          %v1134 = vor.u32 %v1132, %v1133
          %v1135 = vshll.u32 2475754826, %v1129
          %v1136 = vshrl.u32 2131351028, %v1130
          %v1137 = vor.u32 %v1135, %v1136
          %v1138 = vshll.u32 2131351028, %v1129
          %v1139 = vshrl.u32 2102212464, %v1130
          %v1140 = vor.u32 %v1138, %v1139
          %v1141 = vshll.u32 2102212464, %v1129
          %v1142 = vshrl.u32 920167782, %v1130
          %v1143 = vor.u32 %v1141, %v1142
          %v1144 = vshll.u32 920167782, %v1129
          %v1145 = vshrl.u32 1326507024, %v1130
          %v1146 = vor.u32 %v1144, %v1145
          %vm1147 = vcmp.lt.s32.totalorder %v1128, 1
          %vm1148 = vcmp.lt.s32.totalorder %v1128, 2
          %vm1149 = vcmp.lt.s32.totalorder %v1128, 3
          %vm1150 = vcmp.lt.s32.totalorder %v1128, 4
          %v1151 = vsel %vm1147, %v1131, %v1134
          %v1152 = vsel %vm1150, %v1140, 2102212464
          %v1153 = vsel %vm1149, %v1137, %v1152
          %v1154 = vsel %vm1148, %v1151, %v1153
          %v1155 = vsel %vm1147, %v1134, %v1137
          %v1156 = vsel %vm1150, %v1143, 920167782
          %v1157 = vsel %vm1149, %v1140, %v1156
          %v1158 = vsel %vm1148, %v1155, %v1157
          %v1159 = vsel %vm1147, %v1137, %v1140
          %v1160 = vsel %vm1150, %v1146, 1326507024
          %v1161 = vsel %vm1149, %v1143, %v1160
          %v1162 = vsel %vm1148, %v1159, %v1161
          %v1163 = vshll.u32 %v1123, 8
          %v1164 = vmul.u32.u64.compose %v1163, %v1162
          %v1165 = vextract.low.u32 %v1164
          %v1166 = vextract.high.u32 %v1164
          %v1167 = vmul.u32.u64.compose %v1163, %v1158
          %v1168 = vextract.low.u32 %v1167
          %v1169 = vextract.high.u32 %v1167
          %v1170 = vmul.u32 %v1163, %v1154
          %v1171 = vadd.s32 %v1166, %v1168
          %vm1172 = vc.u32 %v1166, %v1168
          %v1173 = vadd.s32 %v1169, 1
          %v1174 = vsel %vm1172, %v1173, %v1169
          %v1175 = vadd.s32 %v1170, %v1174
          %v1176 = vadd.s32 %v1175, 536870912
          %v1177 = vshrl.u32 %v1176, 30
          %v1178 = vshll.u32 %v1177, 30
          %v1179 = vsub.s32 %v1175, %v1178
          %vm1180 = vcmp.lt.s32.totalorder %v1179, 0
          %v1181 = vsub.s32 0, %v1179
          %v1182 = vsel %vm1180, %v1181, %v1179
          %v1183 = vclz %v1182
          %v1184 = vsub.s32 %v1183, 2
          %vm1185 = vcmp.gt.s32.totalorder 0, %v1184
          %v1186 = vsel %vm1185, 0, %v1184
          %v1187 = vsub.s32 32, %v1186
          %v1188 = vshll.u32 %v1179, %v1186
          %v1189 = vshrl.u32 %v1171, %v1187
          %v1190 = vor.u32 %v1188, %v1189
          %v1191 = vsub.s32 4294967266, %v1186
          %v1192 = vadd.s32 %v1191, 127
          %v1193 = vshll.u32 %v1192, 23
          %v1194 = vor.u32 4788187, %v1193
          %v1195 = vand.u32 2147483647, %v1194
          %v1197 = vcvt.s32.f32 %v1190
          %v1198 = vmul.f32 %v1197, %v1195
          %v1199 = vxor.u32 %v1198, 2147483648
          %v1200 = vsel %vm1117, %v1199, %v1198
          %v1201 = vsub.s32 4, %v1177
          %v1202 = vsel %vm1117, %v1201, %v1177
          %v1203 = vsel %vm1116, %v1113, %v1200
          %v1204 = vsel %vm1116, 0, %v1202
          %v1205 = vcosq.f32.pop %v1203
          %v1206 = vsinq.f32.pop %v1203
          %vm1207 = vweird.f32 %v1113
          %v1208 = vadd.s32 %v1204, 3
          %v1209 = vand.u32 %v1208, 3
          %vm1210 = vcmp.lt.s32.totalorder %v1209, 2
          %vm1211 = vcmp.eq.s32.totalorder %v1209, 0
          %v1212 = vxor.u32 %v1206, 2147483648
          %v1213 = vsel %vm1211, %v1205, %v1212
          %vm1214 = vcmp.eq.s32.totalorder %v1209, 2
          %v1215 = vxor.u32 %v1205, 2147483648
          %v1216 = vsel %vm1214, %v1215, %v1206
          %v1217 = vsel %vm1210, %v1213, %v1216
          %v1218 = vsel %vm1207, nan, %v1217
          %v1219 = vand.u32 2147483647, %v1114
          %vm1220 = vcmp.le.f32.partialorder %v1219, 0.7853982
          %vm1221 = vcmp.lt.s32.totalorder %v1114, 0
          %v1222 = vand.u32 %v1114, 2139095040
          %v1223 = vshrl.u32 %v1222, 23
          %v1224 = vsub.s32 %v1223, 127
          %v1225 = vand.u32 2147483647, %v1114
          %v1226 = vand.u32 %v1225, 8388607
          %v1227 = vor.u32 %v1226, 8388608
          %v1228 = vsub.s32 0, %v1227
          %v1229 = vadd.s32 %v1224, 1
          %vm1230 = vcmp.gt.s32.totalorder %v1229, 0
          %v1231 = vsel %vm1230, %v1229, 0
          %v1232 = vshrl.u32 %v1231, 5
          %v1233 = vand.u32 %v1231, 31
          %v1234 = vsub.s32 32, %v1233
          %v1235 = vshrl.u32 683565275, %v1234
          %v1236 = vshll.u32 683565275, %v1233
          %v1237 = vshrl.u32 2475754826, %v1234
          %v1238 = vor.u32 %v1236, %v1237
          %v1239 = vshll.u32 2475754826, %v1233
          %v1240 = vshrl.u32 2131351028, %v1234
          %v1241 = vor.u32 %v1239, %v1240
          %v1242 = vshll.u32 2131351028, %v1233
          %v1243 = vshrl.u32 2102212464, %v1234
          %v1244 = vor.u32 %v1242, %v1243
          %v1245 = vshll.u32 2102212464, %v1233
          %v1246 = vshrl.u32 920167782, %v1234
          %v1247 = vor.u32 %v1245, %v1246
          %v1248 = vshll.u32 920167782, %v1233
          %v1249 = vshrl.u32 1326507024, %v1234
          %v1250 = vor.u32 %v1248, %v1249
          %vm1251 = vcmp.lt.s32.totalorder %v1232, 1
          %vm1252 = vcmp.lt.s32.totalorder %v1232, 2
          %vm1253 = vcmp.lt.s32.totalorder %v1232, 3
          %vm1254 = vcmp.lt.s32.totalorder %v1232, 4
          %v1255 = vsel %vm1251, %v1235, %v1238
          %v1256 = vsel %vm1254, %v1244, 2102212464
          %v1257 = vsel %vm1253, %v1241, %v1256
          %v1258 = vsel %vm1252, %v1255, %v1257
          %v1259 = vsel %vm1251, %v1238, %v1241
          %v1260 = vsel %vm1254, %v1247, 920167782
          %v1261 = vsel %vm1253, %v1244, %v1260
          %v1262 = vsel %vm1252, %v1259, %v1261
          %v1263 = vsel %vm1251, %v1241, %v1244
          %v1264 = vsel %vm1254, %v1250, 1326507024
          %v1265 = vsel %vm1253, %v1247, %v1264
          %v1266 = vsel %vm1252, %v1263, %v1265
          %v1267 = vshll.u32 %v1227, 8
          %v1268 = vmul.u32.u64.compose %v1267, %v1266
          %v1269 = vextract.low.u32 %v1268
          %v1270 = vextract.high.u32 %v1268
          %v1271 = vmul.u32.u64.compose %v1267, %v1262
          %v1272 = vextract.low.u32 %v1271
          %v1273 = vextract.high.u32 %v1271
          %v1274 = vmul.u32 %v1267, %v1258
          %v1275 = vadd.s32 %v1270, %v1272
          %vm1276 = vc.u32 %v1270, %v1272
          %v1277 = vadd.s32 %v1273, 1
          %v1278 = vsel %vm1276, %v1277, %v1273
          %v1279 = vadd.s32 %v1274, %v1278
          %v1280 = vadd.s32 %v1279, 536870912
          %v1281 = vshrl.u32 %v1280, 30
          %v1282 = vshll.u32 %v1281, 30
          %v1283 = vsub.s32 %v1279, %v1282
          %vm1284 = vcmp.lt.s32.totalorder %v1283, 0
          %v1285 = vsub.s32 0, %v1283
          %v1286 = vsel %vm1284, %v1285, %v1283
          %v1287 = vclz %v1286
          %v1288 = vsub.s32 %v1287, 2
          %vm1289 = vcmp.gt.s32.totalorder 0, %v1288
          %v1290 = vsel %vm1289, 0, %v1288
          %v1291 = vsub.s32 32, %v1290
          %v1292 = vshll.u32 %v1283, %v1290
          %v1293 = vshrl.u32 %v1275, %v1291
          %v1294 = vor.u32 %v1292, %v1293
          %v1295 = vsub.s32 4294967266, %v1290
          %v1296 = vadd.s32 %v1295, 127
          %v1297 = vshll.u32 %v1296, 23
          %v1298 = vor.u32 4788187, %v1297
          %v1299 = vand.u32 2147483647, %v1298
          %v1301 = vcvt.s32.f32 %v1294
          %v1302 = vmul.f32 %v1301, %v1299
          %v1303 = vxor.u32 %v1302, 2147483648
          %v1304 = vsel %vm1221, %v1303, %v1302
          %v1305 = vsub.s32 4, %v1281
          %v1306 = vsel %vm1221, %v1305, %v1281
          %v1307 = vsel %vm1220, %v1114, %v1304
          %v1308 = vsel %vm1220, 0, %v1306
          %v1309 = vcosq.f32.pop %v1307
          %v1310 = vsinq.f32.pop %v1307
          %vm1311 = vweird.f32 %v1114
          %v1312 = vadd.s32 %v1308, 3
          %v1313 = vand.u32 %v1312, 3
          %vm1314 = vcmp.lt.s32.totalorder %v1313, 2
          %vm1315 = vcmp.eq.s32.totalorder %v1313, 0
          %v1316 = vxor.u32 %v1310, 2147483648
          %v1317 = vsel %vm1315, %v1309, %v1316
          %vm1318 = vcmp.eq.s32.totalorder %v1313, 2
          %v1319 = vxor.u32 %v1309, 2147483648
          %v1320 = vsel %vm1318, %v1319, %v1310
          %v1321 = vsel %vm1314, %v1317, %v1320
          %v1322 = vsel %vm1311, nan, %v1321
          %1324 = vset.pattern.permute.xlu0 0
          %1325 = vperm.xlu0 %1324, %v1094
          %v1326 = vpop.permute.xlu0 %1325
          %1329 = vset.pattern.permute.xlu0 0
          %1330 = vperm.xlu0 %1329, %v1095
          %v1331 = vpop.permute.xlu0 %1330
          %v1333 = vmul.f32 %v1326, %v1218
          %v1334 = vmul.f32 %v1331, %v1322
          %v1335 = vld [vmem:[%s2] sm:$0x1]
          %v1337 = vlaneseq
          %v1338 = vshrl.u32 %v1337, 7
          %v1339 = vsub.s32 0, %v1338
          %v1340 = vrot.slane %v1335, %v1339
          %v1342 = vmul.f32 %v1340, %v1106
          %v1343 = vmul.f32 %v1340, %v1111
          %v1344 = vand.u32 2147483647, %v1342
          %vm1345 = vcmp.le.f32.partialorder %v1344, 0.7853982
          %vm1346 = vcmp.lt.s32.totalorder %v1342, 0
          %v1347 = vand.u32 %v1342, 2139095040
          %v1348 = vshrl.u32 %v1347, 23
          %v1349 = vsub.s32 %v1348, 127
          %v1350 = vand.u32 2147483647, %v1342
          %v1351 = vand.u32 %v1350, 8388607
          %v1352 = vor.u32 %v1351, 8388608
          %v1353 = vsub.s32 0, %v1352
          %v1354 = vadd.s32 %v1349, 1
          %vm1355 = vcmp.gt.s32.totalorder %v1354, 0
          %v1356 = vsel %vm1355, %v1354, 0
          %v1357 = vshrl.u32 %v1356, 5
          %v1358 = vand.u32 %v1356, 31
          %v1359 = vsub.s32 32, %v1358
          %v1360 = vshrl.u32 683565275, %v1359
          %v1361 = vshll.u32 683565275, %v1358
          %v1362 = vshrl.u32 2475754826, %v1359
          %v1363 = vor.u32 %v1361, %v1362
          %v1364 = vshll.u32 2475754826, %v1358
          %v1365 = vshrl.u32 2131351028, %v1359
          %v1366 = vor.u32 %v1364, %v1365
          %v1367 = vshll.u32 2131351028, %v1358
          %v1368 = vshrl.u32 2102212464, %v1359
          %v1369 = vor.u32 %v1367, %v1368
          %v1370 = vshll.u32 2102212464, %v1358
          %v1371 = vshrl.u32 920167782, %v1359
          %v1372 = vor.u32 %v1370, %v1371
          %v1373 = vshll.u32 920167782, %v1358
          %v1374 = vshrl.u32 1326507024, %v1359
          %v1375 = vor.u32 %v1373, %v1374
          %vm1376 = vcmp.lt.s32.totalorder %v1357, 1
          %vm1377 = vcmp.lt.s32.totalorder %v1357, 2
          %vm1378 = vcmp.lt.s32.totalorder %v1357, 3
          %vm1379 = vcmp.lt.s32.totalorder %v1357, 4
          %v1380 = vsel %vm1376, %v1360, %v1363
          %v1381 = vsel %vm1379, %v1369, 2102212464
          %v1382 = vsel %vm1378, %v1366, %v1381
          %v1383 = vsel %vm1377, %v1380, %v1382
          %v1384 = vsel %vm1376, %v1363, %v1366
          %v1385 = vsel %vm1379, %v1372, 920167782
          %v1386 = vsel %vm1378, %v1369, %v1385
          %v1387 = vsel %vm1377, %v1384, %v1386
          %v1388 = vsel %vm1376, %v1366, %v1369
          %v1389 = vsel %vm1379, %v1375, 1326507024
          %v1390 = vsel %vm1378, %v1372, %v1389
          %v1391 = vsel %vm1377, %v1388, %v1390
          %v1392 = vshll.u32 %v1352, 8
          %v1393 = vmul.u32.u64.compose %v1392, %v1391
          %v1394 = vextract.low.u32 %v1393
          %v1395 = vextract.high.u32 %v1393
          %v1396 = vmul.u32.u64.compose %v1392, %v1387
          %v1397 = vextract.low.u32 %v1396
          %v1398 = vextract.high.u32 %v1396
          %v1399 = vmul.u32 %v1392, %v1383
          %v1400 = vadd.s32 %v1395, %v1397
          %vm1401 = vc.u32 %v1395, %v1397
          %v1402 = vadd.s32 %v1398, 1
          %v1403 = vsel %vm1401, %v1402, %v1398
          %v1404 = vadd.s32 %v1399, %v1403
          %v1405 = vadd.s32 %v1404, 536870912
          %v1406 = vshrl.u32 %v1405, 30
          %v1407 = vshll.u32 %v1406, 30
          %v1408 = vsub.s32 %v1404, %v1407
          %vm1409 = vcmp.lt.s32.totalorder %v1408, 0
          %v1410 = vsub.s32 0, %v1408
          %v1411 = vsel %vm1409, %v1410, %v1408
          %v1412 = vclz %v1411
          %v1413 = vsub.s32 %v1412, 2
          %vm1414 = vcmp.gt.s32.totalorder 0, %v1413
          %v1415 = vsel %vm1414, 0, %v1413
          %v1416 = vsub.s32 32, %v1415
          %v1417 = vshll.u32 %v1408, %v1415
          %v1418 = vshrl.u32 %v1400, %v1416
          %v1419 = vor.u32 %v1417, %v1418
          %v1420 = vsub.s32 4294967266, %v1415
          %v1421 = vadd.s32 %v1420, 127
          %v1422 = vshll.u32 %v1421, 23
          %v1423 = vor.u32 4788187, %v1422
          %v1424 = vand.u32 2147483647, %v1423
          %v1426 = vcvt.s32.f32 %v1419
          %v1427 = vmul.f32 %v1426, %v1424
          %v1428 = vxor.u32 %v1427, 2147483648
          %v1429 = vsel %vm1346, %v1428, %v1427
          %v1430 = vsub.s32 4, %v1406
          %v1431 = vsel %vm1346, %v1430, %v1406
          %v1432 = vsel %vm1345, %v1342, %v1429
          %v1433 = vsel %vm1345, 0, %v1431
          %v1434 = vcosq.f32.pop %v1432
          %v1435 = vsinq.f32.pop %v1432
          %vm1436 = vweird.f32 %v1342
          %v1437 = vadd.s32 %v1433, 3
          %v1438 = vand.u32 %v1437, 3
          %vm1439 = vcmp.lt.s32.totalorder %v1438, 2
          %vm1440 = vcmp.eq.s32.totalorder %v1438, 0
          %v1441 = vxor.u32 %v1435, 2147483648
          %v1442 = vsel %vm1440, %v1434, %v1441
          %vm1443 = vcmp.eq.s32.totalorder %v1438, 2
          %v1444 = vxor.u32 %v1434, 2147483648
          %v1445 = vsel %vm1443, %v1444, %v1435
          %v1446 = vsel %vm1439, %v1442, %v1445
          %v1447 = vsel %vm1436, nan, %v1446
          %v1448 = vand.u32 2147483647, %v1343
          %vm1449 = vcmp.le.f32.partialorder %v1448, 0.7853982
          %vm1450 = vcmp.lt.s32.totalorder %v1343, 0
          %v1451 = vand.u32 %v1343, 2139095040
          %v1452 = vshrl.u32 %v1451, 23
          %v1453 = vsub.s32 %v1452, 127
          %v1454 = vand.u32 2147483647, %v1343
          %v1455 = vand.u32 %v1454, 8388607
          %v1456 = vor.u32 %v1455, 8388608
          %v1457 = vsub.s32 0, %v1456
          %v1458 = vadd.s32 %v1453, 1
          %vm1459 = vcmp.gt.s32.totalorder %v1458, 0
          %v1460 = vsel %vm1459, %v1458, 0
          %v1461 = vshrl.u32 %v1460, 5
          %v1462 = vand.u32 %v1460, 31
          %v1463 = vsub.s32 32, %v1462
          %v1464 = vshrl.u32 683565275, %v1463
          %v1465 = vshll.u32 683565275, %v1462
          %v1466 = vshrl.u32 2475754826, %v1463
          %v1467 = vor.u32 %v1465, %v1466
          %v1468 = vshll.u32 2475754826, %v1462
          %v1469 = vshrl.u32 2131351028, %v1463
          %v1470 = vor.u32 %v1468, %v1469
          %v1471 = vshll.u32 2131351028, %v1462
          %v1472 = vshrl.u32 2102212464, %v1463
          %v1473 = vor.u32 %v1471, %v1472
          %v1474 = vshll.u32 2102212464, %v1462
          %v1475 = vshrl.u32 920167782, %v1463
          %v1476 = vor.u32 %v1474, %v1475
          %v1477 = vshll.u32 920167782, %v1462
          %v1478 = vshrl.u32 1326507024, %v1463
          %v1479 = vor.u32 %v1477, %v1478
          %vm1480 = vcmp.lt.s32.totalorder %v1461, 1
          %vm1481 = vcmp.lt.s32.totalorder %v1461, 2
          %vm1482 = vcmp.lt.s32.totalorder %v1461, 3
          %vm1483 = vcmp.lt.s32.totalorder %v1461, 4
          %v1484 = vsel %vm1480, %v1464, %v1467
          %v1485 = vsel %vm1483, %v1473, 2102212464
          %v1486 = vsel %vm1482, %v1470, %v1485
          %v1487 = vsel %vm1481, %v1484, %v1486
          %v1488 = vsel %vm1480, %v1467, %v1470
          %v1489 = vsel %vm1483, %v1476, 920167782
          %v1490 = vsel %vm1482, %v1473, %v1489
          %v1491 = vsel %vm1481, %v1488, %v1490
          %v1492 = vsel %vm1480, %v1470, %v1473
          %v1493 = vsel %vm1483, %v1479, 1326507024
          %v1494 = vsel %vm1482, %v1476, %v1493
          %v1495 = vsel %vm1481, %v1492, %v1494
          %v1496 = vshll.u32 %v1456, 8
          %v1497 = vmul.u32.u64.compose %v1496, %v1495
          %v1498 = vextract.low.u32 %v1497
          %v1499 = vextract.high.u32 %v1497
          %v1500 = vmul.u32.u64.compose %v1496, %v1491
          %v1501 = vextract.low.u32 %v1500
          %v1502 = vextract.high.u32 %v1500
          %v1503 = vmul.u32 %v1496, %v1487
          %v1504 = vadd.s32 %v1499, %v1501
          %vm1505 = vc.u32 %v1499, %v1501
          %v1506 = vadd.s32 %v1502, 1
          %v1507 = vsel %vm1505, %v1506, %v1502
          %v1508 = vadd.s32 %v1503, %v1507
          %v1509 = vadd.s32 %v1508, 536870912
          %v1510 = vshrl.u32 %v1509, 30
          %v1511 = vshll.u32 %v1510, 30
          %v1512 = vsub.s32 %v1508, %v1511
          %vm1513 = vcmp.lt.s32.totalorder %v1512, 0
          %v1514 = vsub.s32 0, %v1512
          %v1515 = vsel %vm1513, %v1514, %v1512
          %v1516 = vclz %v1515
          %v1517 = vsub.s32 %v1516, 2
          %vm1518 = vcmp.gt.s32.totalorder 0, %v1517
          %v1519 = vsel %vm1518, 0, %v1517
          %v1520 = vsub.s32 32, %v1519
          %v1521 = vshll.u32 %v1512, %v1519
          %v1522 = vshrl.u32 %v1504, %v1520
          %v1523 = vor.u32 %v1521, %v1522
          %v1524 = vsub.s32 4294967266, %v1519
          %v1525 = vadd.s32 %v1524, 127
          %v1526 = vshll.u32 %v1525, 23
          %v1527 = vor.u32 4788187, %v1526
          %v1528 = vand.u32 2147483647, %v1527
          %v1530 = vcvt.s32.f32 %v1523
          %v1531 = vmul.f32 %v1530, %v1528
          %v1532 = vxor.u32 %v1531, 2147483648
          %v1533 = vsel %vm1450, %v1532, %v1531
          %v1534 = vsub.s32 4, %v1510
          %v1535 = vsel %vm1450, %v1534, %v1510
          %v1536 = vsel %vm1449, %v1343, %v1533
          %v1537 = vsel %vm1449, 0, %v1535
          %v1538 = vcosq.f32.pop %v1536
          %v1539 = vsinq.f32.pop %v1536
          %vm1540 = vweird.f32 %v1343
          %v1541 = vadd.s32 %v1537, 3
          %v1542 = vand.u32 %v1541, 3
          %vm1543 = vcmp.lt.s32.totalorder %v1542, 2
          %vm1544 = vcmp.eq.s32.totalorder %v1542, 0
          %v1545 = vxor.u32 %v1539, 2147483648
          %v1546 = vsel %vm1544, %v1538, %v1545
          %vm1547 = vcmp.eq.s32.totalorder %v1542, 2
          %v1548 = vxor.u32 %v1538, 2147483648
          %v1549 = vsel %vm1547, %v1548, %v1539
          %v1550 = vsel %vm1543, %v1546, %v1549
          %v1551 = vsel %vm1540, nan, %v1550
          %v1552 = vmul.f32 %v1326, %v1447
          %v1553 = vmul.f32 %v1331, %v1551
          %vm1554 = vcmask 48128
          %1555 = vst.msk [vmem:[#allocation2] sm:$0xff] %vm1554, %v1333
          %vm1556 = vcmask 44032
          %1557 = vst.msk [vmem:[#allocation2 + $0x8] sm:$0xf] %vm1556, %v1334
          %v1558 = vld [vmem:[%s8] sm:$0xf]
          %v1559 = vld [vmem:[%s8 + $0x4] sm:$0x3]
          %v1560 = vpack.c.bf16 %v1553, %v1552
          %v1563 = vunpack.c.l.b16 %v1558
          %v1564 = vunpack.c.l.b16 %v1559
          %v1565 = vpack.c.b16 %v1564, %v1563
          %vm1566 = vcmask 97280
          %v1568 = vsel %vm1566, %v1565, 0
          %vm1570 = vcmask 1045504
          %v1572 = vsel %vm1570, %v1560, 0
          %1574 = vmatprep.subr.bf16.mxu0 0
          %1575 = vmatpush1.bf16.msra.mxu0 %v1572
          %1576 = vmatprep.subr.bf16.mxu0 0
          %1577 = vmatpush1.bf16.msra.mxu0 0
          %1578 = vmatprep.subr.bf16.mxu0 0
          %1579 = vmatpush1.bf16.msra.mxu0 0
          %1580 = vmatprep.subr.bf16.mxu0 0
          %1581 = vmatpush1.bf16.msra.mxu0 0
          %1582 = vmatprep.subr.bf16.mxu0 0
          %1583 = vmatpush1.bf16.msra.mxu0 0
          %1584 = vmatprep.subr.bf16.mxu0 0
          %1585 = vmatpush1.bf16.msra.mxu0 0
          %1586 = vmatprep.subr.bf16.mxu0 0
          %1587 = vmatpush1.bf16.msra.mxu0 0
          %1588 = vmatprep.subr.bf16.mxu0 0
          %1589 = vmatpush1.bf16.msra.mxu0 0
          %1590 = vmatprep.subr.bf16.mxu0 0
          %1591 = vmatpush1.bf16.msra.mxu0 0
          %1592 = vmatprep.subr.bf16.mxu0 0
          %1593 = vmatpush1.bf16.msra.mxu0 0
          %1594 = vmatprep.subr.bf16.mxu0 0
          %1595 = vmatpush1.bf16.msra.mxu0 0
          %1596 = vmatprep.subr.bf16.mxu0 0
          %1597 = vmatpush1.bf16.msra.mxu0 0
          %1598 = vmatprep.subr.bf16.mxu0 0
          %1599 = vmatpush1.bf16.msra.mxu0 0
          %1600 = vmatprep.subr.bf16.mxu0 0
          %1601 = vmatpush1.bf16.msra.mxu0 0
          %1602 = vmatprep.subr.bf16.mxu0 0
          %1603 = vmatpush1.bf16.msra.mxu0 0
          %1604 = vmatprep.subr.bf16.mxu0 0
          %1605 = vmatpush1.bf16.msra.mxu0 0
          %1606 = vmatprep.mubr.bf16.mxu0 0
          %1607 = vmatmul.mubr.bf16.gmra.mrb[0].mxu0 %v1568
          %v1608 = vpop.f32.mrb[0].mxu0
          %v1609 = vadd.f32 0.0, %v1608
          %v1610 = vpop.f32.mrb[0].mxu0
          %v1611 = vpop.f32.mrb[0].mxu0
          %v1612 = vadd.f32 0.0, %v1611
          %v1613 = vpop.f32.mrb[0].mxu0
          %1614 = vdwg.mxu0
          %v1615 = vld [vmem:[%s9] sm:$0xff]
          %v1616 = vld [vmem:[%s9 + $0x8] sm:$0xf]
          %v1617 = vmul.f32 %v1609, %v1615
          %v1618 = vmul.f32 %v1612, %v1616
          %vm1619 = vcmask 195584
          %1620 = vst.msk [vmem:[#allocation3] sm:$0xff] %vm1619, %v1617
          %vm1621 = vcmask 191488
          %1622 = vst.msk [vmem:[#allocation3 + $0x8] sm:$0xf] %vm1621, %v1618
          %v1623 = vld [vmem:[%s4] sm:$0x7]
          %v1624 = vpack.c.bf16 %v1334, %v1333
          %v1625 = vld [vmem:[%s5] sm:$0x1]
          %v1627 = vlaneseq
          %v1628 = vshrl.u32 %v1627, 7
          %v1629 = vsub.s32 0, %v1628
          %v1630 = vrot.slane %v1625, %v1629
          %v1633 = vsel %vm1554, %v1624, 0
          %vm1635 = vcmask 1042432
          %v1637 = vsel %vm1635, %v1623, 0
          %1639 = vmatprep.subr.bf16.mxu0 0
          %1640 = vmatpush1.bf16.msra.mxu0 %v1637
          %1641 = vmatprep.subr.bf16.mxu0 0
          %1642 = vmatpush1.bf16.msra.mxu0 0
          %1643 = vmatprep.subr.bf16.mxu0 0
          %1644 = vmatpush1.bf16.msra.mxu0 0
          %1645 = vmatprep.subr.bf16.mxu0 0
          %1646 = vmatpush1.bf16.msra.mxu0 0
          %1647 = vmatprep.subr.bf16.mxu0 0
          %1648 = vmatpush1.bf16.msra.mxu0 0
          %1649 = vmatprep.subr.bf16.mxu0 0
          %1650 = vmatpush1.bf16.msra.mxu0 0
          %1651 = vmatprep.subr.bf16.mxu0 0
          %1652 = vmatpush1.bf16.msra.mxu0 0
          %1653 = vmatprep.subr.bf16.mxu0 0
          %1654 = vmatpush1.bf16.msra.mxu0 0
          %1655 = vmatprep.subr.bf16.mxu0 0
          %1656 = vmatpush1.bf16.msra.mxu0 0
          %1657 = vmatprep.subr.bf16.mxu0 0
          %1658 = vmatpush1.bf16.msra.mxu0 0
          %1659 = vmatprep.subr.bf16.mxu0 0
          %1660 = vmatpush1.bf16.msra.mxu0 0
          %1661 = vmatprep.subr.bf16.mxu0 0
          %1662 = vmatpush1.bf16.msra.mxu0 0
          %1663 = vmatprep.subr.bf16.mxu0 0
          %1664 = vmatpush1.bf16.msra.mxu0 0
          %1665 = vmatprep.subr.bf16.mxu0 0
          %1666 = vmatpush1.bf16.msra.mxu0 0
          %1667 = vmatprep.subr.bf16.mxu0 0
          %1668 = vmatpush1.bf16.msra.mxu0 0
          %1669 = vmatprep.subr.bf16.mxu0 0
          %1670 = vmatpush1.bf16.msra.mxu0 0
          %1671 = vmatprep.mubr.bf16.mxu0 0
          %1672 = vmatmul.mubr.bf16.gmra.mrb[0].mxu0 %v1633
          %v1673 = vpop.f32.mrb[0].mxu0
          %v1674 = vadd.f32 %v1630, %v1673
          %v1675 = vpop.f32.mrb[0].mxu0
          %v1676 = vpop.f32.mrb[0].mxu0
          %v1677 = vadd.f32 %v1630, %v1676
          %v1678 = vpop.f32.mrb[0].mxu0
          %1679 = vdwg.mxu0
          %v1680 = vxor.u32 %v1674, 2147483648
          %v1681 = vxor.u32 %v1677, 2147483648
          %v1682 = vmul.f32 %v1680, 1.442695
          %v1683 = vpow.pop %v1682
          %v1684 = vmul.f32 %v1681, 1.442695
          %v1685 = vpow.pop %v1684
          %v1686 = vadd.f32 %v1683, 1.0
          %v1687 = vadd.f32 %v1685, 1.0
          %v1688 = vrcp.pop %v1686
          %v1689 = vmul.f32 1.0, %v1688
          %v1690 = vrcp.pop %v1687
          %v1691 = vmul.f32 1.0, %v1690
          %v1692 = vmul.f32 %v1674, %v1689
          %v1693 = vmul.f32 %v1677, %v1691
          %v1694 = vld [vmem:[%s3] sm:$0xf]
          %v1695 = vld [vmem:[%s3 + $0x4] sm:$0x3]
          %v1696 = vpack.c.bf16 %v1693, %v1692
          %v1699 = vunpack.c.l.b16 %v1694
          %v1700 = vunpack.c.l.b16 %v1695
          %v1701 = vpack.c.b16 %v1700, %v1699
          %1703 = vrot.lane.b32.xlu0 %v1696, 64
          %v1704 = vpop.permute.xlu0 %1703
          %vm1705 = vcmask 523264
          %v1708 = vsel %vm1705, %v1701, %v1704
          %v1709 = vld [vmem:[%s6] sm:$0xf]
          %v1710 = vld [vmem:[%s6 + $0x4] sm:$0xf]
          %v1711 = vld [vmem:[%s6 + $0x8] sm:$0xf]
          %v1712 = vld [vmem:[%s6 + $0xc] sm:$0xf]
          %v1713 = vld [vmem:[%s6 + $0x10] sm:$0xf]
          %v1714 = vld [vmem:[%s6 + $0x14] sm:$0xf]
          %v1715 = vld [vmem:[%s6 + $0x18] sm:$0xf]
          %v1716 = vld [vmem:[%s6 + $0x1c] sm:$0xf]
          %v1717 = vld [vmem:[%s6 + $0x20] sm:$0xf]
          %v1718 = vld [vmem:[%s6 + $0x24] sm:$0xf]
          %v1719 = vld [vmem:[%s6 + $0x28] sm:$0xf]
          %v1720 = vld [vmem:[%s6 + $0x2c] sm:$0xf]
          %v1721 = vld [vmem:[%s7] sm:$0x1]
          %v1723 = vlaneseq
          %v1724 = vshrl.u32 %v1723, 7
          %v1725 = vsub.s32 0, %v1724
          %v1726 = vrot.slane %v1721, %v1725
          %v1740 = vunpack.c.l.b16 %v1709
          %v1741 = vunpack.c.l.b16 %v1710
          %v1742 = vunpack.c.l.b16 %v1711
          %v1743 = vunpack.c.l.b16 %v1712
          %v1744 = vunpack.c.l.b16 %v1713
          %v1745 = vunpack.c.l.b16 %v1714
          %v1746 = vunpack.c.l.b16 %v1715
          %v1747 = vunpack.c.l.b16 %v1716
          %v1748 = vunpack.c.l.b16 %v1717
          %v1749 = vunpack.c.l.b16 %v1718
          %v1750 = vunpack.c.l.b16 %v1719
          %v1751 = vunpack.c.l.b16 %v1720
          %v1752 = vpack.c.b16 %v1741, %v1740
          %v1753 = vpack.c.b16 %v1743, %v1742
          %v1754 = vpack.c.b16 %v1745, %v1744
          %v1755 = vpack.c.b16 %v1747, %v1746
          %v1756 = vpack.c.b16 %v1749, %v1748
          %v1757 = vpack.c.b16 %v1751, %v1750
          %vm1764 = vcmask 785408
          %v1765 = vsel %vm1764, %v1708, 0
          %1767 = vmatprep.subr.bf16.mxu0 0
          %1768 = vmatpush1.bf16.msra.mxu0 %v1752
          %1769 = vmatprep.subr.bf16.mxu0 0
          %1770 = vmatpush1.bf16.msra.mxu0 %v1753
          %1771 = vmatprep.subr.bf16.mxu0 0
          %1772 = vmatpush1.bf16.msra.mxu0 %v1754
          %1773 = vmatprep.subr.bf16.mxu0 0
          %1774 = vmatpush1.bf16.msra.mxu0 %v1755
          %1775 = vmatprep.subr.bf16.mxu0 0
          %1776 = vmatpush1.bf16.msra.mxu0 %v1756
          %1777 = vmatprep.subr.bf16.mxu0 0
          %1778 = vmatpush1.bf16.msra.mxu0 %v1757
          %1779 = vmatprep.subr.bf16.mxu0 0
          %1780 = vmatpush1.bf16.msra.mxu0 0
          %1781 = vmatprep.subr.bf16.mxu0 0
          %1782 = vmatpush1.bf16.msra.mxu0 0
          %1783 = vmatprep.subr.bf16.mxu0 0
          %1784 = vmatpush1.bf16.msra.mxu0 0
          %1785 = vmatprep.subr.bf16.mxu0 0
          %1786 = vmatpush1.bf16.msra.mxu0 0
          %1787 = vmatprep.subr.bf16.mxu0 0
          %1788 = vmatpush1.bf16.msra.mxu0 0
          %1789 = vmatprep.subr.bf16.mxu0 0
          %1790 = vmatpush1.bf16.msra.mxu0 0
          %1791 = vmatprep.subr.bf16.mxu0 0
          %1792 = vmatpush1.bf16.msra.mxu0 0
          %1793 = vmatprep.subr.bf16.mxu0 0
          %1794 = vmatpush1.bf16.msra.mxu0 0
          %1795 = vmatprep.subr.bf16.mxu0 0
          %1796 = vmatpush1.bf16.msra.mxu0 0
          %1797 = vmatprep.subr.bf16.mxu0 0
          %1798 = vmatpush1.bf16.msra.mxu0 0
          %1799 = vmatprep.mubr.bf16.mxu0 0
          %1800 = vmatmul.mubr.bf16.gmra.mrb[0].mxu0 %v1765
          %v1801 = vpop.f32.mrb[0].mxu0
          %v1802 = vadd.f32 %v1726, %v1801
          %v1803 = vpop.f32.mrb[0].mxu0
          %v1804 = vpop.f32.mrb[0].mxu0
          %v1805 = vadd.f32 %v1726, %v1804
          %v1806 = vpop.f32.mrb[0].mxu0
          %1807 = vdwg.mxu0
          %v1808 = vxor.u32 %v1802, 2147483648
          %v1809 = vxor.u32 %v1805, 2147483648
          %v1810 = vmul.f32 %v1808, 1.442695
          %v1811 = vpow.pop %v1810
          %v1812 = vmul.f32 %v1809, 1.442695
          %v1813 = vpow.pop %v1812
          %v1814 = vadd.f32 %v1811, 1.0
          %v1815 = vadd.f32 %v1813, 1.0
          %v1816 = vrcp.pop %v1814
          %v1817 = vmul.f32 1.0, %v1816
          %v1818 = vrcp.pop %v1815
          %v1819 = vmul.f32 1.0, %v1818
          %v1820 = vmul.f32 %v1802, %v1817
          %v1821 = vmul.f32 %v1805, %v1819
          %vm1822 = vcmask 261120
          %1823 = vst.msk [vmem:[#allocation4] sm:$0xff] %vm1822, %v1820
          %vm1824 = vcmask 257024
          %1825 = vst.msk [vmem:[#allocation4 + $0x8] sm:$0xf] %vm1824, %v1821
          %vm1826 = vcmask 90112
          %1827 = vst.msk [vmem:[#allocation5] sm:$0x1] %vm1826, 0.0
        $region132: #{dimenet_forward.1} parent=127 // pred_fallthru
          _
        %p1828 = scmp.gt.s32.totalorder %s39, 0
        // Predicated region
        $region133: #{dimenet_forward.1} parent=127 // pred_check
          %p1829 = pneg %p1828
        $region134: #{dimenet_forward.1} parent=127 // pred_check_branch
          %1831 = sbr.rel (%p1829) target = $region136
        $region135: #{dimenet_forward.1} parent=127 // pred_region
          %v1832 = vld [vmem:[#allocation4] sm:$0xff]
          %v1833 = vld [vmem:[#allocation4 + $0x8] sm:$0xf]
          %v1834 = vld [vmem:[#allocation2] sm:$0xff]
          %v1835 = vld [vmem:[#allocation2 + $0x8] sm:$0xf]
          %v1836 = vld [vmem:[#allocation3] sm:$0xff]
          %v1837 = vld [vmem:[#allocation3 + $0x8] sm:$0xf]
          %v1838 = vld [vmem:[%s993] sm:$0x7]
          %v1839 = vpack.c.bf16 %v1835, %v1834
          %vm1840 = vcmask 48128
          %v1842 = vsel %vm1840, %v1839, 0
          %vm1844 = vcmask 1042432
          %v1846 = vsel %vm1844, %v1838, 0
          %1848 = vmatprep.subr.bf16.mxu0 0
          %1849 = vmatpush1.bf16.msra.mxu0 %v1846
          %1850 = vmatprep.subr.bf16.mxu0 0
          %1851 = vmatpush1.bf16.msra.mxu0 0
          %1852 = vmatprep.subr.bf16.mxu0 0
          %1853 = vmatpush1.bf16.msra.mxu0 0
          %1854 = vmatprep.subr.bf16.mxu0 0
          %1855 = vmatpush1.bf16.msra.mxu0 0
          %1856 = vmatprep.subr.bf16.mxu0 0
          %1857 = vmatpush1.bf16.msra.mxu0 0
          %1858 = vmatprep.subr.bf16.mxu0 0
          %1859 = vmatpush1.bf16.msra.mxu0 0
          %1860 = vmatprep.subr.bf16.mxu0 0
          %1861 = vmatpush1.bf16.msra.mxu0 0
          %1862 = vmatprep.subr.bf16.mxu0 0
          %1863 = vmatpush1.bf16.msra.mxu0 0
          %1864 = vmatprep.subr.bf16.mxu0 0
          %1865 = vmatpush1.bf16.msra.mxu0 0
          %1866 = vmatprep.subr.bf16.mxu0 0
          %1867 = vmatpush1.bf16.msra.mxu0 0
          %1868 = vmatprep.subr.bf16.mxu0 0
          %1869 = vmatpush1.bf16.msra.mxu0 0
          %1870 = vmatprep.subr.bf16.mxu0 0
          %1871 = vmatpush1.bf16.msra.mxu0 0
          %1872 = vmatprep.subr.bf16.mxu0 0
          %1873 = vmatpush1.bf16.msra.mxu0 0
          %1874 = vmatprep.subr.bf16.mxu0 0
          %1875 = vmatpush1.bf16.msra.mxu0 0
          %1876 = vmatprep.subr.bf16.mxu0 0
          %1877 = vmatpush1.bf16.msra.mxu0 0
          %1878 = vmatprep.subr.bf16.mxu0 0
          %1879 = vmatpush1.bf16.msra.mxu0 0
          %1880 = vmatprep.mubr.bf16.mxu0 0
          %1881 = vmatmul.mubr.bf16.gmra.mrb[0].mxu0 %v1842
          %v1882 = vpop.f32.mrb[0].mxu0
          %v1883 = vadd.f32 0.0, %v1882
          %v1884 = vpop.f32.mrb[0].mxu0
          %v1885 = vpop.f32.mrb[0].mxu0
          %v1886 = vadd.f32 0.0, %v1885
          %v1887 = vpop.f32.mrb[0].mxu0
          %1888 = vdwg.mxu0
          %v1889 = vld [vmem:[%s998] sm:$0xf]
          %v1890 = vld [vmem:[%s998 + $0x4] sm:$0xf]
          %v1891 = vld [vmem:[%s998 + $0x8] sm:$0xf]
          %v1892 = vpack.c.bf16 %v1837, %v1836
          %v1896 = vunpack.c.l.b16 %v1889
          %v1897 = vunpack.c.l.b16 %v1890
          %v1898 = vunpack.c.l.b16 %v1891
          %v1899 = vpack.c.b16 %v1897, %v1896
          %v1900 = vpack.c.b16 %v1898, %v1898
          %vm1902 = vcmask 195584
          %v1904 = vsel %vm1902, %v1892, 0
          %vm1906 = vcmask 1043456
          %v1908 = vsel %vm1906, %v1900, 0
          %1910 = vmatprep.subr.bf16.mxu0 0
          %1911 = vmatpush1.bf16.msra.mxu0 %v1899
          %1912 = vmatprep.subr.bf16.mxu0 0
          %1913 = vmatpush1.bf16.msra.mxu0 %v1908
          %1914 = vmatprep.subr.bf16.mxu0 0
          %1915 = vmatpush1.bf16.msra.mxu0 0
          %1916 = vmatprep.subr.bf16.mxu0 0
          %1917 = vmatpush1.bf16.msra.mxu0 0
          %1918 = vmatprep.subr.bf16.mxu0 0
          %1919 = vmatpush1.bf16.msra.mxu0 0
          %1920 = vmatprep.subr.bf16.mxu0 0
          %1921 = vmatpush1.bf16.msra.mxu0 0
          %1922 = vmatprep.subr.bf16.mxu0 0
          %1923 = vmatpush1.bf16.msra.mxu0 0
          %1924 = vmatprep.subr.bf16.mxu0 0
          %1925 = vmatpush1.bf16.msra.mxu0 0
          %1926 = vmatprep.subr.bf16.mxu0 0
          %1927 = vmatpush1.bf16.msra.mxu0 0
          %1928 = vmatprep.subr.bf16.mxu0 0
          %1929 = vmatpush1.bf16.msra.mxu0 0
          %1930 = vmatprep.subr.bf16.mxu0 0
          %1931 = vmatpush1.bf16.msra.mxu0 0
          %1932 = vmatprep.subr.bf16.mxu0 0
          %1933 = vmatpush1.bf16.msra.mxu0 0
          %1934 = vmatprep.subr.bf16.mxu0 0
          %1935 = vmatpush1.bf16.msra.mxu0 0
          %1936 = vmatprep.subr.bf16.mxu0 0
          %1937 = vmatpush1.bf16.msra.mxu0 0
          %1938 = vmatprep.subr.bf16.mxu0 0
          %1939 = vmatpush1.bf16.msra.mxu0 0
          %1940 = vmatprep.subr.bf16.mxu0 0
          %1941 = vmatpush1.bf16.msra.mxu0 0
          %1942 = vmatprep.mubr.bf16.mxu0 0
          %1943 = vmatmul.mubr.bf16.gmra.mrb[0].mxu0 %v1904
          %v1944 = vpop.f32.mrb[0].mxu0
          %v1945 = vadd.f32 0.0, %v1944
          %v1946 = vpop.f32.mrb[0].mxu0
          %v1947 = vpop.f32.mrb[0].mxu0
          %v1948 = vadd.f32 0.0, %v1947
          %v1949 = vpop.f32.mrb[0].mxu0
          %1950 = vdwg.mxu0
          %v1951 = vld [vmem:[%s1003] sm:$0xf]
          %v1952 = vld [vmem:[%s1003 + $0x4] sm:$0xf]
          %v1953 = vld [vmem:[%s1003 + $0x8] sm:$0xf]
          %v1954 = vld [vmem:[%s1003 + $0xc] sm:$0xf]
          %v1955 = vpack.c.bf16 %v1833, %v1832
          %v1956 = vld [vmem:[%s1006] sm:$0x1]
          %v1958 = vlaneseq
          %v1959 = vshrl.u32 %v1958, 7
          %v1960 = vsub.s32 0, %v1959
          %v1961 = vrot.slane %v1956, %v1960
          %v1967 = vunpack.c.l.b16 %v1951
          %v1968 = vunpack.c.l.b16 %v1952
          %v1969 = vunpack.c.l.b16 %v1953
          %v1970 = vunpack.c.l.b16 %v1954
          %v1971 = vpack.c.b16 %v1968, %v1967
          %v1972 = vpack.c.b16 %v1970, %v1969
          %vm1975 = vcmask 261120
          %v1977 = vsel %vm1975, %v1955, 0
          %1979 = vmatprep.subr.bf16.mxu0 0
          %1980 = vmatpush1.bf16.msra.mxu0 %v1971
          %1981 = vmatprep.subr.bf16.mxu0 0
          %1982 = vmatpush1.bf16.msra.mxu0 %v1972
          %1983 = vmatprep.subr.bf16.mxu0 0
          %1984 = vmatpush1.bf16.msra.mxu0 0
          %1985 = vmatprep.subr.bf16.mxu0 0
          %1986 = vmatpush1.bf16.msra.mxu0 0
          %1987 = vmatprep.subr.bf16.mxu0 0
          %1988 = vmatpush1.bf16.msra.mxu0 0
          %1989 = vmatprep.subr.bf16.mxu0 0
          %1990 = vmatpush1.bf16.msra.mxu0 0
          %1991 = vmatprep.subr.bf16.mxu0 0
          %1992 = vmatpush1.bf16.msra.mxu0 0
          %1993 = vmatprep.subr.bf16.mxu0 0
          %1994 = vmatpush1.bf16.msra.mxu0 0
          %1995 = vmatprep.subr.bf16.mxu0 0
          %1996 = vmatpush1.bf16.msra.mxu0 0
          %1997 = vmatprep.subr.bf16.mxu0 0
          %1998 = vmatpush1.bf16.msra.mxu0 0
          %1999 = vmatprep.subr.bf16.mxu0 0
          %2000 = vmatpush1.bf16.msra.mxu0 0
          %2001 = vmatprep.subr.bf16.mxu0 0
          %2002 = vmatpush1.bf16.msra.mxu0 0
          %2003 = vmatprep.subr.bf16.mxu0 0
          %2004 = vmatpush1.bf16.msra.mxu0 0
          %2005 = vmatprep.subr.bf16.mxu0 0
          %2006 = vmatpush1.bf16.msra.mxu0 0
          %2007 = vmatprep.subr.bf16.mxu0 0
          %2008 = vmatpush1.bf16.msra.mxu0 0
          %2009 = vmatprep.subr.bf16.mxu0 0
          %2010 = vmatpush1.bf16.msra.mxu0 0
          %2011 = vmatprep.mubr.bf16.mxu0 0
          %2012 = vmatmul.mubr.bf16.gmra.mrb[0].mxu0 %v1977
          %v2013 = vpop.f32.mrb[0].mxu0
          %v2014 = vadd.f32 %v1961, %v2013
          %v2015 = vpop.f32.mrb[0].mxu0
          %v2016 = vpop.f32.mrb[0].mxu0
          %v2017 = vadd.f32 %v1961, %v2016
          %v2018 = vpop.f32.mrb[0].mxu0
          %2019 = vdwg.mxu0
          %v2020 = vxor.u32 %v2014, 2147483648
          %v2021 = vxor.u32 %v2017, 2147483648
          %v2022 = vmul.f32 %v2020, 1.442695
          %v2023 = vpow.pop %v2022
          %v2024 = vmul.f32 %v2021, 1.442695
          %v2025 = vpow.pop %v2024
          %v2026 = vadd.f32 %v2023, 1.0
          %v2027 = vadd.f32 %v2025, 1.0
          %v2028 = vrcp.pop %v2026
          %v2029 = vmul.f32 1.0, %v2028
          %v2030 = vrcp.pop %v2027
          %v2031 = vmul.f32 1.0, %v2030
          %v2032 = vmul.f32 %v2014, %v2029
          %v2033 = vmul.f32 %v2017, %v2031
          %v2034 = vld [vmem:[%s1011] sm:$0xf]
          %v2035 = vld [vmem:[%s1011 + $0x4] sm:$0xf]
          %v2036 = vld [vmem:[%s1011 + $0x8] sm:$0xf]
          %v2037 = vld [vmem:[%s1011 + $0xc] sm:$0xf]
          %v2038 = vld [vmem:[%s1014] sm:$0x1]
          %v2040 = vlaneseq
          %v2041 = vshrl.u32 %v2040, 7
          %v2042 = vsub.s32 0, %v2041
          %v2043 = vrot.slane %v2038, %v2042
          %v2049 = vunpack.c.l.b16 %v2034
          %v2050 = vunpack.c.l.b16 %v2035
          %v2051 = vunpack.c.l.b16 %v2036
          %v2052 = vunpack.c.l.b16 %v2037
          %v2053 = vpack.c.b16 %v2050, %v2049
          %v2054 = vpack.c.b16 %v2052, %v2051
          %2057 = vmatprep.subr.bf16.mxu0 0
          %2058 = vmatpush1.bf16.msra.mxu0 %v2053
          %2059 = vmatprep.subr.bf16.mxu0 0
          %2060 = vmatpush1.bf16.msra.mxu0 %v2054
          %2061 = vmatprep.subr.bf16.mxu0 0
          %2062 = vmatpush1.bf16.msra.mxu0 0
          %2063 = vmatprep.subr.bf16.mxu0 0
          %2064 = vmatpush1.bf16.msra.mxu0 0
          %2065 = vmatprep.subr.bf16.mxu0 0
          %2066 = vmatpush1.bf16.msra.mxu0 0
          %2067 = vmatprep.subr.bf16.mxu0 0
          %2068 = vmatpush1.bf16.msra.mxu0 0
          %2069 = vmatprep.subr.bf16.mxu0 0
          %2070 = vmatpush1.bf16.msra.mxu0 0
          %2071 = vmatprep.subr.bf16.mxu0 0
          %2072 = vmatpush1.bf16.msra.mxu0 0
          %2073 = vmatprep.subr.bf16.mxu0 0
          %2074 = vmatpush1.bf16.msra.mxu0 0
          %2075 = vmatprep.subr.bf16.mxu0 0
          %2076 = vmatpush1.bf16.msra.mxu0 0
          %2077 = vmatprep.subr.bf16.mxu0 0
          %2078 = vmatpush1.bf16.msra.mxu0 0
          %2079 = vmatprep.subr.bf16.mxu0 0
          %2080 = vmatpush1.bf16.msra.mxu0 0
          %2081 = vmatprep.subr.bf16.mxu0 0
          %2082 = vmatpush1.bf16.msra.mxu0 0
          %2083 = vmatprep.subr.bf16.mxu0 0
          %2084 = vmatpush1.bf16.msra.mxu0 0
          %2085 = vmatprep.subr.bf16.mxu0 0
          %2086 = vmatpush1.bf16.msra.mxu0 0
          %2087 = vmatprep.subr.bf16.mxu0 0
          %2088 = vmatpush1.bf16.msra.mxu0 0
          %2089 = vmatprep.mubr.bf16.mxu0 0
          %2090 = vmatmul.mubr.bf16.gmra.mrb[0].mxu0 %v1977
          %v2091 = vpop.f32.mrb[0].mxu0
          %v2092 = vadd.f32 %v2043, %v2091
          %v2093 = vpop.f32.mrb[0].mxu0
          %v2094 = vpop.f32.mrb[0].mxu0
          %v2095 = vadd.f32 %v2043, %v2094
          %v2096 = vpop.f32.mrb[0].mxu0
          %2097 = vdwg.mxu0
          %v2098 = vxor.u32 %v2092, 2147483648
          %v2099 = vxor.u32 %v2095, 2147483648
          %v2100 = vmul.f32 %v2098, 1.442695
          %v2101 = vpow.pop %v2100
          %v2102 = vmul.f32 %v2099, 1.442695
          %v2103 = vpow.pop %v2102
          %v2104 = vadd.f32 %v2101, 1.0
          %v2105 = vadd.f32 %v2103, 1.0
          %v2106 = vrcp.pop %v2104
          %v2107 = vmul.f32 1.0, %v2106
          %v2108 = vrcp.pop %v2105
          %v2109 = vmul.f32 1.0, %v2108
          %v2110 = vmul.f32 %v2092, %v2107
          %v2111 = vmul.f32 %v2095, %v2109
          %v2112 = vld [vmem:[%s8] sm:$0xf]
          %v2113 = vld [vmem:[%s8 + $0x4] sm:$0x3]
          %v2114 = vmul.f32 %v2110, %v1883
          %v2115 = vmul.f32 %v2111, %v1886
          %v2116 = vpack.c.bf16 %v2115, %v2114
          %v2119 = vunpack.c.l.b16 %v2112
          %v2120 = vunpack.c.l.b16 %v2113
          %v2121 = vpack.c.b16 %v2120, %v2119
          %vm2122 = vcmask 97280
          %v2124 = vsel %vm2122, %v2121, 0
          %vm2126 = vcmask 1045504
          %v2128 = vsel %vm2126, %v2116, 0
          %2130 = vmatprep.subr.bf16.mxu0 0
          %2131 = vmatpush1.bf16.msra.mxu0 %v2128
          %2132 = vmatprep.subr.bf16.mxu0 0
          %2133 = vmatpush1.bf16.msra.mxu0 0
          %2134 = vmatprep.subr.bf16.mxu0 0
          %2135 = vmatpush1.bf16.msra.mxu0 0
          %2136 = vmatprep.subr.bf16.mxu0 0
          %2137 = vmatpush1.bf16.msra.mxu0 0
          %2138 = vmatprep.subr.bf16.mxu0 0
          %2139 = vmatpush1.bf16.msra.mxu0 0
          %2140 = vmatprep.subr.bf16.mxu0 0
          %2141 = vmatpush1.bf16.msra.mxu0 0
          %2142 = vmatprep.subr.bf16.mxu0 0
          %2143 = vmatpush1.bf16.msra.mxu0 0
          %2144 = vmatprep.subr.bf16.mxu0 0
          %2145 = vmatpush1.bf16.msra.mxu0 0
          %2146 = vmatprep.subr.bf16.mxu0 0
          %2147 = vmatpush1.bf16.msra.mxu0 0
          %2148 = vmatprep.subr.bf16.mxu0 0
          %2149 = vmatpush1.bf16.msra.mxu0 0
          %2150 = vmatprep.subr.bf16.mxu0 0
          %2151 = vmatpush1.bf16.msra.mxu0 0
          %2152 = vmatprep.subr.bf16.mxu0 0
          %2153 = vmatpush1.bf16.msra.mxu0 0
          %2154 = vmatprep.subr.bf16.mxu0 0
          %2155 = vmatpush1.bf16.msra.mxu0 0
          %2156 = vmatprep.subr.bf16.mxu0 0
          %2157 = vmatpush1.bf16.msra.mxu0 0
          %2158 = vmatprep.subr.bf16.mxu0 0
          %2159 = vmatpush1.bf16.msra.mxu0 0
          %2160 = vmatprep.subr.bf16.mxu0 0
          %2161 = vmatpush1.bf16.msra.mxu0 0
          %2162 = vmatprep.mubr.bf16.mxu0 0
          %2163 = vmatmul.mubr.bf16.gmra.mrb[0].mxu0 %v2124
          %v2164 = vpop.f32.mrb[0].mxu0
          %v2165 = vadd.f32 0.0, %v2164
          %v2166 = vpop.f32.mrb[0].mxu0
          %v2167 = vpop.f32.mrb[0].mxu0
          %v2168 = vadd.f32 0.0, %v2167
          %v2169 = vpop.f32.mrb[0].mxu0
          %2170 = vdwg.mxu0
          %2172 = vset.pattern.permute.xlu0 0
          %2173 = vperm.xlu0 %2172, %v1945
          %v2174 = vpop.permute.xlu0 %2173
          %2177 = vset.pattern.permute.xlu0 0
          %2178 = vperm.xlu0 %2177, %v1948
          %v2179 = vpop.permute.xlu0 %2178
          %v2181 = vmul.f32 %v2174, %v2165
          %v2182 = vmul.f32 %v2179, %v2168
          %2183 = vset.pattern.permute.xlu0 1
          %2184 = vperm.xlu0 %2183, %v1945
          %v2185 = vpop.permute.xlu0 %2184
          %2187 = vset.pattern.permute.xlu0 1
          %2188 = vperm.xlu0 %2187, %v1948
          %v2189 = vpop.permute.xlu0 %2188
          %v2191 = vmul.f32 %v2185, %v2165
          %v2192 = vmul.f32 %v2189, %v2168
          %2193 = vset.pattern.permute.xlu0 2
          %2194 = vperm.xlu0 %2193, %v1945
          %v2195 = vpop.permute.xlu0 %2194
          %2197 = vset.pattern.permute.xlu0 2
          %2198 = vperm.xlu0 %2197, %v1948
          %v2199 = vpop.permute.xlu0 %2198
          %v2201 = vmul.f32 %v2195, %v2165
          %v2202 = vmul.f32 %v2199, %v2168
          %2203 = vset.pattern.permute.xlu0 3
          %2204 = vperm.xlu0 %2203, %v1945
          %v2205 = vpop.permute.xlu0 %2204
          %2207 = vset.pattern.permute.xlu0 3
          %2208 = vperm.xlu0 %2207, %v1948
          %v2209 = vpop.permute.xlu0 %2208
          %v2211 = vmul.f32 %v2205, %v2165
          %v2212 = vmul.f32 %v2209, %v2168
          %2213 = vset.pattern.permute.xlu0 4
          %2214 = vperm.xlu0 %2213, %v1945
          %v2215 = vpop.permute.xlu0 %2214
          %2217 = vset.pattern.permute.xlu0 4
          %2218 = vperm.xlu0 %2217, %v1948
          %v2219 = vpop.permute.xlu0 %2218
          %v2221 = vmul.f32 %v2215, %v2165
          %v2222 = vmul.f32 %v2219, %v2168
          %2223 = vset.pattern.permute.xlu0 5
          %2224 = vperm.xlu0 %2223, %v1945
          %v2225 = vpop.permute.xlu0 %2224
          %2227 = vset.pattern.permute.xlu0 5
          %2228 = vperm.xlu0 %2227, %v1948
          %v2229 = vpop.permute.xlu0 %2228
          %v2231 = vmul.f32 %v2225, %v2165
          %v2232 = vmul.f32 %v2229, %v2168
          %2233 = vset.pattern.permute.xlu0 6
          %2234 = vperm.xlu0 %2233, %v1945
          %v2235 = vpop.permute.xlu0 %2234
          %2237 = vset.pattern.permute.xlu0 6
          %2238 = vperm.xlu0 %2237, %v1948
          %v2239 = vpop.permute.xlu0 %2238
          %v2241 = vmul.f32 %v2235, %v2165
          %v2242 = vmul.f32 %v2239, %v2168
          %2243 = vset.pattern.permute.xlu0 7
          %2244 = vperm.xlu0 %2243, %v1945
          %v2245 = vpop.permute.xlu0 %2244
          %2247 = vset.pattern.permute.xlu0 7
          %2248 = vperm.xlu0 %2247, %v1948
          %v2249 = vpop.permute.xlu0 %2248
          %v2251 = vmul.f32 %v2245, %v2165
          %v2252 = vmul.f32 %v2249, %v2168
          %2255 = vrot.lane.b32.xlu0 %v2191, 32
          %v2256 = vpop.permute.xlu0 %2255
          %2257 = vrot.lane.b32.xlu0 %v2192, 32
          %v2258 = vpop.permute.xlu0 %2257
          %2263 = vrot.lane.b32.xlu0 %v2201, 64
          %v2264 = vpop.permute.xlu0 %2263
          %2265 = vrot.lane.b32.xlu0 %v2202, 64
          %v2266 = vpop.permute.xlu0 %2265
          %2271 = vrot.lane.b32.xlu0 %v2211, 96
          %v2272 = vpop.permute.xlu0 %2271
          %2273 = vrot.lane.b32.xlu0 %v2212, 96
          %v2274 = vpop.permute.xlu0 %2273
          %2279 = vrot.lane.b32.xlu0 %v2231, 32
          %v2280 = vpop.permute.xlu0 %2279
          %2281 = vrot.lane.b32.xlu0 %v2232, 32
          %v2282 = vpop.permute.xlu0 %2281
          %2287 = vrot.lane.b32.xlu0 %v2241, 64
          %v2288 = vpop.permute.xlu0 %2287
          %2289 = vrot.lane.b32.xlu0 %v2242, 64
          %v2290 = vpop.permute.xlu0 %2289
          %2295 = vrot.lane.b32.xlu0 %v2251, 96
          %v2296 = vpop.permute.xlu0 %2295
          %2297 = vrot.lane.b32.xlu0 %v2252, 96
          %v2298 = vpop.permute.xlu0 %2297
          %v2301 = vsel %vm1975, %v2181, %v2256
          %v2302 = vsel %vm1975, %v2182, %v2258
          %vm2303 = vcmask 523264
          %v2304 = vsel %vm2303, %v2301, %v2264
          %v2305 = vsel %vm2303, %v2302, %v2266
          %vm2306 = vcmask 785408
          %v2307 = vsel %vm2306, %v2304, %v2272
          %v2308 = vsel %vm2306, %v2305, %v2274
          %v2309 = vsel %vm1975, %v2221, %v2280
          %v2310 = vsel %vm1975, %v2222, %v2282
          %v2311 = vsel %vm2303, %v2309, %v2288
          %v2312 = vsel %vm2303, %v2310, %v2290
          %v2313 = vsel %vm2306, %v2311, %v2296
          %v2314 = vsel %vm2306, %v2312, %v2298
          %v2315 = vld [vmem:[%s1019] sm:$0xf]
          %v2316 = vld [vmem:[%s1019 + $0x4] sm:$0xf]
          %v2317 = vld [vmem:[%s1019 + $0x8] sm:$0xf]
          %v2318 = vld [vmem:[%s1019 + $0xc] sm:$0xf]
          %v2319 = vld [vmem:[%s1019 + $0x10] sm:$0xf]
          %v2320 = vld [vmem:[%s1019 + $0x14] sm:$0xf]
          %v2321 = vld [vmem:[%s1019 + $0x18] sm:$0xf]
          %v2322 = vld [vmem:[%s1019 + $0x1c] sm:$0xf]
          %v2323 = vld [vmem:[%s1019 + $0x20] sm:$0xf]
          %v2324 = vld [vmem:[%s1019 + $0x24] sm:$0xf]
          %v2325 = vld [vmem:[%s1019 + $0x28] sm:$0xf]
          %v2326 = vld [vmem:[%s1019 + $0x2c] sm:$0xf]
          %v2327 = vld [vmem:[%s1019 + $0x30] sm:$0xf]
          %v2328 = vld [vmem:[%s1019 + $0x34] sm:$0xf]
          %v2329 = vld [vmem:[%s1019 + $0x38] sm:$0xf]
          %v2330 = vld [vmem:[%s1019 + $0x3c] sm:$0xf]
          %v2331 = vld [vmem:[%s1019 + $0x40] sm:$0xf]
          %v2332 = vld [vmem:[%s1019 + $0x44] sm:$0xf]
          %v2333 = vld [vmem:[%s1019 + $0x48] sm:$0xf]
          %v2334 = vld [vmem:[%s1019 + $0x4c] sm:$0xf]
          %v2335 = vld [vmem:[%s1019 + $0x50] sm:$0xf]
          %v2336 = vld [vmem:[%s1019 + $0x54] sm:$0xf]
          %v2337 = vld [vmem:[%s1019 + $0x58] sm:$0xf]
          %v2338 = vld [vmem:[%s1019 + $0x5c] sm:$0xf]
          %v2339 = vld [vmem:[%s1019 + $0x60] sm:$0xf]
          %v2340 = vld [vmem:[%s1019 + $0x64] sm:$0xf]
          %v2341 = vld [vmem:[%s1019 + $0x68] sm:$0xf]
          %v2342 = vld [vmem:[%s1019 + $0x6c] sm:$0xf]
          %v2343 = vld [vmem:[%s1019 + $0x70] sm:$0xf]
          %v2344 = vld [vmem:[%s1019 + $0x74] sm:$0xf]
          %v2345 = vld [vmem:[%s1019 + $0x78] sm:$0xf]
          %v2346 = vld [vmem:[%s1019 + $0x7c] sm:$0xf]
          %v2347 = vpack.c.bf16 %v2308, %v2307
          %v2348 = vpack.c.bf16 %v2314, %v2313
          %v2381 = vunpack.c.l.b16 %v2315
          %v2382 = vunpack.c.l.b16 %v2316
          %v2383 = vunpack.c.l.b16 %v2317
          %v2384 = vunpack.c.l.b16 %v2318
          %v2385 = vunpack.c.l.b16 %v2319
          %v2386 = vunpack.c.l.b16 %v2320
          %v2387 = vunpack.c.l.b16 %v2321
          %v2388 = vunpack.c.l.b16 %v2322
          %v2389 = vunpack.c.l.b16 %v2323
          %v2390 = vunpack.c.l.b16 %v2324
          %v2391 = vunpack.c.l.b16 %v2325
          %v2392 = vunpack.c.l.b16 %v2326
          %v2393 = vunpack.c.l.b16 %v2327
          %v2394 = vunpack.c.l.b16 %v2328
          %v2395 = vunpack.c.l.b16 %v2329
          %v2396 = vunpack.c.l.b16 %v2330
          %v2397 = vunpack.c.l.b16 %v2331
          %v2398 = vunpack.c.l.b16 %v2332
          %v2399 = vunpack.c.l.b16 %v2333
          %v2400 = vunpack.c.l.b16 %v2334
          %v2401 = vunpack.c.l.b16 %v2335
          %v2402 = vunpack.c.l.b16 %v2336
          %v2403 = vunpack.c.l.b16 %v2337
          %v2404 = vunpack.c.l.b16 %v2338
          %v2405 = vunpack.c.l.b16 %v2339
          %v2406 = vunpack.c.l.b16 %v2340
          %v2407 = vunpack.c.l.b16 %v2341
          %v2408 = vunpack.c.l.b16 %v2342
          %v2409 = vunpack.c.l.b16 %v2343
          %v2410 = vunpack.c.l.b16 %v2344
          %v2411 = vunpack.c.l.b16 %v2345
          %v2412 = vunpack.c.l.b16 %v2346
          %v2413 = vpack.c.b16 %v2382, %v2381
          %v2414 = vpack.c.b16 %v2384, %v2383
          %v2415 = vpack.c.b16 %v2386, %v2385
          %v2416 = vpack.c.b16 %v2388, %v2387
          %v2417 = vpack.c.b16 %v2390, %v2389
          %v2418 = vpack.c.b16 %v2392, %v2391
          %v2419 = vpack.c.b16 %v2394, %v2393
          %v2420 = vpack.c.b16 %v2396, %v2395
          %v2421 = vpack.c.b16 %v2398, %v2397
          %v2422 = vpack.c.b16 %v2400, %v2399
          %v2423 = vpack.c.b16 %v2402, %v2401
          %v2424 = vpack.c.b16 %v2404, %v2403
          %v2425 = vpack.c.b16 %v2406, %v2405
          %v2426 = vpack.c.b16 %v2408, %v2407
          %v2427 = vpack.c.b16 %v2410, %v2409
          %v2428 = vpack.c.b16 %v2412, %v2411
          %2445 = vmatprep.subr.bf16.mxu0 0
          %2446 = vmatpush1.bf16.msra.mxu0 %v2413
          %2447 = vmatprep.subr.bf16.mxu0 0
          %2448 = vmatpush1.bf16.msra.mxu0 %v2414
          %2449 = vmatprep.subr.bf16.mxu0 0
          %2450 = vmatpush1.bf16.msra.mxu0 %v2415
          %2451 = vmatprep.subr.bf16.mxu0 0
          %2452 = vmatpush1.bf16.msra.mxu0 %v2416
          %2453 = vmatprep.subr.bf16.mxu0 0
          %2454 = vmatpush1.bf16.msra.mxu0 %v2417
          %2455 = vmatprep.subr.bf16.mxu0 0
          %2456 = vmatpush1.bf16.msra.mxu0 %v2418
          %2457 = vmatprep.subr.bf16.mxu0 0
          %2458 = vmatpush1.bf16.msra.mxu0 %v2419
          %2459 = vmatprep.subr.bf16.mxu0 0
          %2460 = vmatpush1.bf16.msra.mxu0 %v2420
          %2461 = vmatprep.subr.bf16.mxu0 0
          %2462 = vmatpush1.bf16.msra.mxu0 %v2421
          %2463 = vmatprep.subr.bf16.mxu0 0
          %2464 = vmatpush1.bf16.msra.mxu0 %v2422
          %2465 = vmatprep.subr.bf16.mxu0 0
          %2466 = vmatpush1.bf16.msra.mxu0 %v2423
          %2467 = vmatprep.subr.bf16.mxu0 0
          %2468 = vmatpush1.bf16.msra.mxu0 %v2424
          %2469 = vmatprep.subr.bf16.mxu0 0
          %2470 = vmatpush1.bf16.msra.mxu0 %v2425
          %2471 = vmatprep.subr.bf16.mxu0 0
          %2472 = vmatpush1.bf16.msra.mxu0 %v2426
          %2473 = vmatprep.subr.bf16.mxu0 0
          %2474 = vmatpush1.bf16.msra.mxu0 %v2427
          %2475 = vmatprep.subr.bf16.mxu0 0
          %2476 = vmatpush1.bf16.msra.mxu0 %v2428
          %2477 = vmatprep.mubr.bf16.mxu0 %v2348
          %2478 = vmatmul.mubr.bf16.gmra.mrb[0].mxu0 %v2347
          %v2479 = vpop.f32.mrb[0].mxu0
          %v2480 = vadd.f32 0.0, %v2479
          %v2481 = vpop.f32.mrb[0].mxu0
          %v2482 = vpop.f32.mrb[0].mxu0
          %v2483 = vadd.f32 0.0, %v2482
          %v2484 = vpop.f32.mrb[0].mxu0
          %2485 = vdwg.mxu0
          %v2486 = vld [vmem:[%s10] sm:$0xf]
          %v2487 = vld [vmem:[%s10 + $0x4] sm:$0x3]
          %v2488 = vpack.c.bf16 %v2483, %v2480
          %v2491 = vunpack.c.l.b16 %v2486
          %v2492 = vunpack.c.l.b16 %v2487
          %v2493 = vpack.c.b16 %v2492, %v2491
          %v2495 = vsel %vm2122, %v2493, 0
          %v2498 = vsel %vm2126, %v2488, 0
          %2500 = vmatprep.subr.bf16.mxu0 0
          %2501 = vmatpush1.bf16.msra.mxu0 %v2498
          %2502 = vmatprep.subr.bf16.mxu0 0
          %2503 = vmatpush1.bf16.msra.mxu0 0
          %2504 = vmatprep.subr.bf16.mxu0 0
          %2505 = vmatpush1.bf16.msra.mxu0 0
          %2506 = vmatprep.subr.bf16.mxu0 0
          %2507 = vmatpush1.bf16.msra.mxu0 0
          %2508 = vmatprep.subr.bf16.mxu0 0
          %2509 = vmatpush1.bf16.msra.mxu0 0
          %2510 = vmatprep.subr.bf16.mxu0 0
          %2511 = vmatpush1.bf16.msra.mxu0 0
          %2512 = vmatprep.subr.bf16.mxu0 0
          %2513 = vmatpush1.bf16.msra.mxu0 0
          %2514 = vmatprep.subr.bf16.mxu0 0
          %2515 = vmatpush1.bf16.msra.mxu0 0
          %2516 = vmatprep.subr.bf16.mxu0 0
          %2517 = vmatpush1.bf16.msra.mxu0 0
          %2518 = vmatprep.subr.bf16.mxu0 0
          %2519 = vmatpush1.bf16.msra.mxu0 0
          %2520 = vmatprep.subr.bf16.mxu0 0
          %2521 = vmatpush1.bf16.msra.mxu0 0
          %2522 = vmatprep.subr.bf16.mxu0 0
          %2523 = vmatpush1.bf16.msra.mxu0 0
          %2524 = vmatprep.subr.bf16.mxu0 0
          %2525 = vmatpush1.bf16.msra.mxu0 0
          %2526 = vmatprep.subr.bf16.mxu0 0
          %2527 = vmatpush1.bf16.msra.mxu0 0
          %2528 = vmatprep.subr.bf16.mxu0 0
          %2529 = vmatpush1.bf16.msra.mxu0 0
          %2530 = vmatprep.subr.bf16.mxu0 0
          %2531 = vmatpush1.bf16.msra.mxu0 0
          %2532 = vmatprep.mubr.bf16.mxu0 0
          %2533 = vmatmul.mubr.bf16.gmra.mrb[0].mxu0 %v2495
          %v2534 = vpop.f32.mrb[0].mxu0
          %v2535 = vadd.f32 0.0, %v2534
          %v2536 = vpop.f32.mrb[0].mxu0
          %v2537 = vpop.f32.mrb[0].mxu0
          %v2538 = vadd.f32 0.0, %v2537
          %v2539 = vpop.f32.mrb[0].mxu0
          %2540 = vdwg.mxu0
          %v2541 = vadd.f32 %v2032, %v2535
          %v2542 = vadd.f32 %v2033, %v2538
          %v2543 = vld [vmem:[%s1024] sm:$0xf]
          %v2544 = vld [vmem:[%s1024 + $0x4] sm:$0xf]
          %v2545 = vld [vmem:[%s1024 + $0x8] sm:$0xf]
          %v2546 = vld [vmem:[%s1024 + $0xc] sm:$0xf]
          %v2547 = vpack.c.bf16 %v2542, %v2541
          %v2548 = vld [vmem:[%s1028] sm:$0x1]
          %v2550 = vlaneseq
          %v2551 = vshrl.u32 %v2550, 7
          %v2552 = vsub.s32 0, %v2551
          %v2553 = vrot.slane %v2548, %v2552
          %v2559 = vunpack.c.l.b16 %v2543
          %v2560 = vunpack.c.l.b16 %v2544
          %v2561 = vunpack.c.l.b16 %v2545
          %v2562 = vunpack.c.l.b16 %v2546
          %v2563 = vpack.c.b16 %v2560, %v2559
          %v2564 = vpack.c.b16 %v2562, %v2561
          %v2568 = vsel %vm1975, %v2547, 0
          %2570 = vmatprep.subr.bf16.mxu0 0
          %2571 = vmatpush1.bf16.msra.mxu0 %v2563
          %2572 = vmatprep.subr.bf16.mxu0 0
          %2573 = vmatpush1.bf16.msra.mxu0 %v2564
          %2574 = vmatprep.subr.bf16.mxu0 0
          %2575 = vmatpush1.bf16.msra.mxu0 0
          %2576 = vmatprep.subr.bf16.mxu0 0
          %2577 = vmatpush1.bf16.msra.mxu0 0
          %2578 = vmatprep.subr.bf16.mxu0 0
          %2579 = vmatpush1.bf16.msra.mxu0 0
          %2580 = vmatprep.subr.bf16.mxu0 0
          %2581 = vmatpush1.bf16.msra.mxu0 0
          %2582 = vmatprep.subr.bf16.mxu0 0
          %2583 = vmatpush1.bf16.msra.mxu0 0
          %2584 = vmatprep.subr.bf16.mxu0 0
          %2585 = vmatpush1.bf16.msra.mxu0 0
          %2586 = vmatprep.subr.bf16.mxu0 0
          %2587 = vmatpush1.bf16.msra.mxu0 0
          %2588 = vmatprep.subr.bf16.mxu0 0
          %2589 = vmatpush1.bf16.msra.mxu0 0
          %2590 = vmatprep.subr.bf16.mxu0 0
          %2591 = vmatpush1.bf16.msra.mxu0 0
          %2592 = vmatprep.subr.bf16.mxu0 0
          %2593 = vmatpush1.bf16.msra.mxu0 0
          %2594 = vmatprep.subr.bf16.mxu0 0
          %2595 = vmatpush1.bf16.msra.mxu0 0
          %2596 = vmatprep.subr.bf16.mxu0 0
          %2597 = vmatpush1.bf16.msra.mxu0 0
          %2598 = vmatprep.subr.bf16.mxu0 0
          %2599 = vmatpush1.bf16.msra.mxu0 0
          %2600 = vmatprep.subr.bf16.mxu0 0
          %2601 = vmatpush1.bf16.msra.mxu0 0
          %2602 = vmatprep.mubr.bf16.mxu0 0
          %2603 = vmatmul.mubr.bf16.gmra.mrb[0].mxu0 %v2568
          %v2604 = vpop.f32.mrb[0].mxu0
          %v2605 = vadd.f32 %v2553, %v2604
          %v2606 = vpop.f32.mrb[0].mxu0
          %v2607 = vpop.f32.mrb[0].mxu0
          %v2608 = vadd.f32 %v2553, %v2607
          %v2609 = vpop.f32.mrb[0].mxu0
          %2610 = vdwg.mxu0
          %v2611 = vxor.u32 %v2605, 2147483648
          %v2612 = vxor.u32 %v2608, 2147483648
          %v2613 = vmul.f32 %v2611, 1.442695
          %v2614 = vpow.pop %v2613
          %v2615 = vmul.f32 %v2612, 1.442695
          %v2616 = vpow.pop %v2615
          %v2617 = vadd.f32 %v2614, 1.0
          %v2618 = vadd.f32 %v2616, 1.0
          %v2619 = vrcp.pop %v2617
          %v2620 = vmul.f32 1.0, %v2619
          %v2621 = vrcp.pop %v2618
          %v2622 = vmul.f32 1.0, %v2621
          %v2623 = vmul.f32 %v2605, %v2620
          %v2624 = vmul.f32 %v2608, %v2622
          %s2625 = scalar_lea.vmem %s1024, 16
          %v2626 = vld [vmem:[%s2625] sm:$0xf]
          %v2627 = vld [vmem:[%s2625 + $0x4] sm:$0xf]
          %v2628 = vld [vmem:[%s2625 + $0x8] sm:$0xf]
          %v2629 = vld [vmem:[%s2625 + $0xc] sm:$0xf]
          %v2630 = vpack.c.bf16 %v2624, %v2623
          %s2631 = scalar_lea.vmem %s1028, 1
          %v2632 = vld [vmem:[%s2631] sm:$0x1]
          %v2634 = vlaneseq
          %v2635 = vshrl.u32 %v2634, 7
          %v2636 = vsub.s32 0, %v2635
          %v2637 = vrot.slane %v2632, %v2636
          %v2643 = vunpack.c.l.b16 %v2626
          %v2644 = vunpack.c.l.b16 %v2627
          %v2645 = vunpack.c.l.b16 %v2628
          %v2646 = vunpack.c.l.b16 %v2629
          %v2647 = vpack.c.b16 %v2644, %v2643
          %v2648 = vpack.c.b16 %v2646, %v2645
          %v2652 = vsel %vm1975, %v2630, 0
          %2654 = vmatprep.subr.bf16.mxu0 0
          %2655 = vmatpush1.bf16.msra.mxu0 %v2647
          %2656 = vmatprep.subr.bf16.mxu0 0
          %2657 = vmatpush1.bf16.msra.mxu0 %v2648
          %2658 = vmatprep.subr.bf16.mxu0 0
          %2659 = vmatpush1.bf16.msra.mxu0 0
          %2660 = vmatprep.subr.bf16.mxu0 0
          %2661 = vmatpush1.bf16.msra.mxu0 0
          %2662 = vmatprep.subr.bf16.mxu0 0
          %2663 = vmatpush1.bf16.msra.mxu0 0
          %2664 = vmatprep.subr.bf16.mxu0 0
          %2665 = vmatpush1.bf16.msra.mxu0 0
          %2666 = vmatprep.subr.bf16.mxu0 0
          %2667 = vmatpush1.bf16.msra.mxu0 0
          %2668 = vmatprep.subr.bf16.mxu0 0
          %2669 = vmatpush1.bf16.msra.mxu0 0
          %2670 = vmatprep.subr.bf16.mxu0 0
          %2671 = vmatpush1.bf16.msra.mxu0 0
          %2672 = vmatprep.subr.bf16.mxu0 0
          %2673 = vmatpush1.bf16.msra.mxu0 0
          %2674 = vmatprep.subr.bf16.mxu0 0
          %2675 = vmatpush1.bf16.msra.mxu0 0
          %2676 = vmatprep.subr.bf16.mxu0 0
          %2677 = vmatpush1.bf16.msra.mxu0 0
          %2678 = vmatprep.subr.bf16.mxu0 0
          %2679 = vmatpush1.bf16.msra.mxu0 0
          %2680 = vmatprep.subr.bf16.mxu0 0
          %2681 = vmatpush1.bf16.msra.mxu0 0
          %2682 = vmatprep.subr.bf16.mxu0 0
          %2683 = vmatpush1.bf16.msra.mxu0 0
          %2684 = vmatprep.subr.bf16.mxu0 0
          %2685 = vmatpush1.bf16.msra.mxu0 0
          %2686 = vmatprep.mubr.bf16.mxu0 0
          %2687 = vmatmul.mubr.bf16.gmra.mrb[0].mxu0 %v2652
          %v2688 = vpop.f32.mrb[0].mxu0
          %v2689 = vadd.f32 %v2637, %v2688
          %v2690 = vpop.f32.mrb[0].mxu0
          %v2691 = vpop.f32.mrb[0].mxu0
          %v2692 = vadd.f32 %v2637, %v2691
          %v2693 = vpop.f32.mrb[0].mxu0
          %2694 = vdwg.mxu0
          %v2695 = vxor.u32 %v2689, 2147483648
          %v2696 = vxor.u32 %v2692, 2147483648
          %v2697 = vmul.f32 %v2695, 1.442695
          %v2698 = vpow.pop %v2697
          %v2699 = vmul.f32 %v2696, 1.442695
          %v2700 = vpow.pop %v2699
          %v2701 = vadd.f32 %v2698, 1.0
          %v2702 = vadd.f32 %v2700, 1.0
          %v2703 = vrcp.pop %v2701
          %v2704 = vmul.f32 1.0, %v2703
          %v2705 = vrcp.pop %v2702
          %v2706 = vmul.f32 1.0, %v2705
          %v2707 = vmul.f32 %v2689, %v2704
          %v2708 = vmul.f32 %v2692, %v2706
          %v2709 = vadd.f32 %v2541, %v2707
          %v2710 = vadd.f32 %v2542, %v2708
          %v2711 = vld [vmem:[%s1033] sm:$0xf]
          %v2712 = vld [vmem:[%s1033 + $0x4] sm:$0xf]
          %v2713 = vld [vmem:[%s1033 + $0x8] sm:$0xf]
          %v2714 = vld [vmem:[%s1033 + $0xc] sm:$0xf]
          %v2715 = vpack.c.bf16 %v2710, %v2709
          %v2716 = vld [vmem:[%s1036] sm:$0x1]
          %v2718 = vlaneseq
          %v2719 = vshrl.u32 %v2718, 7
          %v2720 = vsub.s32 0, %v2719
          %v2721 = vrot.slane %v2716, %v2720
          %v2727 = vunpack.c.l.b16 %v2711
          %v2728 = vunpack.c.l.b16 %v2712
          %v2729 = vunpack.c.l.b16 %v2713
          %v2730 = vunpack.c.l.b16 %v2714
          %v2731 = vpack.c.b16 %v2728, %v2727
          %v2732 = vpack.c.b16 %v2730, %v2729
          %v2736 = vsel %vm1975, %v2715, 0
          %2738 = vmatprep.subr.bf16.mxu0 0
          %2739 = vmatpush1.bf16.msra.mxu0 %v2731
          %2740 = vmatprep.subr.bf16.mxu0 0
          %2741 = vmatpush1.bf16.msra.mxu0 %v2732
          %2742 = vmatprep.subr.bf16.mxu0 0
          %2743 = vmatpush1.bf16.msra.mxu0 0
          %2744 = vmatprep.subr.bf16.mxu0 0
          %2745 = vmatpush1.bf16.msra.mxu0 0
          %2746 = vmatprep.subr.bf16.mxu0 0
          %2747 = vmatpush1.bf16.msra.mxu0 0
          %2748 = vmatprep.subr.bf16.mxu0 0
          %2749 = vmatpush1.bf16.msra.mxu0 0
          %2750 = vmatprep.subr.bf16.mxu0 0
          %2751 = vmatpush1.bf16.msra.mxu0 0
          %2752 = vmatprep.subr.bf16.mxu0 0
          %2753 = vmatpush1.bf16.msra.mxu0 0
          %2754 = vmatprep.subr.bf16.mxu0 0
          %2755 = vmatpush1.bf16.msra.mxu0 0
          %2756 = vmatprep.subr.bf16.mxu0 0
          %2757 = vmatpush1.bf16.msra.mxu0 0
          %2758 = vmatprep.subr.bf16.mxu0 0
          %2759 = vmatpush1.bf16.msra.mxu0 0
          %2760 = vmatprep.subr.bf16.mxu0 0
          %2761 = vmatpush1.bf16.msra.mxu0 0
          %2762 = vmatprep.subr.bf16.mxu0 0
          %2763 = vmatpush1.bf16.msra.mxu0 0
          %2764 = vmatprep.subr.bf16.mxu0 0
          %2765 = vmatpush1.bf16.msra.mxu0 0
          %2766 = vmatprep.subr.bf16.mxu0 0
          %2767 = vmatpush1.bf16.msra.mxu0 0
          %2768 = vmatprep.subr.bf16.mxu0 0
          %2769 = vmatpush1.bf16.msra.mxu0 0
          %2770 = vmatprep.mubr.bf16.mxu0 0
          %2771 = vmatmul.mubr.bf16.gmra.mrb[0].mxu0 %v2736
          %v2772 = vpop.f32.mrb[0].mxu0
          %v2773 = vadd.f32 %v2721, %v2772
          %v2774 = vpop.f32.mrb[0].mxu0
          %v2775 = vpop.f32.mrb[0].mxu0
          %v2776 = vadd.f32 %v2721, %v2775
          %v2777 = vpop.f32.mrb[0].mxu0
          %2778 = vdwg.mxu0
          %v2779 = vxor.u32 %v2773, 2147483648
          %v2780 = vxor.u32 %v2776, 2147483648
          %v2781 = vmul.f32 %v2779, 1.442695
          %v2782 = vpow.pop %v2781
          %v2783 = vmul.f32 %v2780, 1.442695
          %v2784 = vpow.pop %v2783
          %v2785 = vadd.f32 %v2782, 1.0
          %v2786 = vadd.f32 %v2784, 1.0
          %v2787 = vrcp.pop %v2785
          %v2788 = vmul.f32 1.0, %v2787
          %v2789 = vrcp.pop %v2786
          %v2790 = vmul.f32 1.0, %v2789
          %v2791 = vmul.f32 %v2773, %v2788
          %v2792 = vmul.f32 %v2776, %v2790
          %v2793 = vadd.f32 %v2791, %v1832
          %v2794 = vadd.f32 %v2792, %v1833
          %s2795 = scalar_lea.vmem %s1024, 32
          %v2796 = vld [vmem:[%s2795] sm:$0xf]
          %v2797 = vld [vmem:[%s2795 + $0x4] sm:$0xf]
          %v2798 = vld [vmem:[%s2795 + $0x8] sm:$0xf]
          %v2799 = vld [vmem:[%s2795 + $0xc] sm:$0xf]
          %v2800 = vpack.c.bf16 %v2794, %v2793
          %s2801 = scalar_lea.vmem %s1028, 2
          %v2802 = vld [vmem:[%s2801] sm:$0x1]
          %v2804 = vlaneseq
          %v2805 = vshrl.u32 %v2804, 7
          %v2806 = vsub.s32 0, %v2805
          %v2807 = vrot.slane %v2802, %v2806
          %v2813 = vunpack.c.l.b16 %v2796
          %v2814 = vunpack.c.l.b16 %v2797
          %v2815 = vunpack.c.l.b16 %v2798
          %v2816 = vunpack.c.l.b16 %v2799
          %v2817 = vpack.c.b16 %v2814, %v2813
          %v2818 = vpack.c.b16 %v2816, %v2815
          %v2822 = vsel %vm1975, %v2800, 0
          %2824 = vmatprep.subr.bf16.mxu0 0
          %2825 = vmatpush1.bf16.msra.mxu0 %v2817
          %2826 = vmatprep.subr.bf16.mxu0 0
          %2827 = vmatpush1.bf16.msra.mxu0 %v2818
          %2828 = vmatprep.subr.bf16.mxu0 0
          %2829 = vmatpush1.bf16.msra.mxu0 0
          %2830 = vmatprep.subr.bf16.mxu0 0
          %2831 = vmatpush1.bf16.msra.mxu0 0
          %2832 = vmatprep.subr.bf16.mxu0 0
          %2833 = vmatpush1.bf16.msra.mxu0 0
          %2834 = vmatprep.subr.bf16.mxu0 0
          %2835 = vmatpush1.bf16.msra.mxu0 0
          %2836 = vmatprep.subr.bf16.mxu0 0
          %2837 = vmatpush1.bf16.msra.mxu0 0
          %2838 = vmatprep.subr.bf16.mxu0 0
          %2839 = vmatpush1.bf16.msra.mxu0 0
          %2840 = vmatprep.subr.bf16.mxu0 0
          %2841 = vmatpush1.bf16.msra.mxu0 0
          %2842 = vmatprep.subr.bf16.mxu0 0
          %2843 = vmatpush1.bf16.msra.mxu0 0
          %2844 = vmatprep.subr.bf16.mxu0 0
          %2845 = vmatpush1.bf16.msra.mxu0 0
          %2846 = vmatprep.subr.bf16.mxu0 0
          %2847 = vmatpush1.bf16.msra.mxu0 0
          %2848 = vmatprep.subr.bf16.mxu0 0
          %2849 = vmatpush1.bf16.msra.mxu0 0
          %2850 = vmatprep.subr.bf16.mxu0 0
          %2851 = vmatpush1.bf16.msra.mxu0 0
          %2852 = vmatprep.subr.bf16.mxu0 0
          %2853 = vmatpush1.bf16.msra.mxu0 0
          %2854 = vmatprep.subr.bf16.mxu0 0
          %2855 = vmatpush1.bf16.msra.mxu0 0
          %2856 = vmatprep.mubr.bf16.mxu0 0
          %2857 = vmatmul.mubr.bf16.gmra.mrb[0].mxu0 %v2822
          %v2858 = vpop.f32.mrb[0].mxu0
          %v2859 = vadd.f32 %v2807, %v2858
          %v2860 = vpop.f32.mrb[0].mxu0
          %v2861 = vpop.f32.mrb[0].mxu0
          %v2862 = vadd.f32 %v2807, %v2861
          %v2863 = vpop.f32.mrb[0].mxu0
          %2864 = vdwg.mxu0
          %v2865 = vxor.u32 %v2859, 2147483648
          %v2866 = vxor.u32 %v2862, 2147483648
          %v2867 = vmul.f32 %v2865, 1.442695
          %v2868 = vpow.pop %v2867
          %v2869 = vmul.f32 %v2866, 1.442695
          %v2870 = vpow.pop %v2869
          %v2871 = vadd.f32 %v2868, 1.0
          %v2872 = vadd.f32 %v2870, 1.0
          %v2873 = vrcp.pop %v2871
          %v2874 = vmul.f32 1.0, %v2873
          %v2875 = vrcp.pop %v2872
          %v2876 = vmul.f32 1.0, %v2875
          %v2877 = vmul.f32 %v2859, %v2874
          %v2878 = vmul.f32 %v2862, %v2876
          %s2879 = scalar_lea.vmem %s1024, 48
          %v2880 = vld [vmem:[%s2879] sm:$0xf]
          %v2881 = vld [vmem:[%s2879 + $0x4] sm:$0xf]
          %v2882 = vld [vmem:[%s2879 + $0x8] sm:$0xf]
          %v2883 = vld [vmem:[%s2879 + $0xc] sm:$0xf]
          %v2884 = vpack.c.bf16 %v2878, %v2877
          %s2885 = scalar_lea.vmem %s1028, 3
          %v2886 = vld [vmem:[%s2885] sm:$0x1]
          %v2888 = vlaneseq
          %v2889 = vshrl.u32 %v2888, 7
          %v2890 = vsub.s32 0, %v2889
          %v2891 = vrot.slane %v2886, %v2890
          %v2897 = vunpack.c.l.b16 %v2880
          %v2898 = vunpack.c.l.b16 %v2881
          %v2899 = vunpack.c.l.b16 %v2882
          %v2900 = vunpack.c.l.b16 %v2883
          %v2901 = vpack.c.b16 %v2898, %v2897
          %v2902 = vpack.c.b16 %v2900, %v2899
          %v2906 = vsel %vm1975, %v2884, 0
          %2908 = vmatprep.subr.bf16.mxu0 0
          %2909 = vmatpush1.bf16.msra.mxu0 %v2901
          %2910 = vmatprep.subr.bf16.mxu0 0
          %2911 = vmatpush1.bf16.msra.mxu0 %v2902
          %2912 = vmatprep.subr.bf16.mxu0 0
          %2913 = vmatpush1.bf16.msra.mxu0 0
          %2914 = vmatprep.subr.bf16.mxu0 0
          %2915 = vmatpush1.bf16.msra.mxu0 0
          %2916 = vmatprep.subr.bf16.mxu0 0
          %2917 = vmatpush1.bf16.msra.mxu0 0
          %2918 = vmatprep.subr.bf16.mxu0 0
          %2919 = vmatpush1.bf16.msra.mxu0 0
          %2920 = vmatprep.subr.bf16.mxu0 0
          %2921 = vmatpush1.bf16.msra.mxu0 0
          %2922 = vmatprep.subr.bf16.mxu0 0
          %2923 = vmatpush1.bf16.msra.mxu0 0
          %2924 = vmatprep.subr.bf16.mxu0 0
          %2925 = vmatpush1.bf16.msra.mxu0 0
          %2926 = vmatprep.subr.bf16.mxu0 0
          %2927 = vmatpush1.bf16.msra.mxu0 0
          %2928 = vmatprep.subr.bf16.mxu0 0
          %2929 = vmatpush1.bf16.msra.mxu0 0
          %2930 = vmatprep.subr.bf16.mxu0 0
          %2931 = vmatpush1.bf16.msra.mxu0 0
          %2932 = vmatprep.subr.bf16.mxu0 0
          %2933 = vmatpush1.bf16.msra.mxu0 0
          %2934 = vmatprep.subr.bf16.mxu0 0
          %2935 = vmatpush1.bf16.msra.mxu0 0
          %2936 = vmatprep.subr.bf16.mxu0 0
          %2937 = vmatpush1.bf16.msra.mxu0 0
          %2938 = vmatprep.subr.bf16.mxu0 0
          %2939 = vmatpush1.bf16.msra.mxu0 0
          %2940 = vmatprep.mubr.bf16.mxu0 0
          %2941 = vmatmul.mubr.bf16.gmra.mrb[0].mxu0 %v2906
          %v2942 = vpop.f32.mrb[0].mxu0
          %v2943 = vadd.f32 %v2891, %v2942
          %v2944 = vpop.f32.mrb[0].mxu0
          %v2945 = vpop.f32.mrb[0].mxu0
          %v2946 = vadd.f32 %v2891, %v2945
          %v2947 = vpop.f32.mrb[0].mxu0
          %2948 = vdwg.mxu0
          %v2949 = vxor.u32 %v2943, 2147483648
          %v2950 = vxor.u32 %v2946, 2147483648
          %v2951 = vmul.f32 %v2949, 1.442695
          %v2952 = vpow.pop %v2951
          %v2953 = vmul.f32 %v2950, 1.442695
          %v2954 = vpow.pop %v2953
          %v2955 = vadd.f32 %v2952, 1.0
          %v2956 = vadd.f32 %v2954, 1.0
          %v2957 = vrcp.pop %v2955
          %v2958 = vmul.f32 1.0, %v2957
          %v2959 = vrcp.pop %v2956
          %v2960 = vmul.f32 1.0, %v2959
          %v2961 = vmul.f32 %v2943, %v2958
          %v2962 = vmul.f32 %v2946, %v2960
          %v2963 = vadd.f32 %v2793, %v2961
          %v2964 = vadd.f32 %v2794, %v2962
          %s2965 = scalar_lea.vmem %s1024, 64
          %v2966 = vld [vmem:[%s2965] sm:$0xf]
          %v2967 = vld [vmem:[%s2965 + $0x4] sm:$0xf]
          %v2968 = vld [vmem:[%s2965 + $0x8] sm:$0xf]
          %v2969 = vld [vmem:[%s2965 + $0xc] sm:$0xf]
          %v2970 = vpack.c.bf16 %v2964, %v2963
          %s2971 = scalar_lea.vmem %s1028, 4
          %v2972 = vld [vmem:[%s2971] sm:$0x1]
          %v2974 = vlaneseq
          %v2975 = vshrl.u32 %v2974, 7
          %v2976 = vsub.s32 0, %v2975
          %v2977 = vrot.slane %v2972, %v2976
          %v2983 = vunpack.c.l.b16 %v2966
          %v2984 = vunpack.c.l.b16 %v2967
          %v2985 = vunpack.c.l.b16 %v2968
          %v2986 = vunpack.c.l.b16 %v2969
          %v2987 = vpack.c.b16 %v2984, %v2983
          %v2988 = vpack.c.b16 %v2986, %v2985
          %v2992 = vsel %vm1975, %v2970, 0
          %2994 = vmatprep.subr.bf16.mxu0 0
          %2995 = vmatpush1.bf16.msra.mxu0 %v2987
          %2996 = vmatprep.subr.bf16.mxu0 0
          %2997 = vmatpush1.bf16.msra.mxu0 %v2988
          %2998 = vmatprep.subr.bf16.mxu0 0
          %2999 = vmatpush1.bf16.msra.mxu0 0
          %3000 = vmatprep.subr.bf16.mxu0 0
          %3001 = vmatpush1.bf16.msra.mxu0 0
          %3002 = vmatprep.subr.bf16.mxu0 0
          %3003 = vmatpush1.bf16.msra.mxu0 0
          %3004 = vmatprep.subr.bf16.mxu0 0
          %3005 = vmatpush1.bf16.msra.mxu0 0
          %3006 = vmatprep.subr.bf16.mxu0 0
          %3007 = vmatpush1.bf16.msra.mxu0 0
          %3008 = vmatprep.subr.bf16.mxu0 0
          %3009 = vmatpush1.bf16.msra.mxu0 0
          %3010 = vmatprep.subr.bf16.mxu0 0
          %3011 = vmatpush1.bf16.msra.mxu0 0
          %3012 = vmatprep.subr.bf16.mxu0 0
          %3013 = vmatpush1.bf16.msra.mxu0 0
          %3014 = vmatprep.subr.bf16.mxu0 0
          %3015 = vmatpush1.bf16.msra.mxu0 0
          %3016 = vmatprep.subr.bf16.mxu0 0
          %3017 = vmatpush1.bf16.msra.mxu0 0
          %3018 = vmatprep.subr.bf16.mxu0 0
          %3019 = vmatpush1.bf16.msra.mxu0 0
          %3020 = vmatprep.subr.bf16.mxu0 0
          %3021 = vmatpush1.bf16.msra.mxu0 0
          %3022 = vmatprep.subr.bf16.mxu0 0
          %3023 = vmatpush1.bf16.msra.mxu0 0
          %3024 = vmatprep.subr.bf16.mxu0 0
          %3025 = vmatpush1.bf16.msra.mxu0 0
          %3026 = vmatprep.mubr.bf16.mxu0 0
          %3027 = vmatmul.mubr.bf16.gmra.mrb[0].mxu0 %v2992
          %v3028 = vpop.f32.mrb[0].mxu0
          %v3029 = vadd.f32 %v2977, %v3028
          %v3030 = vpop.f32.mrb[0].mxu0
          %v3031 = vpop.f32.mrb[0].mxu0
          %v3032 = vadd.f32 %v2977, %v3031
          %v3033 = vpop.f32.mrb[0].mxu0
          %3034 = vdwg.mxu0
          %v3035 = vxor.u32 %v3029, 2147483648
          %v3036 = vxor.u32 %v3032, 2147483648
          %v3037 = vmul.f32 %v3035, 1.442695
          %v3038 = vpow.pop %v3037
          %v3039 = vmul.f32 %v3036, 1.442695
          %v3040 = vpow.pop %v3039
          %v3041 = vadd.f32 %v3038, 1.0
          %v3042 = vadd.f32 %v3040, 1.0
          %v3043 = vrcp.pop %v3041
          %v3044 = vmul.f32 1.0, %v3043
          %v3045 = vrcp.pop %v3042
          %v3046 = vmul.f32 1.0, %v3045
          %v3047 = vmul.f32 %v3029, %v3044
          %v3048 = vmul.f32 %v3032, %v3046
          %s3049 = scalar_lea.vmem %s1024, 80
          %v3050 = vld [vmem:[%s3049] sm:$0xf]
          %v3051 = vld [vmem:[%s3049 + $0x4] sm:$0xf]
          %v3052 = vld [vmem:[%s3049 + $0x8] sm:$0xf]
          %v3053 = vld [vmem:[%s3049 + $0xc] sm:$0xf]
          %v3054 = vpack.c.bf16 %v3048, %v3047
          %s3055 = scalar_lea.vmem %s1028, 5
          %v3056 = vld [vmem:[%s3055] sm:$0x1]
          %v3058 = vlaneseq
          %v3059 = vshrl.u32 %v3058, 7
          %v3060 = vsub.s32 0, %v3059
          %v3061 = vrot.slane %v3056, %v3060
          %v3067 = vunpack.c.l.b16 %v3050
          %v3068 = vunpack.c.l.b16 %v3051
          %v3069 = vunpack.c.l.b16 %v3052
          %v3070 = vunpack.c.l.b16 %v3053
          %v3071 = vpack.c.b16 %v3068, %v3067
          %v3072 = vpack.c.b16 %v3070, %v3069
          %v3076 = vsel %vm1975, %v3054, 0
          %3078 = vmatprep.subr.bf16.mxu0 0
          %3079 = vmatpush1.bf16.msra.mxu0 %v3071
          %3080 = vmatprep.subr.bf16.mxu0 0
          %3081 = vmatpush1.bf16.msra.mxu0 %v3072
          %3082 = vmatprep.subr.bf16.mxu0 0
          %3083 = vmatpush1.bf16.msra.mxu0 0
          %3084 = vmatprep.subr.bf16.mxu0 0
          %3085 = vmatpush1.bf16.msra.mxu0 0
          %3086 = vmatprep.subr.bf16.mxu0 0
          %3087 = vmatpush1.bf16.msra.mxu0 0
          %3088 = vmatprep.subr.bf16.mxu0 0
          %3089 = vmatpush1.bf16.msra.mxu0 0
          %3090 = vmatprep.subr.bf16.mxu0 0
          %3091 = vmatpush1.bf16.msra.mxu0 0
          %3092 = vmatprep.subr.bf16.mxu0 0
          %3093 = vmatpush1.bf16.msra.mxu0 0
          %3094 = vmatprep.subr.bf16.mxu0 0
          %3095 = vmatpush1.bf16.msra.mxu0 0
          %3096 = vmatprep.subr.bf16.mxu0 0
          %3097 = vmatpush1.bf16.msra.mxu0 0
          %3098 = vmatprep.subr.bf16.mxu0 0
          %3099 = vmatpush1.bf16.msra.mxu0 0
          %3100 = vmatprep.subr.bf16.mxu0 0
          %3101 = vmatpush1.bf16.msra.mxu0 0
          %3102 = vmatprep.subr.bf16.mxu0 0
          %3103 = vmatpush1.bf16.msra.mxu0 0
          %3104 = vmatprep.subr.bf16.mxu0 0
          %3105 = vmatpush1.bf16.msra.mxu0 0
          %3106 = vmatprep.subr.bf16.mxu0 0
          %3107 = vmatpush1.bf16.msra.mxu0 0
          %3108 = vmatprep.subr.bf16.mxu0 0
          %3109 = vmatpush1.bf16.msra.mxu0 0
          %3110 = vmatprep.mubr.bf16.mxu0 0
          %3111 = vmatmul.mubr.bf16.gmra.mrb[0].mxu0 %v3076
          %v3112 = vpop.f32.mrb[0].mxu0
          %v3113 = vadd.f32 %v3061, %v3112
          %v3114 = vpop.f32.mrb[0].mxu0
          %v3115 = vpop.f32.mrb[0].mxu0
          %v3116 = vadd.f32 %v3061, %v3115
          %v3117 = vpop.f32.mrb[0].mxu0
          %3118 = vdwg.mxu0
          %v3119 = vxor.u32 %v3113, 2147483648
          %v3120 = vxor.u32 %v3116, 2147483648
          %v3121 = vmul.f32 %v3119, 1.442695
          %v3122 = vpow.pop %v3121
          %v3123 = vmul.f32 %v3120, 1.442695
          %v3124 = vpow.pop %v3123
          %v3125 = vadd.f32 %v3122, 1.0
          %v3126 = vadd.f32 %v3124, 1.0
          %v3127 = vrcp.pop %v3125
          %v3128 = vmul.f32 1.0, %v3127
          %v3129 = vrcp.pop %v3126
          %v3130 = vmul.f32 1.0, %v3129
          %v3131 = vmul.f32 %v3113, %v3128
          %v3132 = vmul.f32 %v3116, %v3130
          %v3133 = vadd.f32 %v2963, %v3131
          %v3134 = vadd.f32 %v2964, %v3132
          %3135 = vst.msk [vmem:[#allocation4] sm:$0xff] %vm1975, %v3133
          %vm3136 = vcmask 257024
          %3137 = vst.msk [vmem:[#allocation4 + $0x8] sm:$0xf] %vm3136, %v3134
        $region136: #{dimenet_forward.1} parent=127 // pred_fallthru
          _
        %v3138 = vld [vmem:[#allocation4] sm:$0xff]
        %v3139 = vld [vmem:[#allocation4 + $0x8] sm:$0xf]
        %v3140 = vld [vmem:[#allocation2] sm:$0xff]
        %v3141 = vld [vmem:[#allocation2 + $0x8] sm:$0xf]
        %v3142 = vld [vmem:[%s1040] sm:$0x7]
        %v3143 = vpack.c.bf16 %v3141, %v3140
        %vm3144 = vcmask 48128
        %v3146 = vsel %vm3144, %v3143, 0
        %vm3148 = vcmask 1042432
        %v3150 = vsel %vm3148, %v3142, 0
        %3152 = vmatprep.subr.bf16.mxu0 0
        %3153 = vmatpush1.bf16.msra.mxu0 %v3150
        %3154 = vmatprep.subr.bf16.mxu0 0
        %3155 = vmatpush1.bf16.msra.mxu0 0
        %3156 = vmatprep.subr.bf16.mxu0 0
        %3157 = vmatpush1.bf16.msra.mxu0 0
        %3158 = vmatprep.subr.bf16.mxu0 0
        %3159 = vmatpush1.bf16.msra.mxu0 0
        %3160 = vmatprep.subr.bf16.mxu0 0
        %3161 = vmatpush1.bf16.msra.mxu0 0
        %3162 = vmatprep.subr.bf16.mxu0 0
        %3163 = vmatpush1.bf16.msra.mxu0 0
        %3164 = vmatprep.subr.bf16.mxu0 0
        %3165 = vmatpush1.bf16.msra.mxu0 0
        %3166 = vmatprep.subr.bf16.mxu0 0
        %3167 = vmatpush1.bf16.msra.mxu0 0
        %3168 = vmatprep.subr.bf16.mxu0 0
        %3169 = vmatpush1.bf16.msra.mxu0 0
        %3170 = vmatprep.subr.bf16.mxu0 0
        %3171 = vmatpush1.bf16.msra.mxu0 0
        %3172 = vmatprep.subr.bf16.mxu0 0
        %3173 = vmatpush1.bf16.msra.mxu0 0
        %3174 = vmatprep.subr.bf16.mxu0 0
        %3175 = vmatpush1.bf16.msra.mxu0 0
        %3176 = vmatprep.subr.bf16.mxu0 0
        %3177 = vmatpush1.bf16.msra.mxu0 0
        %3178 = vmatprep.subr.bf16.mxu0 0
        %3179 = vmatpush1.bf16.msra.mxu0 0
        %3180 = vmatprep.subr.bf16.mxu0 0
        %3181 = vmatpush1.bf16.msra.mxu0 0
        %3182 = vmatprep.subr.bf16.mxu0 0
        %3183 = vmatpush1.bf16.msra.mxu0 0
        %3184 = vmatprep.mubr.bf16.mxu0 0
        %3185 = vmatmul.mubr.bf16.gmra.mrb[0].mxu0 %v3146
        %v3186 = vpop.f32.mrb[0].mxu0
        %v3187 = vadd.f32 0.0, %v3186
        %v3188 = vpop.f32.mrb[0].mxu0
        %v3189 = vpop.f32.mrb[0].mxu0
        %v3190 = vadd.f32 0.0, %v3189
        %v3191 = vpop.f32.mrb[0].mxu0
        %3192 = vdwg.mxu0
        %v3193 = vld [vmem:[%s11] sm:$0x7]
        %v3194 = vmul.f32 %v3138, %v3187
        %v3195 = vmul.f32 %v3139, %v3190
        %v3196 = vpack.c.bf16 %v3195, %v3194
        %vm3197 = vcmask 97280
        %v3199 = vsel %vm3197, %v3193, 0
        %vm3201 = vcmask 1045504
        %v3203 = vsel %vm3201, %v3196, 0
        %3205 = vmatprep.subr.bf16.mxu0 0
        %3206 = vmatpush1.bf16.msra.mxu0 %v3203
        %3207 = vmatprep.subr.bf16.mxu0 0
        %3208 = vmatpush1.bf16.msra.mxu0 0
        %3209 = vmatprep.subr.bf16.mxu0 0
        %3210 = vmatpush1.bf16.msra.mxu0 0
        %3211 = vmatprep.subr.bf16.mxu0 0
        %3212 = vmatpush1.bf16.msra.mxu0 0
        %3213 = vmatprep.subr.bf16.mxu0 0
        %3214 = vmatpush1.bf16.msra.mxu0 0
        %3215 = vmatprep.subr.bf16.mxu0 0
        %3216 = vmatpush1.bf16.msra.mxu0 0
        %3217 = vmatprep.subr.bf16.mxu0 0
        %3218 = vmatpush1.bf16.msra.mxu0 0
        %3219 = vmatprep.subr.bf16.mxu0 0
        %3220 = vmatpush1.bf16.msra.mxu0 0
        %3221 = vmatprep.subr.bf16.mxu0 0
        %3222 = vmatpush1.bf16.msra.mxu0 0
        %3223 = vmatprep.subr.bf16.mxu0 0
        %3224 = vmatpush1.bf16.msra.mxu0 0
        %3225 = vmatprep.subr.bf16.mxu0 0
        %3226 = vmatpush1.bf16.msra.mxu0 0
        %3227 = vmatprep.subr.bf16.mxu0 0
        %3228 = vmatpush1.bf16.msra.mxu0 0
        %3229 = vmatprep.subr.bf16.mxu0 0
        %3230 = vmatpush1.bf16.msra.mxu0 0
        %3231 = vmatprep.subr.bf16.mxu0 0
        %3232 = vmatpush1.bf16.msra.mxu0 0
        %3233 = vmatprep.subr.bf16.mxu0 0
        %3234 = vmatpush1.bf16.msra.mxu0 0
        %3235 = vmatprep.subr.bf16.mxu0 0
        %3236 = vmatpush1.bf16.msra.mxu0 0
        %3237 = vmatprep.mubr.bf16.mxu0 0
        %3238 = vmatmul.mubr.bf16.gmra.mrb[0].mxu0 %v3199
        %v3239 = vpop.f32.mrb[0].mxu0
        %v3240 = vadd.f32 0.0, %v3239
        %v3241 = vpop.f32.mrb[0].mxu0
        %v3242 = vpop.f32.mrb[0].mxu0
        %v3243 = vpop.f32.mrb[0].mxu0
        %3244 = vdwg.mxu0
        %v3245 = vld [vmem:[%s1045] sm:$0xf]
        %v3246 = vld [vmem:[%s1045 + $0x4] sm:$0xf]
        %v3247 = vld [vmem:[%s1045 + $0x8] sm:$0xf]
        %v3248 = vld [vmem:[%s1045 + $0xc] sm:$0xf]
        %v3249 = vpack.c.bf16 %v3240, %v3240
        %v3250 = vld [vmem:[%s1049] sm:$0x1]
        %v3252 = vlaneseq
        %v3253 = vshrl.u32 %v3252, 7
        %v3254 = vsub.s32 0, %v3253
        %v3255 = vrot.slane %v3250, %v3254
        %v3261 = vunpack.c.l.b16 %v3245
        %v3262 = vunpack.c.l.b16 %v3246
        %v3263 = vunpack.c.l.b16 %v3247
        %v3264 = vunpack.c.l.b16 %v3248
        %v3265 = vpack.c.b16 %v3262, %v3261
        %v3266 = vpack.c.b16 %v3264, %v3263
        %vm3269 = vcmask 261120
        %v3271 = vsel %vm3269, %v3249, 0
        %3273 = vmatprep.subr.bf16.mxu0 0
        %3274 = vmatpush1.bf16.msra.mxu0 %v3265
        %3275 = vmatprep.subr.bf16.mxu0 0
        %3276 = vmatpush1.bf16.msra.mxu0 %v3266
        %3277 = vmatprep.subr.bf16.mxu0 0
        %3278 = vmatpush1.bf16.msra.mxu0 0
        %3279 = vmatprep.subr.bf16.mxu0 0
        %3280 = vmatpush1.bf16.msra.mxu0 0
        %3281 = vmatprep.subr.bf16.mxu0 0
        %3282 = vmatpush1.bf16.msra.mxu0 0
        %3283 = vmatprep.subr.bf16.mxu0 0
        %3284 = vmatpush1.bf16.msra.mxu0 0
        %3285 = vmatprep.subr.bf16.mxu0 0
        %3286 = vmatpush1.bf16.msra.mxu0 0
        %3287 = vmatprep.subr.bf16.mxu0 0
        %3288 = vmatpush1.bf16.msra.mxu0 0
        %3289 = vmatprep.subr.bf16.mxu0 0
        %3290 = vmatpush1.bf16.msra.mxu0 0
        %3291 = vmatprep.subr.bf16.mxu0 0
        %3292 = vmatpush1.bf16.msra.mxu0 0
        %3293 = vmatprep.subr.bf16.mxu0 0
        %3294 = vmatpush1.bf16.msra.mxu0 0
        %3295 = vmatprep.subr.bf16.mxu0 0
        %3296 = vmatpush1.bf16.msra.mxu0 0
        %3297 = vmatprep.subr.bf16.mxu0 0
        %3298 = vmatpush1.bf16.msra.mxu0 0
        %3299 = vmatprep.subr.bf16.mxu0 0
        %3300 = vmatpush1.bf16.msra.mxu0 0
        %3301 = vmatprep.subr.bf16.mxu0 0
        %3302 = vmatpush1.bf16.msra.mxu0 0
        %3303 = vmatprep.subr.bf16.mxu0 0
        %3304 = vmatpush1.bf16.msra.mxu0 0
        %3305 = vmatprep.mubr.bf16.mxu0 0
        %3306 = vmatmul.mubr.bf16.gmra.mrb[0].mxu0 %v3271
        %v3307 = vpop.f32.mrb[0].mxu0
        %v3308 = vadd.f32 %v3255, %v3307
        %v3309 = vpop.f32.mrb[0].mxu0
        %v3310 = vpop.f32.mrb[0].mxu0
        %v3311 = vpop.f32.mrb[0].mxu0
        %3312 = vdwg.mxu0
        %v3313 = vxor.u32 %v3308, 2147483648
        %v3314 = vmul.f32 %v3313, 1.442695
        %v3315 = vpow.pop %v3314
        %v3316 = vadd.f32 %v3315, 1.0
        %v3317 = vrcp.pop %v3316
        %v3318 = vmul.f32 1.0, %v3317
        %v3319 = vmul.f32 %v3308, %v3318
        %s3320 = scalar_lea.vmem %s1045, 16
        %v3321 = vld [vmem:[%s3320] sm:$0xf]
        %v3322 = vld [vmem:[%s3320 + $0x4] sm:$0xf]
        %v3323 = vld [vmem:[%s3320 + $0x8] sm:$0xf]
        %v3324 = vld [vmem:[%s3320 + $0xc] sm:$0xf]
        %v3325 = vpack.c.bf16 %v3319, %v3319
        %s3326 = scalar_lea.vmem %s1049, 1
        %v3327 = vld [vmem:[%s3326] sm:$0x1]
        %v3329 = vlaneseq
        %v3330 = vshrl.u32 %v3329, 7
        %v3331 = vsub.s32 0, %v3330
        %v3332 = vrot.slane %v3327, %v3331
        %v3338 = vunpack.c.l.b16 %v3321
        %v3339 = vunpack.c.l.b16 %v3322
        %v3340 = vunpack.c.l.b16 %v3323
        %v3341 = vunpack.c.l.b16 %v3324
        %v3342 = vpack.c.b16 %v3339, %v3338
        %v3343 = vpack.c.b16 %v3341, %v3340
        %v3347 = vsel %vm3269, %v3325, 0
        %3349 = vmatprep.subr.bf16.mxu0 0
        %3350 = vmatpush1.bf16.msra.mxu0 %v3342
        %3351 = vmatprep.subr.bf16.mxu0 0
        %3352 = vmatpush1.bf16.msra.mxu0 %v3343
        %3353 = vmatprep.subr.bf16.mxu0 0
        %3354 = vmatpush1.bf16.msra.mxu0 0
        %3355 = vmatprep.subr.bf16.mxu0 0
        %3356 = vmatpush1.bf16.msra.mxu0 0
        %3357 = vmatprep.subr.bf16.mxu0 0
        %3358 = vmatpush1.bf16.msra.mxu0 0
        %3359 = vmatprep.subr.bf16.mxu0 0
        %3360 = vmatpush1.bf16.msra.mxu0 0
        %3361 = vmatprep.subr.bf16.mxu0 0
        %3362 = vmatpush1.bf16.msra.mxu0 0
        %3363 = vmatprep.subr.bf16.mxu0 0
        %3364 = vmatpush1.bf16.msra.mxu0 0
        %3365 = vmatprep.subr.bf16.mxu0 0
        %3366 = vmatpush1.bf16.msra.mxu0 0
        %3367 = vmatprep.subr.bf16.mxu0 0
        %3368 = vmatpush1.bf16.msra.mxu0 0
        %3369 = vmatprep.subr.bf16.mxu0 0
        %3370 = vmatpush1.bf16.msra.mxu0 0
        %3371 = vmatprep.subr.bf16.mxu0 0
        %3372 = vmatpush1.bf16.msra.mxu0 0
        %3373 = vmatprep.subr.bf16.mxu0 0
        %3374 = vmatpush1.bf16.msra.mxu0 0
        %3375 = vmatprep.subr.bf16.mxu0 0
        %3376 = vmatpush1.bf16.msra.mxu0 0
        %3377 = vmatprep.subr.bf16.mxu0 0
        %3378 = vmatpush1.bf16.msra.mxu0 0
        %3379 = vmatprep.subr.bf16.mxu0 0
        %3380 = vmatpush1.bf16.msra.mxu0 0
        %3381 = vmatprep.mubr.bf16.mxu0 0
        %3382 = vmatmul.mubr.bf16.gmra.mrb[0].mxu0 %v3347
        %v3383 = vpop.f32.mrb[0].mxu0
        %v3384 = vadd.f32 %v3332, %v3383
        %v3385 = vpop.f32.mrb[0].mxu0
        %v3386 = vpop.f32.mrb[0].mxu0
        %v3387 = vpop.f32.mrb[0].mxu0
        %3388 = vdwg.mxu0
        %v3389 = vxor.u32 %v3384, 2147483648
        %v3390 = vmul.f32 %v3389, 1.442695
        %v3391 = vpow.pop %v3390
        %v3392 = vadd.f32 %v3391, 1.0
        %v3393 = vrcp.pop %v3392
        %v3394 = vmul.f32 1.0, %v3393
        %v3395 = vmul.f32 %v3384, %v3394
        %s3396 = scalar_lea.vmem %s1045, 32
        %v3397 = vld [vmem:[%s3396] sm:$0xf]
        %v3398 = vld [vmem:[%s3396 + $0x4] sm:$0xf]
        %v3399 = vld [vmem:[%s3396 + $0x8] sm:$0xf]
        %v3400 = vld [vmem:[%s3396 + $0xc] sm:$0xf]
        %v3401 = vpack.c.bf16 %v3395, %v3395
        %s3402 = scalar_lea.vmem %s1049, 2
        %v3403 = vld [vmem:[%s3402] sm:$0x1]
        %v3405 = vlaneseq
        %v3406 = vshrl.u32 %v3405, 7
        %v3407 = vsub.s32 0, %v3406
        %v3408 = vrot.slane %v3403, %v3407
        %v3414 = vunpack.c.l.b16 %v3397
        %v3415 = vunpack.c.l.b16 %v3398
        %v3416 = vunpack.c.l.b16 %v3399
        %v3417 = vunpack.c.l.b16 %v3400
        %v3418 = vpack.c.b16 %v3415, %v3414
        %v3419 = vpack.c.b16 %v3417, %v3416
        %v3423 = vsel %vm3269, %v3401, 0
        %3425 = vmatprep.subr.bf16.mxu0 0
        %3426 = vmatpush1.bf16.msra.mxu0 %v3418
        %3427 = vmatprep.subr.bf16.mxu0 0
        %3428 = vmatpush1.bf16.msra.mxu0 %v3419
        %3429 = vmatprep.subr.bf16.mxu0 0
        %3430 = vmatpush1.bf16.msra.mxu0 0
        %3431 = vmatprep.subr.bf16.mxu0 0
        %3432 = vmatpush1.bf16.msra.mxu0 0
        %3433 = vmatprep.subr.bf16.mxu0 0
        %3434 = vmatpush1.bf16.msra.mxu0 0
        %3435 = vmatprep.subr.bf16.mxu0 0
        %3436 = vmatpush1.bf16.msra.mxu0 0
        %3437 = vmatprep.subr.bf16.mxu0 0
        %3438 = vmatpush1.bf16.msra.mxu0 0
        %3439 = vmatprep.subr.bf16.mxu0 0
        %3440 = vmatpush1.bf16.msra.mxu0 0
        %3441 = vmatprep.subr.bf16.mxu0 0
        %3442 = vmatpush1.bf16.msra.mxu0 0
        %3443 = vmatprep.subr.bf16.mxu0 0
        %3444 = vmatpush1.bf16.msra.mxu0 0
        %3445 = vmatprep.subr.bf16.mxu0 0
        %3446 = vmatpush1.bf16.msra.mxu0 0
        %3447 = vmatprep.subr.bf16.mxu0 0
        %3448 = vmatpush1.bf16.msra.mxu0 0
        %3449 = vmatprep.subr.bf16.mxu0 0
        %3450 = vmatpush1.bf16.msra.mxu0 0
        %3451 = vmatprep.subr.bf16.mxu0 0
        %3452 = vmatpush1.bf16.msra.mxu0 0
        %3453 = vmatprep.subr.bf16.mxu0 0
        %3454 = vmatpush1.bf16.msra.mxu0 0
        %3455 = vmatprep.subr.bf16.mxu0 0
        %3456 = vmatpush1.bf16.msra.mxu0 0
        %3457 = vmatprep.mubr.bf16.mxu0 0
        %3458 = vmatmul.mubr.bf16.gmra.mrb[0].mxu0 %v3423
        %v3459 = vpop.f32.mrb[0].mxu0
        %v3460 = vadd.f32 %v3408, %v3459
        %v3461 = vpop.f32.mrb[0].mxu0
        %v3462 = vpop.f32.mrb[0].mxu0
        %v3463 = vpop.f32.mrb[0].mxu0
        %3464 = vdwg.mxu0
        %v3465 = vxor.u32 %v3460, 2147483648
        %v3466 = vmul.f32 %v3465, 1.442695
        %v3467 = vpow.pop %v3466
        %v3468 = vadd.f32 %v3467, 1.0
        %v3469 = vrcp.pop %v3468
        %v3470 = vmul.f32 1.0, %v3469
        %v3471 = vmul.f32 %v3460, %v3470
        %vm3472 = vcmask 259072
        %v3473 = vsel %vm3472, %v3471, 0.0
        %v3474 = vrot.slane %v3473, 4
        %v3475 = vadd.f32 %v3473, %v3474
        %v3476 = vrot.slane %v3475, 2
        %v3477 = vadd.f32 %v3475, %v3476
        %v3478 = vrot.slane %v3477, 1
        %v3479 = vadd.f32 %v3477, %v3478
        %v3480 = vld [vmem:[#allocation5] sm:$0x1]
        %v3481 = vld [vmem:[%s1054] sm:$0xf]
        %v3482 = vld [vmem:[%s1054 + $0x4] sm:$0xf]
        %v3483 = vld [vmem:[%s1054 + $0x8] sm:$0xf]
        %v3484 = vld [vmem:[%s1054 + $0xc] sm:$0xf]
        %v3485 = vpack.c.bf16 %v3479, %v3479
        %v3490 = vunpack.c.l.b16 %v3481
        %v3491 = vunpack.c.l.b16 %v3482
        %v3492 = vunpack.c.l.b16 %v3483
        %v3493 = vunpack.c.l.b16 %v3484
        %v3494 = vpack.c.b16 %v3491, %v3490
        %v3495 = vpack.c.b16 %v3493, %v3492
        %v3499 = vsel %vm3269, %v3485, 0
        %3501 = vmatprep.subr.bf16.mxu0 0
        %3502 = vmatpush1.bf16.msra.mxu0 %v3494
        %3503 = vmatprep.subr.bf16.mxu0 0
        %3504 = vmatpush1.bf16.msra.mxu0 %v3495
        %3505 = vmatprep.subr.bf16.mxu0 0
        %3506 = vmatpush1.bf16.msra.mxu0 0
        %3507 = vmatprep.subr.bf16.mxu0 0
        %3508 = vmatpush1.bf16.msra.mxu0 0
        %3509 = vmatprep.subr.bf16.mxu0 0
        %3510 = vmatpush1.bf16.msra.mxu0 0
        %3511 = vmatprep.subr.bf16.mxu0 0
        %3512 = vmatpush1.bf16.msra.mxu0 0
        %3513 = vmatprep.subr.bf16.mxu0 0
        %3514 = vmatpush1.bf16.msra.mxu0 0
        %3515 = vmatprep.subr.bf16.mxu0 0
        %3516 = vmatpush1.bf16.msra.mxu0 0
        %3517 = vmatprep.subr.bf16.mxu0 0
        %3518 = vmatpush1.bf16.msra.mxu0 0
        %3519 = vmatprep.subr.bf16.mxu0 0
        %3520 = vmatpush1.bf16.msra.mxu0 0
        %3521 = vmatprep.subr.bf16.mxu0 0
        %3522 = vmatpush1.bf16.msra.mxu0 0
        %3523 = vmatprep.subr.bf16.mxu0 0
        %3524 = vmatpush1.bf16.msra.mxu0 0
        %3525 = vmatprep.subr.bf16.mxu0 0
        %3526 = vmatpush1.bf16.msra.mxu0 0
        %3527 = vmatprep.subr.bf16.mxu0 0
        %3528 = vmatpush1.bf16.msra.mxu0 0
        %3529 = vmatprep.subr.bf16.mxu0 0
        %3530 = vmatpush1.bf16.msra.mxu0 0
        %3531 = vmatprep.subr.bf16.mxu0 0
        %3532 = vmatpush1.bf16.msra.mxu0 0
        %3533 = vmatprep.mubr.bf16.mxu0 0
        %3534 = vmatmul.mubr.bf16.gmra.mrb[0].mxu0 %v3499
        %v3535 = vpop.f32.mrb[0].mxu0
        %v3536 = vadd.f32 0.0, %v3535
        %v3537 = vpop.f32.mrb[0].mxu0
        %v3538 = vpop.f32.mrb[0].mxu0
        %v3539 = vpop.f32.mrb[0].mxu0
        %3540 = vdwg.mxu0
        %v3541 = vadd.f32 %v3480, %v3536
        %vm3542 = vcmask 90112
        %3543 = vst.msk [vmem:[#allocation5] sm:$0x1] %vm3542, %v3541
        // Predicated region
        $region137: #{dimenet_forward.1} parent=127 // pred_check
          %p3544 = pneg %p694
        $region138: #{dimenet_forward.1} parent=127 // pred_check_branch
          %3546 = sbr.rel (%p3544) target = $region140
        $region139: #{dimenet_forward.1} parent=127 // pred_region
          %s3548 = ssub.s32 16, 16
          %3549 = vsyncadd [#allocation6], %s3548
          %s3551 = sshll.u32 [#allocation5], 4
          %s3552 = int_to_ptr.vmem [resolvable:$true] %s3551
          %3554 = dma.vmem_to_hbm [thread:$0]  %s3552, 16, %s27, [#allocation6]
        $region140: #{dimenet_forward.1} parent=127 // pred_fallthru
          _
        // Predicated region
        $region141: #{dimenet_forward.1} parent=127 // pred_check
          %p3555 = pneg %p694
        $region142: #{dimenet_forward.1} parent=127 // pred_check_branch
          %3557 = sbr.rel (%p3555) target = $region144
        $region143: #{dimenet_forward.1} parent=127 // pred_region
          %3558 = dma.done [#allocation6], 16
        $region144: #{dimenet_forward.1} parent=127 // pred_fallthru
          _
      $region128: #{dimenet_forward.1} parent=5 // pred_fallthru
        _
      %p3559 = scmp.le.s32.totalorder 2, %s34
      // Predicated region
      $region145: #{dimenet_forward.1} parent=5 // pred_check
        %p3560 = pneg %p3559
      $region146: #{dimenet_forward.1} parent=5 // pred_check_branch
        %3562 = sbr.rel (%p3560) target = $region148
      $region147: #{dimenet_forward.1} parent=5 // pred_region
        %s3563 = ssub.s32 %s34, 2
      $region148: #{dimenet_forward.1} parent=5 // pred_fallthru
        _
    $region6: #{dimenet_forward.1} parent=1 // loop_footer
      %s38 = sadd.s32 1, %s34
    $region7: #{dimenet_forward.1} parent=1 // loop_footer_branch
      %33 = sbr.rel target = $region3
    $region8: #{dimenet_forward.1} parent=1 // loop_exit
      _
    %3564 = vsyncpa [#allocation6], 1
    %s3565 = scalar_lea.sflag [#allocation6], 1
    %3566 = vsyncpa %s3565, 1

</llo_original>
